<compile_context>
chip_gen: v7x
topology: tpu7x:2x2x1
jax: 0.10.0
libtpu: 0.0.40
codegen_flags: <defaults>
</compile_context>

<pallas_src>
import functools

import jax
import jax.numpy as jnp
from jax.experimental import pallas as pl
from jax.experimental.pallas import tpu as pltpu

EPS = 1e-5          # nn.InstanceNorm2d default
LANE = 128
SUBLANE = 8


def _round_up(x, m):
    return (x + m - 1) // m * m


def _vmem_capacity_bytes():
    """Per-core VMEM capacity (clamped to 128 MiB); conservative 64 MiB fallback."""
    try:
        cap = int(pltpu.get_tpu_info().vmem_capacity_bytes)
        if cap > 0:
            return min(cap, 128 * 1024 * 1024)
    except Exception:
        pass
    return 64 * 1024 * 1024


def _fused_fits(h, wpp, cin, tco, k, in_bytes, out_bytes, budget):
    """Working set of the single-pass (whole-plane) kernel."""
    mxf = (h + k - 1) * wpp + (k - 1)
    m = h * wpp
    need = 2 * mxf * cin * in_bytes            # x plane (double buffered)
    need += 2 * k * k * cin * tco * in_bytes   # weight block (double buffered)
    need += 2 * m * tco * out_bytes            # output plane (double buffered)
    need += 2 * m * tco * 4                    # f32 conv plane + one live temp
    need += 2 * m * 4                          # column mask
    return need <= budget


def _pick_tile_h(h, wpp, cin, tco, k, in_bytes, out_bytes, budget):
    """Largest rows-per-tile whose pass-2 (the larger pass) working set fits budget."""
    for th in range(h, 0, -1):
        mx = (th + k - 1) * wpp + (k - 1)
        m2 = th * wpp
        need = 2 * mx * cin * in_bytes
        need += 2 * k * k * cin * tco * in_bytes
        need += 2 * m2 * tco * out_bytes
        need += 2 * m2 * tco * 4
        need += 2 * m2 * 4
        if need <= budget:
            return th
    return 1


def _conv_accum(x_ref, w_ref, m, wpp, k):
    """K*K-tap conv of a flattened, reflect-padded row tile as accumulated MXU matmuls.

    x_ref : (m + (k-1)*wpp + (k-1), Cin)   flat padded rows (+ tap-shift slack)
    w_ref : (k*k, Cin, Cout_tile)
    Returns (m, Cout_tile) f32 (columns >= W of each row group are junk).
    """
    acc = jnp.zeros((m, w_ref.shape[-1]), jnp.float32)
    for t in range(k * k):                      # fully unrolled static tap loop
        ki, kj = divmod(t, k)
        xs = x_ref[pl.ds(ki * wpp + kj, m), :]  # static row shift in the flat layout
        acc = acc + jnp.dot(xs, w_ref[t], preferred_element_type=jnp.float32)
    return acc


# --------------------------- fused single-pass kernel ---------------------------------
def _fused_kernel(x_ref, w_ref, mask_ref, o_ref, *, h, w_count, wpp, k, use_act):
    """Conv whole plane -> InstanceNorm stats -> normalize -> ReLU -> lane-dense store."""
    m = h * wpp
    acc = _conv_accum(x_ref, w_ref, m, wpp, k)          # (m, tco) f32
    ym = acc * mask_ref[...]                             # zero junk columns for stats
    inv_cnt = 1.0 / float(h * w_count)
    mean = jnp.sum(ym, axis=0, keepdims=True) * inv_cnt  # (1, tco)
    var = jnp.maximum(jnp.sum(ym * ym, axis=0, keepdims=True) * inv_cnt - mean * mean, 0.0)
    y = (acc - mean) * jax.lax.rsqrt(var + EPS)
    if use_act:
        y = jnp.maximum(y, 0.0)
    o_ref[...] = y.astype(o_ref.dtype)


# --------------------------- 2-pass fallback (large feature maps) ---------------------
def _stats_kernel(x_ref, w_ref, mask_ref, stats_ref, *, th, wpp, k):
    """Pass 1: conv tile -> accumulate per-(sample, channel) sum / sum-of-squares."""
    i = pl.program_id(2)                                 # H-tile axis ("arbitrary")
    acc = _conv_accum(x_ref, w_ref, th * wpp, wpp, k)
    ym = acc * mask_ref[...]                             # mask junk cols + padded rows
    s = jnp.sum(ym, axis=0, keepdims=True)
    ss = jnp.sum(ym * ym, axis=0, keepdims=True)
    part = jnp.concatenate([s, ss], axis=0)              # (2, tco)

    @pl.when(i == 0)
    def _():
        stats_ref[...] = jnp.zeros_like(stats_ref)

    stats_ref[...] = stats_ref[...] + part


def _norm_kernel(x_ref, w_ref, stats_ref, o_ref, *, th, wpp, k, inv_count, use_act):
    """Pass 2: recompute conv tile, InstanceNorm with precomputed stats, ReLU."""
    acc = _conv_accum(x_ref, w_ref, th * wpp, wpp, k)
    mean = stats_ref[0:1, :] * inv_count
    var = jnp.maximum(stats_ref[1:2, :] * inv_count - mean * mean, 0.0)
    y = (acc - mean) * jax.lax.rsqrt(var + EPS)
    if use_act:
        y = jnp.maximum(y, 0.0)
    o_ref[...] = y.astype(o_ref.dtype)


# --------------------------------- wrapper ---------------------------------------------
def conv_block(x, weight, bias=None, k=3, pad=1, *, mxu_dtype=jnp.bfloat16,
               out_dtype=jnp.float32, use_act=True, nchw_out=True,
               force_two_pass=False):
    """ConvBlock forward (down=True, kernel_size=3, stride=1, padding=1).

    x: (N, Cin, H, W) f32, weight: (Cout, Cin, k, k) f32, bias: (Cout,) (ignored:
    a per-channel constant before InstanceNorm(affine=False) cancels exactly).
    Returns (N, Cout, H, W) (or NHWC if nchw_out=False).
    """
    del bias  # mathematically a no-op through the InstanceNorm mean subtraction

    n, cin, h, w = x.shape
    cout = weight.shape[0]
    assert weight.shape == (cout, cin, k, k)
    assert k % 2 == 1 and pad == (k - 1) // 2, "only 'same' stride-1 convs supported"

    wpp = _round_up(w + 2 * pad, SUBLANE)     # sublane-aligned padded row width
    cout_p = _round_up(cout, LANE)            # lane-dense output channels
    tco = 256 if cout_p % 256 == 0 else LANE  # fill the 256-wide MXU on v6e/v7x
    n_co = cout_p // tco

    in_bytes = jnp.dtype(mxu_dtype).itemsize
    out_bytes = jnp.dtype(out_dtype).itemsize
    cap = _vmem_capacity_bytes()
    vmem_limit = int(cap * 0.7)
    budget = int(cap * 0.4)

    # ---- host prep: NHWC, cast early, reflect pad, zero-pad cols to wpp --------------
    xp = jnp.transpose(x, (0, 2, 3, 1)).astype(mxu_dtype)
    xp = jnp.pad(xp, ((0, 0), (pad, pad), (pad, pad), (0, 0)), mode="reflect")
    xp = jnp.pad(xp, ((0, 0), (0, 0), (0, wpp - (w + 2 * pad)), (0, 0)))

    w_mat = jnp.transpose(weight, (2, 3, 1, 0)).reshape(k * k, cin, cout)
    w_mat = jnp.pad(w_mat, ((0, 0), (0, 0), (0, cout_p - cout))).astype(mxu_dtype)

    col_valid = jnp.arange(wpp) < w

    use_fused = (not force_two_pass) and _fused_fits(
        h, wpp, cin, tco, k, in_bytes, out_bytes, budget)

    if use_fused:
        # ---------------- fused single pass: grid (N, Cout-tiles) ---------------------
        mxf = (h + k - 1) * wpp + (k - 1)
        m_full = h * wpp
        xt = jnp.pad(xp.reshape(n, (h + 2 * pad) * wpp, cin),
                     ((0, 0), (0, k - 1), (0, 0)))                  # no halo stacking
        mask = jnp.broadcast_to(col_valid, (h, wpp)).astype(jnp.float32).reshape(m_full, 1)

        out = pl.pallas_call(
            functools.partial(_fused_kernel, h=h, w_count=w, wpp=wpp, k=k,
                              use_act=use_act),
            out_shape=jax.ShapeDtypeStruct((n, m_full, cout_p), out_dtype),
            grid_spec=pltpu.PrefetchScalarGridSpec(
                num_scalar_prefetch=0, grid=(n, n_co),
                in_specs=[
                    pl.BlockSpec((None, mxf, cin), lambda b, c: (b, 0, 0)),
                    pl.BlockSpec((k * k, cin, tco), lambda b, c: (0, 0, c)),
                    pl.BlockSpec((m_full, 1), lambda b, c: (0, 0)),
                ],
                out_specs=pl.BlockSpec((None, m_full, tco), lambda b, c: (b, 0, c))),
            compiler_params=pltpu.CompilerParams(
                dimension_semantics=("parallel", "parallel"),
                vmem_limit_bytes=vmem_limit),
        )(xt, w_mat, mask)
        out = out.reshape(n, h, wpp, cout_p)[:, :, :w, :cout]
    else:
        # ---------------- 2-pass fallback: grid (N, Cout-tiles, H-tiles) --------------
        th = _pick_tile_h(h, wpp, cin, tco, k, in_bytes, out_bytes, budget)
        n_h = (h + th - 1) // th
        h_pad = n_h * th
        m2 = th * wpp
        mx = (th + k - 1) * wpp + (k - 1)

        xp2 = jnp.pad(xp, ((0, 0), (0, h_pad - h), (0, 0), (0, 0)))
        tiles = [xp2[:, i * th: i * th + th + (k - 1)] for i in range(n_h)]  # halo rows
        xt = jnp.stack(tiles, axis=1).reshape(n, n_h, (th + k - 1) * wpp, cin)
        xt = jnp.pad(xt, ((0, 0), (0, 0), (0, k - 1), (0, 0)))

        row_valid = jnp.arange(h_pad) < h
        mask = (row_valid[:, None] & col_valid[None, :]).astype(jnp.float32)
        mask = mask.reshape(n_h, m2, 1)

        grid = (n, n_co, n_h)
        x_spec = pl.BlockSpec((None, None, mx, cin), lambda b, c, i: (b, i, 0, 0))
        w_spec = pl.BlockSpec((k * k, cin, tco), lambda b, c, i: (0, 0, c))
        m_spec = pl.BlockSpec((None, m2, 1), lambda b, c, i: (i, 0, 0))
        s_spec = pl.BlockSpec((None, 2, tco), lambda b, c, i: (b, 0, c))
        o_spec = pl.BlockSpec((None, None, m2, tco), lambda b, c, i: (b, i, 0, c))

        stats = pl.pallas_call(
            functools.partial(_stats_kernel, th=th, wpp=wpp, k=k),
            out_shape=jax.ShapeDtypeStruct((n, 2, cout_p), jnp.float32),
            grid_spec=pltpu.PrefetchScalarGridSpec(
                num_scalar_prefetch=0, grid=grid,
                in_specs=[x_spec, w_spec, m_spec], out_specs=s_spec),
            compiler_params=pltpu.CompilerParams(
                dimension_semantics=("parallel", "parallel", "arbitrary"),
                vmem_limit_bytes=vmem_limit),
        )(xt, w_mat, mask)

        out = pl.pallas_call(
            functools.partial(_norm_kernel, th=th, wpp=wpp, k=k,
                              inv_count=1.0 / float(h * w), use_act=use_act),
            out_shape=jax.ShapeDtypeStruct((n, n_h, m2, cout_p), out_dtype),
            grid_spec=pltpu.PrefetchScalarGridSpec(
                num_scalar_prefetch=0, grid=grid,
                in_specs=[x_spec, w_spec, s_spec], out_specs=o_spec),
            compiler_params=pltpu.CompilerParams(
                dimension_semantics=("parallel", "parallel", "parallel"),
                vmem_limit_bytes=vmem_limit),
        )(xt, w_mat, stats)
        out = out.reshape(n, h_pad, wpp, cout_p)[:, :h, :w, :cout]

    if not nchw_out:
        return out                                    # NHWC channels-last
    # TODO(synk): this transpose exists only to match the NCHW module interface; a
    # channels-last consumer should take the NHWC result (nchw_out=False) directly.
    return jnp.transpose(out, (0, 3, 1, 2))


def conv_block_ref(x, weight, bias, k=3, pad=1):
    """Plain-JAX reference (includes the bias; it cancels through InstanceNorm)."""
    xp = jnp.pad(x, ((0, 0), (0, 0), (pad, pad), (pad, pad)), mode="reflect")
    y = jax.lax.conv_general_dilated(
        xp, weight, window_strides=(1, 1), padding="VALID",
        dimension_numbers=("NCHW", "OIHW", "NCHW"),
        precision=jax.lax.Precision.HIGHEST)
    y = y + bias.reshape(1, -1, 1, 1)
    mean = jnp.mean(y, axis=(2, 3), keepdims=True)
    var = jnp.mean((y - mean) ** 2, axis=(2, 3), keepdims=True)
    return jnp.maximum((y - mean) * jax.lax.rsqrt(var + EPS), 0.0)


if __name__ == "__main__":
    key = jax.random.PRNGKey(0)
    N, Cin, Cout, H, W, K = 2, 4, 8, 16, 16, 3

    kx, kw, kb = jax.random.split(key, 3)
    x = jax.random.normal(kx, (N, Cin, H, W), dtype=jnp.float32)
    fan_in = Cin * K * K
    bound = 1.0 / (fan_in ** 0.5)
    weight = jax.random.uniform(kw, (Cout, Cin, K, K), jnp.float32, -bound, bound)
    bias = jax.random.uniform(kb, (Cout,), jnp.float32, -bound, bound)

    ref = jax.block_until_ready(conv_block_ref(x, weight, bias, k=K, pad=1))

    # Fused single-pass, f32 MXU operands (exact-parity path).
    out_f32 = jax.block_until_ready(
        conv_block(x, weight, bias, k=K, pad=1, mxu_dtype=jnp.float32))
    assert out_f32.shape == (N, Cout, H, W)
    assert jnp.allclose(out_f32, ref, atol=2e-3, rtol=2e-3)

    # Fused single-pass, default bf16 MXU operands (f32 accumulation + f32 epilogue).
    out_bf16 = jax.block_until_ready(conv_block(x, weight, bias, k=K, pad=1))
    assert out_bf16.shape == (N, Cout, H, W)
    assert jnp.allclose(out_bf16, ref, atol=3e-2, rtol=3e-2)

    # Forced 2-pass fallback (large-feature-map path), f32 parity.
    out_2p = jax.block_until_ready(
        conv_block(x, weight, bias, k=K, pad=1, mxu_dtype=jnp.float32,
                   force_two_pass=True))
    assert jnp.allclose(out_2p, ref, atol=2e-3, rtol=2e-3)

    # tco=256 path (Cout padded dim a multiple of 256).
    Cout2 = 256
    kw2, kb2 = jax.random.split(kw)
    w2 = jax.random.uniform(kw2, (Cout2, Cin, K, K), jnp.float32, -bound, bound)
    b2 = jax.random.uniform(kb2, (Cout2,), jnp.float32, -bound, bound)
    ref2 = jax.block_until_ready(conv_block_ref(x, w2, b2, k=K, pad=1))
    out2 = jax.block_until_ready(
        conv_block(x, w2, b2, k=K, pad=1, mxu_dtype=jnp.float32))
    assert out2.shape == (N, Cout2, H, W)
    assert jnp.allclose(out2, ref2, atol=2e-3, rtol=2e-3)

    print("KERNEL_OK")
</pallas_src>

<mosaic_0001>
module attributes {stable_mosaic.version = 11 : i64} {
  func.func @_fused_kernel(%arg0: i32, %arg1: i32, %arg2: memref<1x434x4xf32, #tpu.memory_space<vmem>>, %arg3: memref<9x4x128xf32, #tpu.memory_space<vmem>>, %arg4: memref<384x1xf32, #tpu.memory_space<vmem>>, %arg5: memref<1x384x128xf32, #tpu.memory_space<vmem>>) attributes {dimension_semantics = [#tpu.dimension_semantics<parallel>, #tpu.dimension_semantics<parallel>], iteration_bounds = array<i64: 2, 1>, scalar_prefetch = 0 : i64, scratch_operands = 0 : i64, tpu.core_type = #tpu.core_type<tc>, window_params = [{transform_indices = @transform_0, window_bounds = array<i64: 1, 434, 4>}, {transform_indices = @transform_1, window_bounds = array<i64: 9, 4, 128>}, {pipeline_mode = #tpu.pipeline_mode<synchronous>, transform_indices = @transform_2, window_bounds = array<i64: 384, 1>}, {transform_indices = @transform_3, window_bounds = array<i64: 1, 384, 128>}]} {
    %cst = arith.constant 0.000000e+00 : f32
    %0 = vector.broadcast %cst : f32 to vector<384x128xf32>
    %c0 = arith.constant 0 : index
    %c0_0 = arith.constant 0 : index
    %c0_1 = arith.constant 0 : index
    %1 = vector.load %arg2[%c0, %c0_0, %c0_1] : memref<1x434x4xf32, #tpu.memory_space<vmem>>, vector<1x384x4xf32>
    %2 = vector.shape_cast %1 : vector<1x384x4xf32> to vector<384x4xf32>
    %c0_2 = arith.constant 0 : index
    %c0_3 = arith.constant 0 : index
    %c0_4 = arith.constant 0 : index
    %3 = vector.load %arg3[%c0_2, %c0_3, %c0_4] : memref<9x4x128xf32, #tpu.memory_space<vmem>>, vector<1x4x128xf32>
    %4 = vector.shape_cast %3 : vector<1x4x128xf32> to vector<4x128xf32>
    %cst_5 = arith.constant dense<0.000000e+00> : vector<384x128xf32>
    %5 = tpu.matmul %2, %4, %cst_5 {dimension_numbers = #tpu.dot_dimension_numbers<[1], [0], [0], [1], [0, 0, 1, 1], [], []>} : vector<384x4xf32>, vector<4x128xf32>, vector<384x128xf32> -> vector<384x128xf32>
    %6 = arith.addf %0, %5 : vector<384x128xf32>
    %c0_6 = arith.constant 0 : index
    %c1 = arith.constant 1 : index
    %c0_7 = arith.constant 0 : index
    %7 = vector.load %arg2[%c0_6, %c1, %c0_7] : memref<1x434x4xf32, #tpu.memory_space<vmem>>, vector<1x384x4xf32>
    %8 = vector.shape_cast %7 : vector<1x384x4xf32> to vector<384x4xf32>
    %c1_8 = arith.constant 1 : index
    %c0_9 = arith.constant 0 : index
    %c0_10 = arith.constant 0 : index
    %9 = vector.load %arg3[%c1_8, %c0_9, %c0_10] : memref<9x4x128xf32, #tpu.memory_space<vmem>>, vector<1x4x128xf32>
    %10 = vector.shape_cast %9 : vector<1x4x128xf32> to vector<4x128xf32>
    %cst_11 = arith.constant dense<0.000000e+00> : vector<384x128xf32>
    %11 = tpu.matmul %8, %10, %cst_11 {dimension_numbers = #tpu.dot_dimension_numbers<[1], [0], [0], [1], [0, 0, 1, 1], [], []>} : vector<384x4xf32>, vector<4x128xf32>, vector<384x128xf32> -> vector<384x128xf32>
    %12 = arith.addf %6, %11 : vector<384x128xf32>
    %c0_12 = arith.constant 0 : index
    %c2 = arith.constant 2 : index
    %c0_13 = arith.constant 0 : index
    %13 = vector.load %arg2[%c0_12, %c2, %c0_13] : memref<1x434x4xf32, #tpu.memory_space<vmem>>, vector<1x384x4xf32>
    %14 = vector.shape_cast %13 : vector<1x384x4xf32> to vector<384x4xf32>
    %c2_14 = arith.constant 2 : index
    %c0_15 = arith.constant 0 : index
    %c0_16 = arith.constant 0 : index
    %15 = vector.load %arg3[%c2_14, %c0_15, %c0_16] : memref<9x4x128xf32, #tpu.memory_space<vmem>>, vector<1x4x128xf32>
    %16 = vector.shape_cast %15 : vector<1x4x128xf32> to vector<4x128xf32>
    %cst_17 = arith.constant dense<0.000000e+00> : vector<384x128xf32>
    %17 = tpu.matmul %14, %16, %cst_17 {dimension_numbers = #tpu.dot_dimension_numbers<[1], [0], [0], [1], [0, 0, 1, 1], [], []>} : vector<384x4xf32>, vector<4x128xf32>, vector<384x128xf32> -> vector<384x128xf32>
    %18 = arith.addf %12, %17 : vector<384x128xf32>
    %c0_18 = arith.constant 0 : index
    %c24 = arith.constant 24 : index
    %c0_19 = arith.constant 0 : index
    %19 = vector.load %arg2[%c0_18, %c24, %c0_19] : memref<1x434x4xf32, #tpu.memory_space<vmem>>, vector<1x384x4xf32>
    %20 = vector.shape_cast %19 : vector<1x384x4xf32> to vector<384x4xf32>
    %c3 = arith.constant 3 : index
    %c0_20 = arith.constant 0 : index
    %c0_21 = arith.constant 0 : index
    %21 = vector.load %arg3[%c3, %c0_20, %c0_21] : memref<9x4x128xf32, #tpu.memory_space<vmem>>, vector<1x4x128xf32>
    %22 = vector.shape_cast %21 : vector<1x4x128xf32> to vector<4x128xf32>
    %cst_22 = arith.constant dense<0.000000e+00> : vector<384x128xf32>
    %23 = tpu.matmul %20, %22, %cst_22 {dimension_numbers = #tpu.dot_dimension_numbers<[1], [0], [0], [1], [0, 0, 1, 1], [], []>} : vector<384x4xf32>, vector<4x128xf32>, vector<384x128xf32> -> vector<384x128xf32>
    %24 = arith.addf %18, %23 : vector<384x128xf32>
    %c0_23 = arith.constant 0 : index
    %c25 = arith.constant 25 : index
    %c0_24 = arith.constant 0 : index
    %25 = vector.load %arg2[%c0_23, %c25, %c0_24] : memref<1x434x4xf32, #tpu.memory_space<vmem>>, vector<1x384x4xf32>
    %26 = vector.shape_cast %25 : vector<1x384x4xf32> to vector<384x4xf32>
    %c4 = arith.constant 4 : index
    %c0_25 = arith.constant 0 : index
    %c0_26 = arith.constant 0 : index
    %27 = vector.load %arg3[%c4, %c0_25, %c0_26] : memref<9x4x128xf32, #tpu.memory_space<vmem>>, vector<1x4x128xf32>
    %28 = vector.shape_cast %27 : vector<1x4x128xf32> to vector<4x128xf32>
    %cst_27 = arith.constant dense<0.000000e+00> : vector<384x128xf32>
    %29 = tpu.matmul %26, %28, %cst_27 {dimension_numbers = #tpu.dot_dimension_numbers<[1], [0], [0], [1], [0, 0, 1, 1], [], []>} : vector<384x4xf32>, vector<4x128xf32>, vector<384x128xf32> -> vector<384x128xf32>
    %30 = arith.addf %24, %29 : vector<384x128xf32>
    %c0_28 = arith.constant 0 : index
    %c26 = arith.constant 26 : index
    %c0_29 = arith.constant 0 : index
    %31 = vector.load %arg2[%c0_28, %c26, %c0_29] : memref<1x434x4xf32, #tpu.memory_space<vmem>>, vector<1x384x4xf32>
    %32 = vector.shape_cast %31 : vector<1x384x4xf32> to vector<384x4xf32>
    %c5 = arith.constant 5 : index
    %c0_30 = arith.constant 0 : index
    %c0_31 = arith.constant 0 : index
    %33 = vector.load %arg3[%c5, %c0_30, %c0_31] : memref<9x4x128xf32, #tpu.memory_space<vmem>>, vector<1x4x128xf32>
    %34 = vector.shape_cast %33 : vector<1x4x128xf32> to vector<4x128xf32>
    %cst_32 = arith.constant dense<0.000000e+00> : vector<384x128xf32>
    %35 = tpu.matmul %32, %34, %cst_32 {dimension_numbers = #tpu.dot_dimension_numbers<[1], [0], [0], [1], [0, 0, 1, 1], [], []>} : vector<384x4xf32>, vector<4x128xf32>, vector<384x128xf32> -> vector<384x128xf32>
    %36 = arith.addf %30, %35 : vector<384x128xf32>
    %c0_33 = arith.constant 0 : index
    %c48 = arith.constant 48 : index
    %c0_34 = arith.constant 0 : index
    %37 = vector.load %arg2[%c0_33, %c48, %c0_34] : memref<1x434x4xf32, #tpu.memory_space<vmem>>, vector<1x384x4xf32>
    %38 = vector.shape_cast %37 : vector<1x384x4xf32> to vector<384x4xf32>
    %c6 = arith.constant 6 : index
    %c0_35 = arith.constant 0 : index
    %c0_36 = arith.constant 0 : index
    %39 = vector.load %arg3[%c6, %c0_35, %c0_36] : memref<9x4x128xf32, #tpu.memory_space<vmem>>, vector<1x4x128xf32>
    %40 = vector.shape_cast %39 : vector<1x4x128xf32> to vector<4x128xf32>
    %cst_37 = arith.constant dense<0.000000e+00> : vector<384x128xf32>
    %41 = tpu.matmul %38, %40, %cst_37 {dimension_numbers = #tpu.dot_dimension_numbers<[1], [0], [0], [1], [0, 0, 1, 1], [], []>} : vector<384x4xf32>, vector<4x128xf32>, vector<384x128xf32> -> vector<384x128xf32>
    %42 = arith.addf %36, %41 : vector<384x128xf32>
    %c0_38 = arith.constant 0 : index
    %c49 = arith.constant 49 : index
    %c0_39 = arith.constant 0 : index
    %43 = vector.load %arg2[%c0_38, %c49, %c0_39] : memref<1x434x4xf32, #tpu.memory_space<vmem>>, vector<1x384x4xf32>
    %44 = vector.shape_cast %43 : vector<1x384x4xf32> to vector<384x4xf32>
    %c7 = arith.constant 7 : index
    %c0_40 = arith.constant 0 : index
    %c0_41 = arith.constant 0 : index
    %45 = vector.load %arg3[%c7, %c0_40, %c0_41] : memref<9x4x128xf32, #tpu.memory_space<vmem>>, vector<1x4x128xf32>
    %46 = vector.shape_cast %45 : vector<1x4x128xf32> to vector<4x128xf32>
    %cst_42 = arith.constant dense<0.000000e+00> : vector<384x128xf32>
    %47 = tpu.matmul %44, %46, %cst_42 {dimension_numbers = #tpu.dot_dimension_numbers<[1], [0], [0], [1], [0, 0, 1, 1], [], []>} : vector<384x4xf32>, vector<4x128xf32>, vector<384x128xf32> -> vector<384x128xf32>
    %48 = arith.addf %42, %47 : vector<384x128xf32>
    %c0_43 = arith.constant 0 : index
    %c50 = arith.constant 50 : index
    %c0_44 = arith.constant 0 : index
    %49 = vector.load %arg2[%c0_43, %c50, %c0_44] : memref<1x434x4xf32, #tpu.memory_space<vmem>>, vector<1x384x4xf32>
    %50 = vector.shape_cast %49 : vector<1x384x4xf32> to vector<384x4xf32>
    %c8 = arith.constant 8 : index
    %c0_45 = arith.constant 0 : index
    %c0_46 = arith.constant 0 : index
    %51 = vector.load %arg3[%c8, %c0_45, %c0_46] : memref<9x4x128xf32, #tpu.memory_space<vmem>>, vector<1x4x128xf32>
    %52 = vector.shape_cast %51 : vector<1x4x128xf32> to vector<4x128xf32>
    %cst_47 = arith.constant dense<0.000000e+00> : vector<384x128xf32>
    %53 = tpu.matmul %50, %52, %cst_47 {dimension_numbers = #tpu.dot_dimension_numbers<[1], [0], [0], [1], [0, 0, 1, 1], [], []>} : vector<384x4xf32>, vector<4x128xf32>, vector<384x128xf32> -> vector<384x128xf32>
    %54 = arith.addf %48, %53 : vector<384x128xf32>
    %c0_48 = arith.constant 0 : index
    %c0_49 = arith.constant 0 : index
    %55 = vector.load %arg4[%c0_48, %c0_49] : memref<384x1xf32, #tpu.memory_space<vmem>>, vector<384x1xf32>
    %56 = vector.broadcast %55 : vector<384x1xf32> to vector<384x128xf32>
    %57 = arith.mulf %54, %56 : vector<384x128xf32>
    %cst_50 = arith.constant dense<0.000000e+00> : vector<128xf32>
    %58 = vector.multi_reduction <add>, %57, %cst_50 [0] : vector<384x128xf32> to vector<128xf32>
    %59 = vector.shape_cast %58 : vector<128xf32> to vector<1x128xf32>
    %cst_51 = arith.constant 3.906250e-03 : f32
    %60 = vector.broadcast %cst_51 : f32 to vector<1x128xf32>
    %61 = arith.mulf %59, %60 : vector<1x128xf32>
    %62 = arith.mulf %57, %57 : vector<384x128xf32>
    %cst_52 = arith.constant dense<0.000000e+00> : vector<128xf32>
    %63 = vector.multi_reduction <add>, %62, %cst_52 [0] : vector<384x128xf32> to vector<128xf32>
    %64 = vector.shape_cast %63 : vector<128xf32> to vector<1x128xf32>
    %cst_53 = arith.constant 3.906250e-03 : f32
    %65 = vector.broadcast %cst_53 : f32 to vector<1x128xf32>
    %66 = arith.mulf %64, %65 : vector<1x128xf32>
    %67 = arith.mulf %61, %61 : vector<1x128xf32>
    %68 = arith.subf %66, %67 : vector<1x128xf32>
    %cst_54 = arith.constant 0.000000e+00 : f32
    %69 = vector.broadcast %cst_54 : f32 to vector<1x128xf32>
    %70 = arith.maximumf %68, %69 : vector<1x128xf32>
    %71 = vector.broadcast %61 : vector<1x128xf32> to vector<384x128xf32>
    %72 = arith.subf %54, %71 : vector<384x128xf32>
    %cst_55 = arith.constant 9.99999974E-6 : f32
    %73 = vector.broadcast %cst_55 : f32 to vector<1x128xf32>
    %74 = arith.addf %70, %73 : vector<1x128xf32>
    %75 = math.rsqrt %74 : vector<1x128xf32>
    %76 = vector.broadcast %75 : vector<1x128xf32> to vector<384x128xf32>
    %77 = arith.mulf %72, %76 : vector<384x128xf32>
    %cst_56 = arith.constant 0.000000e+00 : f32
    %78 = vector.broadcast %cst_56 : f32 to vector<384x128xf32>
    %79 = arith.maximumf %77, %78 : vector<384x128xf32>
    %c0_57 = arith.constant 0 : index
    %c0_58 = arith.constant 0 : index
    %c0_59 = arith.constant 0 : index
    %80 = vector.load %arg5[%c0_57, %c0_58, %c0_59] : memref<1x384x128xf32, #tpu.memory_space<vmem>>, vector<1x384x128xf32>
    %81 = vector.shape_cast %80 : vector<1x384x128xf32> to vector<384x128xf32>
    %82 = vector.shape_cast %79 : vector<384x128xf32> to vector<1x384x128xf32>
    tpu.vector_store %arg5[%c0_57, %c0_58, %c0_59], %82 {strides = array<i32>} : memref<1x384x128xf32, #tpu.memory_space<vmem>>, vector<1x384x128xf32>,
    return
  }
  func.func @transform_0(%arg0: i32, %arg1: i32) -> (i32, i32, i32) {
    %c0_i32 = arith.constant 0 : i32
    %c0_i32_0 = arith.constant 0 : i32
    %c0_i32_1 = arith.constant 0 : i32
    return %arg0, %c0_i32, %c0_i32_0 : i32, i32, i32
  }
  func.func @transform_1(%arg0: i32, %arg1: i32) -> (i32, i32, i32) {
    %c0_i32 = arith.constant 0 : i32
    %c0_i32_0 = arith.constant 0 : i32
    %c0_i32_1 = arith.constant 0 : i32
    return %c0_i32, %c0_i32_0, %arg1 : i32, i32, i32
  }
  func.func @transform_2(%arg0: i32, %arg1: i32) -> (i32, i32) {
    %c0_i32 = arith.constant 0 : i32
    %c0_i32_0 = arith.constant 0 : i32
    %c0_i32_1 = arith.constant 0 : i32
    return %c0_i32, %c0_i32_0 : i32, i32
  }
  func.func @transform_3(%arg0: i32, %arg1: i32) -> (i32, i32, i32) {
    %c0_i32 = arith.constant 0 : i32
    %c0_i32_0 = arith.constant 0 : i32
    return %arg0, %c0_i32, %arg1 : i32, i32, i32
  }
}

</mosaic_0001>

<llo_original>
// kernel: tpu_custom_call.1
$region0: #{tpu_custom_call.1}
  #allocation0 [shape = 'u32[]', space=smem, size = 0x4, offset = 0x4, fixed_abs, tag = 'smem constant byte address 0x4 - core index']
  #allocation1 [shape = 'u32[144,128]{1,0:T(1,128)}', space=vmem, size = 0x12000, scoped, tag = 'internal scratch']
  %s0 = inlined_call_operand.vmem [shape: f32[2,434,4], index: 0, kind: input, shape index: {}]
  %s1 = inlined_call_operand.vmem [shape: f32[9,4,128], index: 1, kind: input, shape index: {}]
  %s2 = inlined_call_operand.vmem [shape: f32[384,1], index: 2, kind: input, shape index: {}]
  %s3 = inlined_call_operand.hbm [shape: f32[2,384,128], index: 3, kind: output, shape index: {}]
  %s4 = sld [smem:[#allocation0]]
  $region45: #{tpu_custom_call.1} parent=0
    _
  %s6 = ssub.s32 1, %s4
  %s7 = scalar_select 0, %s6, %s4
  $region1: #{tpu_custom_call.1} parent=0
    #allocation2 [shape = 'u8[393216]{0}', space=vmem, size = 0x60000, scoped, tag = 'output window, operand 0']
    #allocation3 [shape = 's32[2]{0}', space=sflag, size = 0x8, scoped, tag = 'scoped memory for tpu_custom_call.1']
    %8 = vsyncpa [#allocation3], 0
    %s9 = scalar_lea.sflag [#allocation3], 1
    %10 = vsyncpa %s9, 0
    loop: start=0, step=1, limit=4
    $region2: #{tpu_custom_call.1} parent=1 // loop_pre_header
      _
    $region3: #{tpu_custom_call.1} parent=1 // loop_header
      %s12 = sphi 0, %s16
      %p13 = scmp.ge.s32.totalorder %s12, 4
      %s19 = sphi 0, %s31
      %s20 = sphi 0, %s27
      %s21 = sphi 0, %s19
      %s22 = sphi 0, %s20
      %s23 = sphi 0, %s21
      %s24 = sphi 0, %s22
      %s34 = sphi 0, %s36
      %s37 = sphi 0, %s34
      %s38 = sphi 0, %s37
      %s54 = sphi 0, %s38
      %s60 = sphi 0, %s62
      %s63 = sphi 0, %s60
      %s64 = sphi 0, %s63
      %s80 = sphi 0, %s64
      %s84 = sphi 0, %s84
      %s86 = sphi 0, %s84
      %s87 = sphi 0, %s86
      %s101 = sphi 0, %s87
      %s109 = sphi 0, %s111
      %s112 = sphi 0, %s109
      %s113 = sphi 0, %s112
      %s129 = sphi 0, %s113
    $region4: #{tpu_custom_call.1} parent=1 // loop_header_branch
      %15 = sbr.rel (%p13) target = $region8
    $region5: #{tpu_custom_call.1} parent=1 // loop_body
      %s17 = ssub.s32 %s12, 1
      %s18 = ssub.s32 %s12, 2
      %s25 = sadd.s32 1, %s20
      %p26 = scmp.ge.s32.totalorder %s25, 1
      %s27 = scalar_select %p26, 0, %s25
      %s28 = sadd.s32 1, %s19
      %s29 = scalar_select %p26, %s28, %s19
      %p30 = scmp.ge.s32.totalorder %s29, 2
      %s31 = scalar_select %p30, 0, %s29
      %s32 = ssub.s32 %s19, %s31
      %p33 = scmp.eq.s32.totalorder %s32, 0
      %s35 = sadd.s32 %s34, 1
      %s36 = scalar_select %p33, %s34, %s35
      %p39 = pneg %p33
      %p40 = scmp.eq.s32.totalorder %s12, 1
      %p41 = por %p39, %p40
      %p42 = scmp.ne.s32.totalorder %s34, %s37
      %p43 = scmp.eq.s32.totalorder %s12, 0
      %p44 = por %p42, %p43
      %p45 = scmp.ne.s32.totalorder %s34, %s37
      %p46 = scmp.eq.s32.totalorder %s17, 1
      %p47 = por %p45, %p46
      %p48 = scmp.ne.s32.totalorder %s37, %s38
      %p49 = scmp.eq.s32.totalorder %s17, 0
      %p50 = por %p48, %p49
      %p51 = scmp.ne.s32.totalorder %s37, %s38
      %p52 = scmp.eq.s32.totalorder %s18, 1
      %p53 = por %p51, %p52
      %p55 = scmp.ne.s32.totalorder %s38, %s54
      %p56 = scmp.eq.s32.totalorder %s18, 0
      %p57 = por %p55, %p56
      %s58 = ssub.s32 %s20, %s27
      %p59 = scmp.eq.s32.totalorder %s58, 0
      %s61 = sadd.s32 %s60, 1
      %s62 = scalar_select %p59, %s60, %s61
      %p65 = pneg %p59
      %p66 = scmp.eq.s32.totalorder %s12, 1
      %p67 = por %p65, %p66
      %p68 = scmp.ne.s32.totalorder %s60, %s63
      %p69 = scmp.eq.s32.totalorder %s12, 0
      %p70 = por %p68, %p69
      %p71 = scmp.ne.s32.totalorder %s60, %s63
      %p72 = scmp.eq.s32.totalorder %s17, 1
      %p73 = por %p71, %p72
      %p74 = scmp.ne.s32.totalorder %s63, %s64
      %p75 = scmp.eq.s32.totalorder %s17, 0
      %p76 = por %p74, %p75
      %p77 = scmp.ne.s32.totalorder %s63, %s64
      %p78 = scmp.eq.s32.totalorder %s18, 1
      %p79 = por %p77, %p78
      %p81 = scmp.ne.s32.totalorder %s64, %s80
      %p82 = scmp.eq.s32.totalorder %s18, 0
      %p83 = por %p81, %p82
      %s85 = sadd.s32 %s84, 1
      %p88 = scmp.eq.s32.totalorder %s12, 1
      %p89 = scmp.ne.s32.totalorder %s84, %s86
      %p90 = scmp.eq.s32.totalorder %s12, 0
      %p91 = por %p89, %p90
      %p92 = scmp.ne.s32.totalorder %s84, %s86
      %p93 = scmp.eq.s32.totalorder %s17, 1
      %p94 = por %p92, %p93
      %p95 = scmp.ne.s32.totalorder %s86, %s87
      %p96 = scmp.eq.s32.totalorder %s17, 0
      %p97 = por %p95, %p96
      %p98 = scmp.ne.s32.totalorder %s86, %s87
      %p99 = scmp.eq.s32.totalorder %s18, 1
      %p100 = por %p98, %p99
      %p102 = scmp.ne.s32.totalorder %s87, %s101
      %p103 = scmp.eq.s32.totalorder %s18, 0
      %p104 = por %p102, %p103
      %s105 = ssub.s32 %s19, %s31
      %s106 = ssub.s32 %s20, %s27
      %s107 = sor.u32 %s105, %s106
      %p108 = scmp.eq.s32.totalorder %s107, 0
      %s110 = sadd.s32 %s109, 1
      %s111 = scalar_select %p108, %s109, %s110
      %p114 = pneg %p108
      %p115 = scmp.eq.s32.totalorder %s12, 1
      %p116 = por %p114, %p115
      %p117 = scmp.ne.s32.totalorder %s109, %s112
      %p118 = scmp.eq.s32.totalorder %s12, 0
      %p119 = por %p117, %p118
      %p120 = scmp.ne.s32.totalorder %s109, %s112
      %p121 = scmp.eq.s32.totalorder %s17, 1
      %p122 = por %p120, %p121
      %p123 = scmp.ne.s32.totalorder %s112, %s113
      %p124 = scmp.eq.s32.totalorder %s17, 0
      %p125 = por %p123, %p124
      %p126 = scmp.ne.s32.totalorder %s112, %s113
      %p127 = scmp.eq.s32.totalorder %s18, 1
      %p128 = por %p126, %p127
      %p130 = scmp.ne.s32.totalorder %s113, %s129
      %p131 = scmp.eq.s32.totalorder %s18, 0
      %p132 = por %p130, %p131
      %p133 = scmp.le.s32.totalorder 1, %s12
      %p134 = scmp.lt.s32.totalorder %s12, 3
      %p135 = pnand %p133, %p134
      %p136 = pneg %p135
      // Predicated region
      $region9: #{tpu_custom_call.1} parent=5 // pred_check
        _
      $region10: #{tpu_custom_call.1} parent=5 // pred_check_branch
        %138 = sbr.rel (%p135) target = $region12
      $region11: #{tpu_custom_call.1} parent=5 // pred_region
        %s139 = ssub.s32 %s12, 1
        // Predicated region
        $region13: #{tpu_custom_call.1} parent=11 // pred_check
          %p140 = pneg %p76
        $region14: #{tpu_custom_call.1} parent=11 // pred_check_branch
          %142 = sbr.rel (%p140) target = $region16
        $region15: #{tpu_custom_call.1} parent=11 // pred_region
          %p143 = scmp.lt.s32.totalorder %s22, 0
          %s144 = scalar_select %p143, %s22, 0
          %s145 = smul.addr %s144, 4
          %s146 = scalar_lea.vmem %s1, %s145
        $region16: #{tpu_custom_call.1} parent=11 // pred_fallthru
          _
        // Predicated region
        $region17: #{tpu_custom_call.1} parent=11 // pred_check
          %p147 = pneg %p97
        $region18: #{tpu_custom_call.1} parent=11 // pred_check_branch
          %149 = sbr.rel (%p147) target = $region20
        $region19: #{tpu_custom_call.1} parent=11 // pred_region
          _
        $region20: #{tpu_custom_call.1} parent=11 // pred_fallthru
          _
      $region12: #{tpu_custom_call.1} parent=5 // pred_fallthru
        _
      %p150 = scmp.lt.s32.totalorder %s12, 2
      // Predicated region
      $region21: #{tpu_custom_call.1} parent=5 // pred_check
        %p151 = pneg %p150
      $region22: #{tpu_custom_call.1} parent=5 // pred_check_branch
        %153 = sbr.rel (%p151) target = $region24
      $region23: #{tpu_custom_call.1} parent=5 // pred_region
        // Predicated region
        $region25: #{tpu_custom_call.1} parent=23 // pred_check
          %p154 = pneg %p44
        $region26: #{tpu_custom_call.1} parent=23 // pred_check_branch
          %156 = sbr.rel (%p154) target = $region28
        $region27: #{tpu_custom_call.1} parent=23 // pred_region
          %p157 = scmp.lt.s32.totalorder %s19, 1
          %s158 = scalar_select %p157, %s19, 1
          %s159 = smul.addr %s158, 55
          %s160 = smul.addr %s159, 8
          %s161 = scalar_lea.vmem %s0, %s160
        $region28: #{tpu_custom_call.1} parent=23 // pred_fallthru
          _
      $region24: #{tpu_custom_call.1} parent=5 // pred_fallthru
        _
      %p162 = scmp.le.s32.totalorder 1, %s12
      %p163 = scmp.lt.s32.totalorder %s12, 3
      %p164 = pnand %p162, %p163
      %p165 = pneg %p164
      // Predicated region
      $region29: #{tpu_custom_call.1} parent=5 // pred_check
        _
      $region30: #{tpu_custom_call.1} parent=5 // pred_check_branch
        %167 = sbr.rel (%p164) target = $region32
      $region31: #{tpu_custom_call.1} parent=5 // pred_region
        %s168 = ssub.s32 %s12, 1
        %p169 = scmp.lt.s32.totalorder %s21, 1
        %s170 = scalar_select %p169, %s21, 1
        %s171 = smul.addr %s170, 55
        %s172 = smul.addr %s171, 8
        %s173 = scalar_lea.vmem %s0, %s172
        %p174 = pneg %p50
        %p175 = pneg %p47
        %p176 = scmp.lt.s32.totalorder %s22, 0
        %s177 = scalar_select %p176, %s22, 0
        %s178 = smul.addr %s177, 4
        %s179 = scalar_lea.vmem %s1, %s178
        %p180 = pneg %p76
        %p181 = pneg %p73
        %p182 = pneg %p97
        %p183 = pneg %p94
        %p184 = pneg %p125
        %p185 = pneg %p122
        %s186 = sand.u32 %s112, 1
        %s187 = scalar_lea.sflag [#allocation3], %s186
        %s188 = sand.u32 %s112, 1
        %s189 = smul.addr %s188, 384
        %s190 = scalar_lea.vmem [#allocation2], %s189
        %p191 = scmp.lt.s32.totalorder %s21, 1
        %s192 = scalar_select %p191, %s21, 1
        %s193 = smul.addr %s192, 55
        %s194 = smul.addr %s193, 8
        %s195 = scalar_lea.vmem %s0, %s194
        %p196 = scmp.lt.s32.totalorder %s22, 0
        %s197 = scalar_select %p196, %s22, 0
        %s198 = smul.addr %s197, 4
        %s199 = scalar_lea.vmem %s1, %s198
        %v200 = vld [vmem:[%s195] sm:$0xff]
        %v201 = vld [vmem:[%s195 + $0x8] sm:$0xff]
        %v202 = vld [vmem:[%s195 + $0x10] sm:$0xff]
        %v203 = vld [vmem:[%s195 + $0x18] sm:$0xff]
        %v204 = vld [vmem:[%s195 + $0x20] sm:$0xff]
        %v205 = vld [vmem:[%s195 + $0x28] sm:$0xff]
        %v206 = vld [vmem:[%s195 + $0x30] sm:$0xff]
        %v207 = vld [vmem:[%s195 + $0x38] sm:$0xff]
        %v208 = vld [vmem:[%s195 + $0x40] sm:$0xff]
        %v209 = vld [vmem:[%s195 + $0x48] sm:$0xff]
        %v210 = vld [vmem:[%s195 + $0x50] sm:$0xff]
        %v211 = vld [vmem:[%s195 + $0x58] sm:$0xff]
        %v212 = vld [vmem:[%s195 + $0x60] sm:$0xff]
        %v213 = vld [vmem:[%s195 + $0x68] sm:$0xff]
        %v214 = vld [vmem:[%s195 + $0x70] sm:$0xff]
        %v215 = vld [vmem:[%s195 + $0x78] sm:$0xff]
        %v216 = vld [vmem:[%s195 + $0x80] sm:$0xff]
        %v217 = vld [vmem:[%s195 + $0x88] sm:$0xff]
        %v218 = vld [vmem:[%s195 + $0x90] sm:$0xff]
        %v219 = vld [vmem:[%s195 + $0x98] sm:$0xff]
        %v220 = vld [vmem:[%s195 + $0xa0] sm:$0xff]
        %v221 = vld [vmem:[%s195 + $0xa8] sm:$0xff]
        %v222 = vld [vmem:[%s195 + $0xb0] sm:$0xff]
        %v223 = vld [vmem:[%s195 + $0xb8] sm:$0xff]
        %v224 = vld [vmem:[%s195 + $0xc0] sm:$0xff]
        %v225 = vld [vmem:[%s195 + $0xc8] sm:$0xff]
        %v226 = vld [vmem:[%s195 + $0xd0] sm:$0xff]
        %v227 = vld [vmem:[%s195 + $0xd8] sm:$0xff]
        %v228 = vld [vmem:[%s195 + $0xe0] sm:$0xff]
        %v229 = vld [vmem:[%s195 + $0xe8] sm:$0xff]
        %v230 = vld [vmem:[%s195 + $0xf0] sm:$0xff]
        %v231 = vld [vmem:[%s195 + $0xf8] sm:$0xff]
        %v232 = vld [vmem:[%s195 + $0x100] sm:$0xff]
        %v233 = vld [vmem:[%s195 + $0x108] sm:$0xff]
        %v234 = vld [vmem:[%s195 + $0x110] sm:$0xff]
        %v235 = vld [vmem:[%s195 + $0x118] sm:$0xff]
        %v236 = vld [vmem:[%s195 + $0x120] sm:$0xff]
        %v237 = vld [vmem:[%s195 + $0x128] sm:$0xff]
        %v238 = vld [vmem:[%s195 + $0x130] sm:$0xff]
        %v239 = vld [vmem:[%s195 + $0x138] sm:$0xff]
        %v240 = vld [vmem:[%s195 + $0x140] sm:$0xff]
        %v241 = vld [vmem:[%s195 + $0x148] sm:$0xff]
        %v242 = vld [vmem:[%s195 + $0x150] sm:$0xff]
        %v243 = vld [vmem:[%s195 + $0x158] sm:$0xff]
        %v244 = vld [vmem:[%s195 + $0x160] sm:$0xff]
        %v245 = vld [vmem:[%s195 + $0x168] sm:$0xff]
        %v246 = vld [vmem:[%s195 + $0x170] sm:$0xff]
        %v247 = vld [vmem:[%s195 + $0x178] sm:$0xff]
        %v248 = vld [vmem:[%s199] sm:$0xf]
        %v249 = vld [vmem:[%s195 + $0x1] sm:$0xff]
        %v250 = vld [vmem:[%s195 + $0x9] sm:$0xff]
        %v251 = vld [vmem:[%s195 + $0x11] sm:$0xff]
        %v252 = vld [vmem:[%s195 + $0x19] sm:$0xff]
        %v253 = vld [vmem:[%s195 + $0x21] sm:$0xff]
        %v254 = vld [vmem:[%s195 + $0x29] sm:$0xff]
        %v255 = vld [vmem:[%s195 + $0x31] sm:$0xff]
        %v256 = vld [vmem:[%s195 + $0x39] sm:$0xff]
        %v257 = vld [vmem:[%s195 + $0x41] sm:$0xff]
        %v258 = vld [vmem:[%s195 + $0x49] sm:$0xff]
        %v259 = vld [vmem:[%s195 + $0x51] sm:$0xff]
        %v260 = vld [vmem:[%s195 + $0x59] sm:$0xff]
        %v261 = vld [vmem:[%s195 + $0x61] sm:$0xff]
        %v262 = vld [vmem:[%s195 + $0x69] sm:$0xff]
        %v263 = vld [vmem:[%s195 + $0x71] sm:$0xff]
        %v264 = vld [vmem:[%s195 + $0x79] sm:$0xff]
        %v265 = vld [vmem:[%s195 + $0x81] sm:$0xff]
        %v266 = vld [vmem:[%s195 + $0x89] sm:$0xff]
        %v267 = vld [vmem:[%s195 + $0x91] sm:$0xff]
        %v268 = vld [vmem:[%s195 + $0x99] sm:$0xff]
        %v269 = vld [vmem:[%s195 + $0xa1] sm:$0xff]
        %v270 = vld [vmem:[%s195 + $0xa9] sm:$0xff]
        %v271 = vld [vmem:[%s195 + $0xb1] sm:$0xff]
        %v272 = vld [vmem:[%s195 + $0xb9] sm:$0xff]
        %v273 = vld [vmem:[%s195 + $0xc1] sm:$0xff]
        %v274 = vld [vmem:[%s195 + $0xc9] sm:$0xff]
        %v275 = vld [vmem:[%s195 + $0xd1] sm:$0xff]
        %v276 = vld [vmem:[%s195 + $0xd9] sm:$0xff]
        %v277 = vld [vmem:[%s195 + $0xe1] sm:$0xff]
        %v278 = vld [vmem:[%s195 + $0xe9] sm:$0xff]
        %v279 = vld [vmem:[%s195 + $0xf1] sm:$0xff]
        %v280 = vld [vmem:[%s195 + $0xf9] sm:$0xff]
        %v281 = vld [vmem:[%s195 + $0x101] sm:$0xff]
        %v282 = vld [vmem:[%s195 + $0x109] sm:$0xff]
        %v283 = vld [vmem:[%s195 + $0x111] sm:$0xff]
        %v284 = vld [vmem:[%s195 + $0x119] sm:$0xff]
        %v285 = vld [vmem:[%s195 + $0x121] sm:$0xff]
        %v286 = vld [vmem:[%s195 + $0x129] sm:$0xff]
        %v287 = vld [vmem:[%s195 + $0x131] sm:$0xff]
        %v288 = vld [vmem:[%s195 + $0x139] sm:$0xff]
        %v289 = vld [vmem:[%s195 + $0x141] sm:$0xff]
        %v290 = vld [vmem:[%s195 + $0x149] sm:$0xff]
        %v291 = vld [vmem:[%s195 + $0x151] sm:$0xff]
        %v292 = vld [vmem:[%s195 + $0x159] sm:$0xff]
        %v293 = vld [vmem:[%s195 + $0x161] sm:$0xff]
        %v294 = vld [vmem:[%s195 + $0x169] sm:$0xff]
        %v295 = vld [vmem:[%s195 + $0x171] sm:$0xff]
        %v296 = vld [vmem:[%s195 + $0x179] sm:$0xff]
        %s297 = scalar_lea.vmem %s199, 4
        %v298 = vld [vmem:[%s297] sm:$0xf]
        %vm299 = vcmask 31744
        %v301 = vsel %vm299, %v249, 0
        %v304 = vsel %vm299, %v250, 0
        %v307 = vsel %vm299, %v251, 0
        %v310 = vsel %vm299, %v252, 0
        %v313 = vsel %vm299, %v253, 0
        %v316 = vsel %vm299, %v254, 0
        %v319 = vsel %vm299, %v255, 0
        %v322 = vsel %vm299, %v256, 0
        %v325 = vsel %vm299, %v257, 0
        %v328 = vsel %vm299, %v258, 0
        %v331 = vsel %vm299, %v259, 0
        %v334 = vsel %vm299, %v260, 0
        %v337 = vsel %vm299, %v261, 0
        %v340 = vsel %vm299, %v262, 0
        %v343 = vsel %vm299, %v263, 0
        %v346 = vsel %vm299, %v264, 0
        %v349 = vsel %vm299, %v265, 0
        %v352 = vsel %vm299, %v266, 0
        %v355 = vsel %vm299, %v267, 0
        %v358 = vsel %vm299, %v268, 0
        %v361 = vsel %vm299, %v269, 0
        %v364 = vsel %vm299, %v270, 0
        %v367 = vsel %vm299, %v271, 0
        %v370 = vsel %vm299, %v272, 0
        %v373 = vsel %vm299, %v273, 0
        %v376 = vsel %vm299, %v274, 0
        %v379 = vsel %vm299, %v275, 0
        %v382 = vsel %vm299, %v276, 0
        %v385 = vsel %vm299, %v277, 0
        %v388 = vsel %vm299, %v278, 0
        %v391 = vsel %vm299, %v279, 0
        %v394 = vsel %vm299, %v280, 0
        %v397 = vsel %vm299, %v281, 0
        %v400 = vsel %vm299, %v282, 0
        %v403 = vsel %vm299, %v283, 0
        %v406 = vsel %vm299, %v284, 0
        %v409 = vsel %vm299, %v285, 0
        %v412 = vsel %vm299, %v286, 0
        %v415 = vsel %vm299, %v287, 0
        %v418 = vsel %vm299, %v288, 0
        %v421 = vsel %vm299, %v289, 0
        %v424 = vsel %vm299, %v290, 0
        %v427 = vsel %vm299, %v291, 0
        %v430 = vsel %vm299, %v292, 0
        %v433 = vsel %vm299, %v293, 0
        %v436 = vsel %vm299, %v294, 0
        %v439 = vsel %vm299, %v295, 0
        %v442 = vsel %vm299, %v296, 0
        %vm444 = vcmask 1043456
        %v446 = vsel %vm444, %v298, 0
        %448 = vmatprep.subr.mxu0 0.0
        %449 = vmatpush1.msra.mxu0 %v446
        %450 = vmatprep.subr.mxu0 0.0
        %451 = vmatpush1.msra.mxu0 0.0
        %452 = vmatprep.subr.mxu0 0.0
        %453 = vmatpush1.msra.mxu0 0.0
        %454 = vmatprep.subr.mxu0 0.0
        %455 = vmatpush1.msra.mxu0 0.0
        %456 = vmatprep.subr.mxu0 0.0
        %457 = vmatpush1.msra.mxu0 0.0
        %458 = vmatprep.subr.mxu0 0.0
        %459 = vmatpush1.msra.mxu0 0.0
        %460 = vmatprep.subr.mxu0 0.0
        %461 = vmatpush1.msra.mxu0 0.0
        %462 = vmatprep.subr.mxu0 0.0
        %463 = vmatpush1.msra.mxu0 0.0
        %464 = vmatprep.subr.mxu0 0.0
        %465 = vmatpush1.msra.mxu0 0.0
        %466 = vmatprep.subr.mxu0 0.0
        %467 = vmatpush1.msra.mxu0 0.0
        %468 = vmatprep.subr.mxu0 0.0
        %469 = vmatpush1.msra.mxu0 0.0
        %470 = vmatprep.subr.mxu0 0.0
        %471 = vmatpush1.msra.mxu0 0.0
        %472 = vmatprep.subr.mxu0 0.0
        %473 = vmatpush1.msra.mxu0 0.0
        %474 = vmatprep.subr.mxu0 0.0
        %475 = vmatpush1.msra.mxu0 0.0
        %476 = vmatprep.subr.mxu0 0.0
        %477 = vmatpush1.msra.mxu0 0.0
        %478 = vmatprep.subr.mxu0 0.0
        %479 = vmatpush1.msra.mxu0 0.0
        %480 = vmatprep.subr.mxu0 0.0
        %481 = vmatpush1.msra.mxu0 0.0
        %482 = vmatprep.subr.mxu0 0.0
        %483 = vmatpush1.msra.mxu0 0.0
        %484 = vmatprep.subr.mxu0 0.0
        %485 = vmatpush1.msra.mxu0 0.0
        %486 = vmatprep.subr.mxu0 0.0
        %487 = vmatpush1.msra.mxu0 0.0
        %488 = vmatprep.subr.mxu0 0.0
        %489 = vmatpush1.msra.mxu0 0.0
        %490 = vmatprep.subr.mxu0 0.0
        %491 = vmatpush1.msra.mxu0 0.0
        %492 = vmatprep.subr.mxu0 0.0
        %493 = vmatpush1.msra.mxu0 0.0
        %494 = vmatprep.subr.mxu0 0.0
        %495 = vmatpush1.msra.mxu0 0.0
        %496 = vmatprep.subr.mxu0 0.0
        %497 = vmatpush1.msra.mxu0 0.0
        %498 = vmatprep.subr.mxu0 0.0
        %499 = vmatpush1.msra.mxu0 0.0
        %500 = vmatprep.subr.mxu0 0.0
        %501 = vmatpush1.msra.mxu0 0.0
        %502 = vmatprep.subr.mxu0 0.0
        %503 = vmatpush1.msra.mxu0 0.0
        %504 = vmatprep.subr.mxu0 0.0
        %505 = vmatpush1.msra.mxu0 0.0
        %506 = vmatprep.subr.mxu0 0.0
        %507 = vmatpush1.msra.mxu0 0.0
        %508 = vmatprep.subr.mxu0 0.0
        %509 = vmatpush1.msra.mxu0 0.0
        %510 = vmatprep.subr.mxu0 0.0
        %511 = vmatpush1.msra.mxu0 0.0
        %512 = vmatprep.mubr.f32.mxu0 0.0
        %513 = vmatmul.mubr.f32.gmra.mrb[0].mxu0 %v301
        %v514 = vpop.f32.mrb[0].mxu0
        %v515 = vadd.f32 0.0, %v514
        %v516 = vpop.f32.mrb[0].mxu0
        %517 = vmatprep.mubr.f32.mxu0 0.0
        %518 = vmatmul.mubr.f32.gmra.mrb[0].mxu0 %v304
        %v519 = vpop.f32.mrb[0].mxu0
        %v520 = vadd.f32 0.0, %v519
        %v521 = vpop.f32.mrb[0].mxu0
        %522 = vmatprep.mubr.f32.mxu0 0.0
        %523 = vmatmul.mubr.f32.gmra.mrb[0].mxu0 %v307
        %v524 = vpop.f32.mrb[0].mxu0
        %v525 = vadd.f32 0.0, %v524
        %v526 = vpop.f32.mrb[0].mxu0
        %527 = vmatprep.mubr.f32.mxu0 0.0
        %528 = vmatmul.mubr.f32.gmra.mrb[0].mxu0 %v310
        %v529 = vpop.f32.mrb[0].mxu0
        %v530 = vadd.f32 0.0, %v529
        %v531 = vpop.f32.mrb[0].mxu0
        %532 = vmatprep.mubr.f32.mxu0 0.0
        %533 = vmatmul.mubr.f32.gmra.mrb[0].mxu0 %v313
        %v534 = vpop.f32.mrb[0].mxu0
        %v535 = vadd.f32 0.0, %v534
        %v536 = vpop.f32.mrb[0].mxu0
        %537 = vmatprep.mubr.f32.mxu0 0.0
        %538 = vmatmul.mubr.f32.gmra.mrb[0].mxu0 %v316
        %v539 = vpop.f32.mrb[0].mxu0
        %v540 = vadd.f32 0.0, %v539
        %v541 = vpop.f32.mrb[0].mxu0
        %542 = vmatprep.mubr.f32.mxu0 0.0
        %543 = vmatmul.mubr.f32.gmra.mrb[0].mxu0 %v319
        %v544 = vpop.f32.mrb[0].mxu0
        %v545 = vadd.f32 0.0, %v544
        %v546 = vpop.f32.mrb[0].mxu0
        %547 = vmatprep.mubr.f32.mxu0 0.0
        %548 = vmatmul.mubr.f32.gmra.mrb[0].mxu0 %v322
        %v549 = vpop.f32.mrb[0].mxu0
        %v550 = vadd.f32 0.0, %v549
        %v551 = vpop.f32.mrb[0].mxu0
        %552 = vmatprep.mubr.f32.mxu0 0.0
        %553 = vmatmul.mubr.f32.gmra.mrb[0].mxu0 %v325
        %v554 = vpop.f32.mrb[0].mxu0
        %v555 = vadd.f32 0.0, %v554
        %v556 = vpop.f32.mrb[0].mxu0
        %557 = vmatprep.mubr.f32.mxu0 0.0
        %558 = vmatmul.mubr.f32.gmra.mrb[0].mxu0 %v328
        %v559 = vpop.f32.mrb[0].mxu0
        %v560 = vadd.f32 0.0, %v559
        %v561 = vpop.f32.mrb[0].mxu0
        %562 = vmatprep.mubr.f32.mxu0 0.0
        %563 = vmatmul.mubr.f32.gmra.mrb[0].mxu0 %v331
        %v564 = vpop.f32.mrb[0].mxu0
        %v565 = vadd.f32 0.0, %v564
        %v566 = vpop.f32.mrb[0].mxu0
        %567 = vmatprep.mubr.f32.mxu0 0.0
        %568 = vmatmul.mubr.f32.gmra.mrb[0].mxu0 %v334
        %v569 = vpop.f32.mrb[0].mxu0
        %v570 = vadd.f32 0.0, %v569
        %v571 = vpop.f32.mrb[0].mxu0
        %572 = vmatprep.mubr.f32.mxu0 0.0
        %573 = vmatmul.mubr.f32.gmra.mrb[0].mxu0 %v337
        %v574 = vpop.f32.mrb[0].mxu0
        %v575 = vadd.f32 0.0, %v574
        %v576 = vpop.f32.mrb[0].mxu0
        %577 = vmatprep.mubr.f32.mxu0 0.0
        %578 = vmatmul.mubr.f32.gmra.mrb[0].mxu0 %v340
        %v579 = vpop.f32.mrb[0].mxu0
        %v580 = vadd.f32 0.0, %v579
        %v581 = vpop.f32.mrb[0].mxu0
        %582 = vmatprep.mubr.f32.mxu0 0.0
        %583 = vmatmul.mubr.f32.gmra.mrb[0].mxu0 %v343
        %v584 = vpop.f32.mrb[0].mxu0
        %v585 = vadd.f32 0.0, %v584
        %v586 = vpop.f32.mrb[0].mxu0
        %587 = vmatprep.mubr.f32.mxu0 0.0
        %588 = vmatmul.mubr.f32.gmra.mrb[0].mxu0 %v346
        %v589 = vpop.f32.mrb[0].mxu0
        %v590 = vadd.f32 0.0, %v589
        %v591 = vpop.f32.mrb[0].mxu0
        %592 = vmatprep.mubr.f32.mxu0 0.0
        %593 = vmatmul.mubr.f32.gmra.mrb[0].mxu0 %v349
        %v594 = vpop.f32.mrb[0].mxu0
        %v595 = vadd.f32 0.0, %v594
        %v596 = vpop.f32.mrb[0].mxu0
        %597 = vmatprep.mubr.f32.mxu0 0.0
        %598 = vmatmul.mubr.f32.gmra.mrb[0].mxu0 %v352
        %v599 = vpop.f32.mrb[0].mxu0
        %v600 = vadd.f32 0.0, %v599
        %v601 = vpop.f32.mrb[0].mxu0
        %602 = vmatprep.mubr.f32.mxu0 0.0
        %603 = vmatmul.mubr.f32.gmra.mrb[0].mxu0 %v355
        %v604 = vpop.f32.mrb[0].mxu0
        %v605 = vadd.f32 0.0, %v604
        %v606 = vpop.f32.mrb[0].mxu0
        %607 = vmatprep.mubr.f32.mxu0 0.0
        %608 = vmatmul.mubr.f32.gmra.mrb[0].mxu0 %v358
        %v609 = vpop.f32.mrb[0].mxu0
        %v610 = vadd.f32 0.0, %v609
        %v611 = vpop.f32.mrb[0].mxu0
        %612 = vmatprep.mubr.f32.mxu0 0.0
        %613 = vmatmul.mubr.f32.gmra.mrb[0].mxu0 %v361
        %v614 = vpop.f32.mrb[0].mxu0
        %v615 = vadd.f32 0.0, %v614
        %v616 = vpop.f32.mrb[0].mxu0
        %617 = vmatprep.mubr.f32.mxu0 0.0
        %618 = vmatmul.mubr.f32.gmra.mrb[0].mxu0 %v364
        %v619 = vpop.f32.mrb[0].mxu0
        %v620 = vadd.f32 0.0, %v619
        %v621 = vpop.f32.mrb[0].mxu0
        %622 = vmatprep.mubr.f32.mxu0 0.0
        %623 = vmatmul.mubr.f32.gmra.mrb[0].mxu0 %v367
        %v624 = vpop.f32.mrb[0].mxu0
        %v625 = vadd.f32 0.0, %v624
        %v626 = vpop.f32.mrb[0].mxu0
        %627 = vmatprep.mubr.f32.mxu0 0.0
        %628 = vmatmul.mubr.f32.gmra.mrb[0].mxu0 %v370
        %v629 = vpop.f32.mrb[0].mxu0
        %v630 = vadd.f32 0.0, %v629
        %v631 = vpop.f32.mrb[0].mxu0
        %632 = vmatprep.mubr.f32.mxu0 0.0
        %633 = vmatmul.mubr.f32.gmra.mrb[0].mxu0 %v373
        %v634 = vpop.f32.mrb[0].mxu0
        %v635 = vadd.f32 0.0, %v634
        %v636 = vpop.f32.mrb[0].mxu0
        %637 = vmatprep.mubr.f32.mxu0 0.0
        %638 = vmatmul.mubr.f32.gmra.mrb[0].mxu0 %v376
        %v639 = vpop.f32.mrb[0].mxu0
        %v640 = vadd.f32 0.0, %v639
        %v641 = vpop.f32.mrb[0].mxu0
        %642 = vmatprep.mubr.f32.mxu0 0.0
        %643 = vmatmul.mubr.f32.gmra.mrb[0].mxu0 %v379
        %v644 = vpop.f32.mrb[0].mxu0
        %v645 = vadd.f32 0.0, %v644
        %v646 = vpop.f32.mrb[0].mxu0
        %647 = vmatprep.mubr.f32.mxu0 0.0
        %648 = vmatmul.mubr.f32.gmra.mrb[0].mxu0 %v382
        %v649 = vpop.f32.mrb[0].mxu0
        %v650 = vadd.f32 0.0, %v649
        %v651 = vpop.f32.mrb[0].mxu0
        %652 = vmatprep.mubr.f32.mxu0 0.0
        %653 = vmatmul.mubr.f32.gmra.mrb[0].mxu0 %v385
        %v654 = vpop.f32.mrb[0].mxu0
        %v655 = vadd.f32 0.0, %v654
        %v656 = vpop.f32.mrb[0].mxu0
        %657 = vmatprep.mubr.f32.mxu0 0.0
        %658 = vmatmul.mubr.f32.gmra.mrb[0].mxu0 %v388
        %v659 = vpop.f32.mrb[0].mxu0
        %v660 = vadd.f32 0.0, %v659
        %v661 = vpop.f32.mrb[0].mxu0
        %662 = vmatprep.mubr.f32.mxu0 0.0
        %663 = vmatmul.mubr.f32.gmra.mrb[0].mxu0 %v391
        %v664 = vpop.f32.mrb[0].mxu0
        %v665 = vadd.f32 0.0, %v664
        %v666 = vpop.f32.mrb[0].mxu0
        %667 = vmatprep.mubr.f32.mxu0 0.0
        %668 = vmatmul.mubr.f32.gmra.mrb[0].mxu0 %v394
        %v669 = vpop.f32.mrb[0].mxu0
        %v670 = vadd.f32 0.0, %v669
        %v671 = vpop.f32.mrb[0].mxu0
        %672 = vmatprep.mubr.f32.mxu0 0.0
        %673 = vmatmul.mubr.f32.gmra.mrb[0].mxu0 %v397
        %v674 = vpop.f32.mrb[0].mxu0
        %v675 = vadd.f32 0.0, %v674
        %v676 = vpop.f32.mrb[0].mxu0
        %677 = vmatprep.mubr.f32.mxu0 0.0
        %678 = vmatmul.mubr.f32.gmra.mrb[0].mxu0 %v400
        %v679 = vpop.f32.mrb[0].mxu0
        %v680 = vadd.f32 0.0, %v679
        %v681 = vpop.f32.mrb[0].mxu0
        %682 = vmatprep.mubr.f32.mxu0 0.0
        %683 = vmatmul.mubr.f32.gmra.mrb[0].mxu0 %v403
        %v684 = vpop.f32.mrb[0].mxu0
        %v685 = vadd.f32 0.0, %v684
        %v686 = vpop.f32.mrb[0].mxu0
        %687 = vmatprep.mubr.f32.mxu0 0.0
        %688 = vmatmul.mubr.f32.gmra.mrb[0].mxu0 %v406
        %v689 = vpop.f32.mrb[0].mxu0
        %v690 = vadd.f32 0.0, %v689
        %v691 = vpop.f32.mrb[0].mxu0
        %692 = vmatprep.mubr.f32.mxu0 0.0
        %693 = vmatmul.mubr.f32.gmra.mrb[0].mxu0 %v409
        %v694 = vpop.f32.mrb[0].mxu0
        %v695 = vadd.f32 0.0, %v694
        %v696 = vpop.f32.mrb[0].mxu0
        %697 = vmatprep.mubr.f32.mxu0 0.0
        %698 = vmatmul.mubr.f32.gmra.mrb[0].mxu0 %v412
        %v699 = vpop.f32.mrb[0].mxu0
        %v700 = vadd.f32 0.0, %v699
        %v701 = vpop.f32.mrb[0].mxu0
        %702 = vmatprep.mubr.f32.mxu0 0.0
        %703 = vmatmul.mubr.f32.gmra.mrb[0].mxu0 %v415
        %v704 = vpop.f32.mrb[0].mxu0
        %v705 = vadd.f32 0.0, %v704
        %v706 = vpop.f32.mrb[0].mxu0
        %707 = vmatprep.mubr.f32.mxu0 0.0
        %708 = vmatmul.mubr.f32.gmra.mrb[0].mxu0 %v418
        %v709 = vpop.f32.mrb[0].mxu0
        %v710 = vadd.f32 0.0, %v709
        %v711 = vpop.f32.mrb[0].mxu0
        %712 = vmatprep.mubr.f32.mxu0 0.0
        %713 = vmatmul.mubr.f32.gmra.mrb[0].mxu0 %v421
        %v714 = vpop.f32.mrb[0].mxu0
        %v715 = vadd.f32 0.0, %v714
        %v716 = vpop.f32.mrb[0].mxu0
        %717 = vmatprep.mubr.f32.mxu0 0.0
        %718 = vmatmul.mubr.f32.gmra.mrb[0].mxu0 %v424
        %v719 = vpop.f32.mrb[0].mxu0
        %v720 = vadd.f32 0.0, %v719
        %v721 = vpop.f32.mrb[0].mxu0
        %722 = vmatprep.mubr.f32.mxu0 0.0
        %723 = vmatmul.mubr.f32.gmra.mrb[0].mxu0 %v427
        %v724 = vpop.f32.mrb[0].mxu0
        %v725 = vadd.f32 0.0, %v724
        %v726 = vpop.f32.mrb[0].mxu0
        %727 = vmatprep.mubr.f32.mxu0 0.0
        %728 = vmatmul.mubr.f32.gmra.mrb[0].mxu0 %v430
        %v729 = vpop.f32.mrb[0].mxu0
        %v730 = vadd.f32 0.0, %v729
        %v731 = vpop.f32.mrb[0].mxu0
        %732 = vmatprep.mubr.f32.mxu0 0.0
        %733 = vmatmul.mubr.f32.gmra.mrb[0].mxu0 %v433
        %v734 = vpop.f32.mrb[0].mxu0
        %v735 = vadd.f32 0.0, %v734
        %v736 = vpop.f32.mrb[0].mxu0
        %737 = vmatprep.mubr.f32.mxu0 0.0
        %738 = vmatmul.mubr.f32.gmra.mrb[0].mxu0 %v436
        %v739 = vpop.f32.mrb[0].mxu0
        %v740 = vadd.f32 0.0, %v739
        %v741 = vpop.f32.mrb[0].mxu0
        %742 = vmatprep.mubr.f32.mxu0 0.0
        %743 = vmatmul.mubr.f32.gmra.mrb[0].mxu0 %v439
        %v744 = vpop.f32.mrb[0].mxu0
        %v745 = vadd.f32 0.0, %v744
        %v746 = vpop.f32.mrb[0].mxu0
        %747 = vmatprep.mubr.f32.mxu0 0.0
        %748 = vmatmul.mubr.f32.gmra.mrb[0].mxu0 %v442
        %v749 = vpop.f32.mrb[0].mxu0
        %v750 = vadd.f32 0.0, %v749
        %v751 = vpop.f32.mrb[0].mxu0
        %752 = vdwg.mxu0
        %v754 = vsel %vm299, %v200, 0
        %v757 = vsel %vm299, %v201, 0
        %v760 = vsel %vm299, %v202, 0
        %v763 = vsel %vm299, %v203, 0
        %v766 = vsel %vm299, %v204, 0
        %v769 = vsel %vm299, %v205, 0
        %v772 = vsel %vm299, %v206, 0
        %v775 = vsel %vm299, %v207, 0
        %v778 = vsel %vm299, %v208, 0
        %v781 = vsel %vm299, %v209, 0
        %v784 = vsel %vm299, %v210, 0
        %v787 = vsel %vm299, %v211, 0
        %v790 = vsel %vm299, %v212, 0
        %v793 = vsel %vm299, %v213, 0
        %v796 = vsel %vm299, %v214, 0
        %v799 = vsel %vm299, %v215, 0
        %v802 = vsel %vm299, %v216, 0
        %v805 = vsel %vm299, %v217, 0
        %v808 = vsel %vm299, %v218, 0
        %v811 = vsel %vm299, %v219, 0
        %v814 = vsel %vm299, %v220, 0
        %v817 = vsel %vm299, %v221, 0
        %v820 = vsel %vm299, %v222, 0
        %v823 = vsel %vm299, %v223, 0
        %v826 = vsel %vm299, %v224, 0
        %v829 = vsel %vm299, %v225, 0
        %v832 = vsel %vm299, %v226, 0
        %v835 = vsel %vm299, %v227, 0
        %v838 = vsel %vm299, %v228, 0
        %v841 = vsel %vm299, %v229, 0
        %v844 = vsel %vm299, %v230, 0
        %v847 = vsel %vm299, %v231, 0
        %v850 = vsel %vm299, %v232, 0
        %v853 = vsel %vm299, %v233, 0
        %v856 = vsel %vm299, %v234, 0
        %v859 = vsel %vm299, %v235, 0
        %v862 = vsel %vm299, %v236, 0
        %v865 = vsel %vm299, %v237, 0
        %v868 = vsel %vm299, %v238, 0
        %v871 = vsel %vm299, %v239, 0
        %v874 = vsel %vm299, %v240, 0
        %v877 = vsel %vm299, %v241, 0
        %v880 = vsel %vm299, %v242, 0
        %v883 = vsel %vm299, %v243, 0
        %v886 = vsel %vm299, %v244, 0
        %v889 = vsel %vm299, %v245, 0
        %v892 = vsel %vm299, %v246, 0
        %v895 = vsel %vm299, %v247, 0
        %v898 = vsel %vm444, %v248, 0
        %900 = vmatprep.subr.mxu0 0.0
        %901 = vmatpush1.msra.mxu0 %v898
        %902 = vmatprep.subr.mxu0 0.0
        %903 = vmatpush1.msra.mxu0 0.0
        %904 = vmatprep.subr.mxu0 0.0
        %905 = vmatpush1.msra.mxu0 0.0
        %906 = vmatprep.subr.mxu0 0.0
        %907 = vmatpush1.msra.mxu0 0.0
        %908 = vmatprep.subr.mxu0 0.0
        %909 = vmatpush1.msra.mxu0 0.0
        %910 = vmatprep.subr.mxu0 0.0
        %911 = vmatpush1.msra.mxu0 0.0
        %912 = vmatprep.subr.mxu0 0.0
        %913 = vmatpush1.msra.mxu0 0.0
        %914 = vmatprep.subr.mxu0 0.0
        %915 = vmatpush1.msra.mxu0 0.0
        %916 = vmatprep.subr.mxu0 0.0
        %917 = vmatpush1.msra.mxu0 0.0
        %918 = vmatprep.subr.mxu0 0.0
        %919 = vmatpush1.msra.mxu0 0.0
        %920 = vmatprep.subr.mxu0 0.0
        %921 = vmatpush1.msra.mxu0 0.0
        %922 = vmatprep.subr.mxu0 0.0
        %923 = vmatpush1.msra.mxu0 0.0
        %924 = vmatprep.subr.mxu0 0.0
        %925 = vmatpush1.msra.mxu0 0.0
        %926 = vmatprep.subr.mxu0 0.0
        %927 = vmatpush1.msra.mxu0 0.0
        %928 = vmatprep.subr.mxu0 0.0
        %929 = vmatpush1.msra.mxu0 0.0
        %930 = vmatprep.subr.mxu0 0.0
        %931 = vmatpush1.msra.mxu0 0.0
        %932 = vmatprep.subr.mxu0 0.0
        %933 = vmatpush1.msra.mxu0 0.0
        %934 = vmatprep.subr.mxu0 0.0
        %935 = vmatpush1.msra.mxu0 0.0
        %936 = vmatprep.subr.mxu0 0.0
        %937 = vmatpush1.msra.mxu0 0.0
        %938 = vmatprep.subr.mxu0 0.0
        %939 = vmatpush1.msra.mxu0 0.0
        %940 = vmatprep.subr.mxu0 0.0
        %941 = vmatpush1.msra.mxu0 0.0
        %942 = vmatprep.subr.mxu0 0.0
        %943 = vmatpush1.msra.mxu0 0.0
        %944 = vmatprep.subr.mxu0 0.0
        %945 = vmatpush1.msra.mxu0 0.0
        %946 = vmatprep.subr.mxu0 0.0
        %947 = vmatpush1.msra.mxu0 0.0
        %948 = vmatprep.subr.mxu0 0.0
        %949 = vmatpush1.msra.mxu0 0.0
        %950 = vmatprep.subr.mxu0 0.0
        %951 = vmatpush1.msra.mxu0 0.0
        %952 = vmatprep.subr.mxu0 0.0
        %953 = vmatpush1.msra.mxu0 0.0
        %954 = vmatprep.subr.mxu0 0.0
        %955 = vmatpush1.msra.mxu0 0.0
        %956 = vmatprep.subr.mxu0 0.0
        %957 = vmatpush1.msra.mxu0 0.0
        %958 = vmatprep.subr.mxu0 0.0
        %959 = vmatpush1.msra.mxu0 0.0
        %960 = vmatprep.subr.mxu0 0.0
        %961 = vmatpush1.msra.mxu0 0.0
        %962 = vmatprep.subr.mxu0 0.0
        %963 = vmatpush1.msra.mxu0 0.0
        %964 = vmatprep.mubr.f32.mxu0 0.0
        %965 = vmatmul.mubr.f32.gmra.mrb[0].mxu0 %v754
        %v966 = vpop.f32.mrb[0].mxu0
        %v967 = vadd.f32 %v515, %v966
        %v968 = vpop.f32.mrb[0].mxu0
        %969 = vmatprep.mubr.f32.mxu0 0.0
        %970 = vmatmul.mubr.f32.gmra.mrb[0].mxu0 %v757
        %v971 = vpop.f32.mrb[0].mxu0
        %v972 = vadd.f32 %v520, %v971
        %v973 = vpop.f32.mrb[0].mxu0
        %974 = vmatprep.mubr.f32.mxu0 0.0
        %975 = vmatmul.mubr.f32.gmra.mrb[0].mxu0 %v760
        %v976 = vpop.f32.mrb[0].mxu0
        %v977 = vadd.f32 %v525, %v976
        %v978 = vpop.f32.mrb[0].mxu0
        %979 = vmatprep.mubr.f32.mxu0 0.0
        %980 = vmatmul.mubr.f32.gmra.mrb[0].mxu0 %v763
        %v981 = vpop.f32.mrb[0].mxu0
        %v982 = vadd.f32 %v530, %v981
        %v983 = vpop.f32.mrb[0].mxu0
        %984 = vmatprep.mubr.f32.mxu0 0.0
        %985 = vmatmul.mubr.f32.gmra.mrb[0].mxu0 %v766
        %v986 = vpop.f32.mrb[0].mxu0
        %v987 = vadd.f32 %v535, %v986
        %v988 = vpop.f32.mrb[0].mxu0
        %989 = vmatprep.mubr.f32.mxu0 0.0
        %990 = vmatmul.mubr.f32.gmra.mrb[0].mxu0 %v769
        %v991 = vpop.f32.mrb[0].mxu0
        %v992 = vadd.f32 %v540, %v991
        %v993 = vpop.f32.mrb[0].mxu0
        %994 = vmatprep.mubr.f32.mxu0 0.0
        %995 = vmatmul.mubr.f32.gmra.mrb[0].mxu0 %v772
        %v996 = vpop.f32.mrb[0].mxu0
        %v997 = vadd.f32 %v545, %v996
        %v998 = vpop.f32.mrb[0].mxu0
        %999 = vmatprep.mubr.f32.mxu0 0.0
        %1000 = vmatmul.mubr.f32.gmra.mrb[0].mxu0 %v775
        %v1001 = vpop.f32.mrb[0].mxu0
        %v1002 = vadd.f32 %v550, %v1001
        %v1003 = vpop.f32.mrb[0].mxu0
        %1004 = vmatprep.mubr.f32.mxu0 0.0
        %1005 = vmatmul.mubr.f32.gmra.mrb[0].mxu0 %v778
        %v1006 = vpop.f32.mrb[0].mxu0
        %v1007 = vadd.f32 %v555, %v1006
        %v1008 = vpop.f32.mrb[0].mxu0
        %1009 = vmatprep.mubr.f32.mxu0 0.0
        %1010 = vmatmul.mubr.f32.gmra.mrb[0].mxu0 %v781
        %v1011 = vpop.f32.mrb[0].mxu0
        %v1012 = vadd.f32 %v560, %v1011
        %v1013 = vpop.f32.mrb[0].mxu0
        %1014 = vmatprep.mubr.f32.mxu0 0.0
        %1015 = vmatmul.mubr.f32.gmra.mrb[0].mxu0 %v784
        %v1016 = vpop.f32.mrb[0].mxu0
        %v1017 = vadd.f32 %v565, %v1016
        %v1018 = vpop.f32.mrb[0].mxu0
        %1019 = vmatprep.mubr.f32.mxu0 0.0
        %1020 = vmatmul.mubr.f32.gmra.mrb[0].mxu0 %v787
        %v1021 = vpop.f32.mrb[0].mxu0
        %v1022 = vadd.f32 %v570, %v1021
        %v1023 = vpop.f32.mrb[0].mxu0
        %1024 = vmatprep.mubr.f32.mxu0 0.0
        %1025 = vmatmul.mubr.f32.gmra.mrb[0].mxu0 %v790
        %v1026 = vpop.f32.mrb[0].mxu0
        %v1027 = vadd.f32 %v575, %v1026
        %v1028 = vpop.f32.mrb[0].mxu0
        %1029 = vmatprep.mubr.f32.mxu0 0.0
        %1030 = vmatmul.mubr.f32.gmra.mrb[0].mxu0 %v793
        %v1031 = vpop.f32.mrb[0].mxu0
        %v1032 = vadd.f32 %v580, %v1031
        %v1033 = vpop.f32.mrb[0].mxu0
        %1034 = vmatprep.mubr.f32.mxu0 0.0
        %1035 = vmatmul.mubr.f32.gmra.mrb[0].mxu0 %v796
        %v1036 = vpop.f32.mrb[0].mxu0
        %v1037 = vadd.f32 %v585, %v1036
        %v1038 = vpop.f32.mrb[0].mxu0
        %1039 = vmatprep.mubr.f32.mxu0 0.0
        %1040 = vmatmul.mubr.f32.gmra.mrb[0].mxu0 %v799
        %v1041 = vpop.f32.mrb[0].mxu0
        %v1042 = vadd.f32 %v590, %v1041
        %v1043 = vpop.f32.mrb[0].mxu0
        %1044 = vmatprep.mubr.f32.mxu0 0.0
        %1045 = vmatmul.mubr.f32.gmra.mrb[0].mxu0 %v802
        %v1046 = vpop.f32.mrb[0].mxu0
        %v1047 = vadd.f32 %v595, %v1046
        %v1048 = vpop.f32.mrb[0].mxu0
        %1049 = vmatprep.mubr.f32.mxu0 0.0
        %1050 = vmatmul.mubr.f32.gmra.mrb[0].mxu0 %v805
        %v1051 = vpop.f32.mrb[0].mxu0
        %v1052 = vadd.f32 %v600, %v1051
        %v1053 = vpop.f32.mrb[0].mxu0
        %1054 = vmatprep.mubr.f32.mxu0 0.0
        %1055 = vmatmul.mubr.f32.gmra.mrb[0].mxu0 %v808
        %v1056 = vpop.f32.mrb[0].mxu0
        %v1057 = vadd.f32 %v605, %v1056
        %v1058 = vpop.f32.mrb[0].mxu0
        %1059 = vmatprep.mubr.f32.mxu0 0.0
        %1060 = vmatmul.mubr.f32.gmra.mrb[0].mxu0 %v811
        %v1061 = vpop.f32.mrb[0].mxu0
        %v1062 = vadd.f32 %v610, %v1061
        %v1063 = vpop.f32.mrb[0].mxu0
        %1064 = vmatprep.mubr.f32.mxu0 0.0
        %1065 = vmatmul.mubr.f32.gmra.mrb[0].mxu0 %v814
        %v1066 = vpop.f32.mrb[0].mxu0
        %v1067 = vadd.f32 %v615, %v1066
        %v1068 = vpop.f32.mrb[0].mxu0
        %1069 = vmatprep.mubr.f32.mxu0 0.0
        %1070 = vmatmul.mubr.f32.gmra.mrb[0].mxu0 %v817
        %v1071 = vpop.f32.mrb[0].mxu0
        %v1072 = vadd.f32 %v620, %v1071
        %v1073 = vpop.f32.mrb[0].mxu0
        %1074 = vmatprep.mubr.f32.mxu0 0.0
        %1075 = vmatmul.mubr.f32.gmra.mrb[0].mxu0 %v820
        %v1076 = vpop.f32.mrb[0].mxu0
        %v1077 = vadd.f32 %v625, %v1076
        %v1078 = vpop.f32.mrb[0].mxu0
        %1079 = vmatprep.mubr.f32.mxu0 0.0
        %1080 = vmatmul.mubr.f32.gmra.mrb[0].mxu0 %v823
        %v1081 = vpop.f32.mrb[0].mxu0
        %v1082 = vadd.f32 %v630, %v1081
        %v1083 = vpop.f32.mrb[0].mxu0
        %1084 = vmatprep.mubr.f32.mxu0 0.0
        %1085 = vmatmul.mubr.f32.gmra.mrb[0].mxu0 %v826
        %v1086 = vpop.f32.mrb[0].mxu0
        %v1087 = vadd.f32 %v635, %v1086
        %v1088 = vpop.f32.mrb[0].mxu0
        %1089 = vmatprep.mubr.f32.mxu0 0.0
        %1090 = vmatmul.mubr.f32.gmra.mrb[0].mxu0 %v829
        %v1091 = vpop.f32.mrb[0].mxu0
        %v1092 = vadd.f32 %v640, %v1091
        %v1093 = vpop.f32.mrb[0].mxu0
        %1094 = vmatprep.mubr.f32.mxu0 0.0
        %1095 = vmatmul.mubr.f32.gmra.mrb[0].mxu0 %v832
        %v1096 = vpop.f32.mrb[0].mxu0
        %v1097 = vadd.f32 %v645, %v1096
        %v1098 = vpop.f32.mrb[0].mxu0
        %1099 = vmatprep.mubr.f32.mxu0 0.0
        %1100 = vmatmul.mubr.f32.gmra.mrb[0].mxu0 %v835
        %v1101 = vpop.f32.mrb[0].mxu0
        %v1102 = vadd.f32 %v650, %v1101
        %v1103 = vpop.f32.mrb[0].mxu0
        %1104 = vmatprep.mubr.f32.mxu0 0.0
        %1105 = vmatmul.mubr.f32.gmra.mrb[0].mxu0 %v838
        %v1106 = vpop.f32.mrb[0].mxu0
        %v1107 = vadd.f32 %v655, %v1106
        %v1108 = vpop.f32.mrb[0].mxu0
        %1109 = vmatprep.mubr.f32.mxu0 0.0
        %1110 = vmatmul.mubr.f32.gmra.mrb[0].mxu0 %v841
        %v1111 = vpop.f32.mrb[0].mxu0
        %v1112 = vadd.f32 %v660, %v1111
        %v1113 = vpop.f32.mrb[0].mxu0
        %1114 = vmatprep.mubr.f32.mxu0 0.0
        %1115 = vmatmul.mubr.f32.gmra.mrb[0].mxu0 %v844
        %v1116 = vpop.f32.mrb[0].mxu0
        %v1117 = vadd.f32 %v665, %v1116
        %v1118 = vpop.f32.mrb[0].mxu0
        %1119 = vmatprep.mubr.f32.mxu0 0.0
        %1120 = vmatmul.mubr.f32.gmra.mrb[0].mxu0 %v847
        %v1121 = vpop.f32.mrb[0].mxu0
        %v1122 = vadd.f32 %v670, %v1121
        %v1123 = vpop.f32.mrb[0].mxu0
        %1124 = vmatprep.mubr.f32.mxu0 0.0
        %1125 = vmatmul.mubr.f32.gmra.mrb[0].mxu0 %v850
        %v1126 = vpop.f32.mrb[0].mxu0
        %v1127 = vadd.f32 %v675, %v1126
        %v1128 = vpop.f32.mrb[0].mxu0
        %1129 = vmatprep.mubr.f32.mxu0 0.0
        %1130 = vmatmul.mubr.f32.gmra.mrb[0].mxu0 %v853
        %v1131 = vpop.f32.mrb[0].mxu0
        %v1132 = vadd.f32 %v680, %v1131
        %v1133 = vpop.f32.mrb[0].mxu0
        %1134 = vmatprep.mubr.f32.mxu0 0.0
        %1135 = vmatmul.mubr.f32.gmra.mrb[0].mxu0 %v856
        %v1136 = vpop.f32.mrb[0].mxu0
        %v1137 = vadd.f32 %v685, %v1136
        %v1138 = vpop.f32.mrb[0].mxu0
        %1139 = vmatprep.mubr.f32.mxu0 0.0
        %1140 = vmatmul.mubr.f32.gmra.mrb[0].mxu0 %v859
        %v1141 = vpop.f32.mrb[0].mxu0
        %v1142 = vadd.f32 %v690, %v1141
        %v1143 = vpop.f32.mrb[0].mxu0
        %1144 = vmatprep.mubr.f32.mxu0 0.0
        %1145 = vmatmul.mubr.f32.gmra.mrb[0].mxu0 %v862
        %v1146 = vpop.f32.mrb[0].mxu0
        %v1147 = vadd.f32 %v695, %v1146
        %v1148 = vpop.f32.mrb[0].mxu0
        %1149 = vmatprep.mubr.f32.mxu0 0.0
        %1150 = vmatmul.mubr.f32.gmra.mrb[0].mxu0 %v865
        %v1151 = vpop.f32.mrb[0].mxu0
        %v1152 = vadd.f32 %v700, %v1151
        %v1153 = vpop.f32.mrb[0].mxu0
        %1154 = vmatprep.mubr.f32.mxu0 0.0
        %1155 = vmatmul.mubr.f32.gmra.mrb[0].mxu0 %v868
        %v1156 = vpop.f32.mrb[0].mxu0
        %v1157 = vadd.f32 %v705, %v1156
        %v1158 = vpop.f32.mrb[0].mxu0
        %1159 = vmatprep.mubr.f32.mxu0 0.0
        %1160 = vmatmul.mubr.f32.gmra.mrb[0].mxu0 %v871
        %v1161 = vpop.f32.mrb[0].mxu0
        %v1162 = vadd.f32 %v710, %v1161
        %v1163 = vpop.f32.mrb[0].mxu0
        %1164 = vmatprep.mubr.f32.mxu0 0.0
        %1165 = vmatmul.mubr.f32.gmra.mrb[0].mxu0 %v874
        %v1166 = vpop.f32.mrb[0].mxu0
        %v1167 = vadd.f32 %v715, %v1166
        %v1168 = vpop.f32.mrb[0].mxu0
        %1169 = vmatprep.mubr.f32.mxu0 0.0
        %1170 = vmatmul.mubr.f32.gmra.mrb[0].mxu0 %v877
        %v1171 = vpop.f32.mrb[0].mxu0
        %v1172 = vadd.f32 %v720, %v1171
        %v1173 = vpop.f32.mrb[0].mxu0
        %1174 = vmatprep.mubr.f32.mxu0 0.0
        %1175 = vmatmul.mubr.f32.gmra.mrb[0].mxu0 %v880
        %v1176 = vpop.f32.mrb[0].mxu0
        %v1177 = vadd.f32 %v725, %v1176
        %v1178 = vpop.f32.mrb[0].mxu0
        %1179 = vmatprep.mubr.f32.mxu0 0.0
        %1180 = vmatmul.mubr.f32.gmra.mrb[0].mxu0 %v883
        %v1181 = vpop.f32.mrb[0].mxu0
        %v1182 = vadd.f32 %v730, %v1181
        %v1183 = vpop.f32.mrb[0].mxu0
        %1184 = vmatprep.mubr.f32.mxu0 0.0
        %1185 = vmatmul.mubr.f32.gmra.mrb[0].mxu0 %v886
        %v1186 = vpop.f32.mrb[0].mxu0
        %v1187 = vadd.f32 %v735, %v1186
        %v1188 = vpop.f32.mrb[0].mxu0
        %1189 = vmatprep.mubr.f32.mxu0 0.0
        %1190 = vmatmul.mubr.f32.gmra.mrb[0].mxu0 %v889
        %v1191 = vpop.f32.mrb[0].mxu0
        %v1192 = vadd.f32 %v740, %v1191
        %v1193 = vpop.f32.mrb[0].mxu0
        %1194 = vmatprep.mubr.f32.mxu0 0.0
        %1195 = vmatmul.mubr.f32.gmra.mrb[0].mxu0 %v892
        %v1196 = vpop.f32.mrb[0].mxu0
        %v1197 = vadd.f32 %v745, %v1196
        %v1198 = vpop.f32.mrb[0].mxu0
        %1199 = vmatprep.mubr.f32.mxu0 0.0
        %1200 = vmatmul.mubr.f32.gmra.mrb[0].mxu0 %v895
        %v1201 = vpop.f32.mrb[0].mxu0
        %v1202 = vadd.f32 %v750, %v1201
        %v1203 = vpop.f32.mrb[0].mxu0
        %1204 = vdwg.mxu0
        %v1205 = vld [vmem:[%s195 + $0x2] sm:$0xff]
        %v1206 = vld [vmem:[%s195 + $0xa] sm:$0xff]
        %v1207 = vld [vmem:[%s195 + $0x12] sm:$0xff]
        %v1208 = vld [vmem:[%s195 + $0x1a] sm:$0xff]
        %v1209 = vld [vmem:[%s195 + $0x22] sm:$0xff]
        %v1210 = vld [vmem:[%s195 + $0x2a] sm:$0xff]
        %v1211 = vld [vmem:[%s195 + $0x32] sm:$0xff]
        %v1212 = vld [vmem:[%s195 + $0x3a] sm:$0xff]
        %v1213 = vld [vmem:[%s195 + $0x42] sm:$0xff]
        %v1214 = vld [vmem:[%s195 + $0x4a] sm:$0xff]
        %v1215 = vld [vmem:[%s195 + $0x52] sm:$0xff]
        %v1216 = vld [vmem:[%s195 + $0x5a] sm:$0xff]
        %v1217 = vld [vmem:[%s195 + $0x62] sm:$0xff]
        %v1218 = vld [vmem:[%s195 + $0x6a] sm:$0xff]
        %v1219 = vld [vmem:[%s195 + $0x72] sm:$0xff]
        %v1220 = vld [vmem:[%s195 + $0x7a] sm:$0xff]
        %v1221 = vld [vmem:[%s195 + $0x82] sm:$0xff]
        %v1222 = vld [vmem:[%s195 + $0x8a] sm:$0xff]
        %v1223 = vld [vmem:[%s195 + $0x92] sm:$0xff]
        %v1224 = vld [vmem:[%s195 + $0x9a] sm:$0xff]
        %v1225 = vld [vmem:[%s195 + $0xa2] sm:$0xff]
        %v1226 = vld [vmem:[%s195 + $0xaa] sm:$0xff]
        %v1227 = vld [vmem:[%s195 + $0xb2] sm:$0xff]
        %v1228 = vld [vmem:[%s195 + $0xba] sm:$0xff]
        %v1229 = vld [vmem:[%s195 + $0xc2] sm:$0xff]
        %v1230 = vld [vmem:[%s195 + $0xca] sm:$0xff]
        %v1231 = vld [vmem:[%s195 + $0xd2] sm:$0xff]
        %v1232 = vld [vmem:[%s195 + $0xda] sm:$0xff]
        %v1233 = vld [vmem:[%s195 + $0xe2] sm:$0xff]
        %v1234 = vld [vmem:[%s195 + $0xea] sm:$0xff]
        %v1235 = vld [vmem:[%s195 + $0xf2] sm:$0xff]
        %v1236 = vld [vmem:[%s195 + $0xfa] sm:$0xff]
        %v1237 = vld [vmem:[%s195 + $0x102] sm:$0xff]
        %v1238 = vld [vmem:[%s195 + $0x10a] sm:$0xff]
        %v1239 = vld [vmem:[%s195 + $0x112] sm:$0xff]
        %v1240 = vld [vmem:[%s195 + $0x11a] sm:$0xff]
        %v1241 = vld [vmem:[%s195 + $0x122] sm:$0xff]
        %v1242 = vld [vmem:[%s195 + $0x12a] sm:$0xff]
        %v1243 = vld [vmem:[%s195 + $0x132] sm:$0xff]
        %v1244 = vld [vmem:[%s195 + $0x13a] sm:$0xff]
        %v1245 = vld [vmem:[%s195 + $0x142] sm:$0xff]
        %v1246 = vld [vmem:[%s195 + $0x14a] sm:$0xff]
        %v1247 = vld [vmem:[%s195 + $0x152] sm:$0xff]
        %v1248 = vld [vmem:[%s195 + $0x15a] sm:$0xff]
        %v1249 = vld [vmem:[%s195 + $0x162] sm:$0xff]
        %v1250 = vld [vmem:[%s195 + $0x16a] sm:$0xff]
        %v1251 = vld [vmem:[%s195 + $0x172] sm:$0xff]
        %v1252 = vld [vmem:[%s195 + $0x17a] sm:$0xff]
        %s1253 = scalar_lea.vmem %s199, 8
        %v1254 = vld [vmem:[%s1253] sm:$0xf]
        %v1256 = vsel %vm299, %v1205, 0
        %v1259 = vsel %vm299, %v1206, 0
        %v1262 = vsel %vm299, %v1207, 0
        %v1265 = vsel %vm299, %v1208, 0
        %v1268 = vsel %vm299, %v1209, 0
        %v1271 = vsel %vm299, %v1210, 0
        %v1274 = vsel %vm299, %v1211, 0
        %v1277 = vsel %vm299, %v1212, 0
        %v1280 = vsel %vm299, %v1213, 0
        %v1283 = vsel %vm299, %v1214, 0
        %v1286 = vsel %vm299, %v1215, 0
        %v1289 = vsel %vm299, %v1216, 0
        %v1292 = vsel %vm299, %v1217, 0
        %v1295 = vsel %vm299, %v1218, 0
        %v1298 = vsel %vm299, %v1219, 0
        %v1301 = vsel %vm299, %v1220, 0
        %v1304 = vsel %vm299, %v1221, 0
        %v1307 = vsel %vm299, %v1222, 0
        %v1310 = vsel %vm299, %v1223, 0
        %v1313 = vsel %vm299, %v1224, 0
        %v1316 = vsel %vm299, %v1225, 0
        %v1319 = vsel %vm299, %v1226, 0
        %v1322 = vsel %vm299, %v1227, 0
        %v1325 = vsel %vm299, %v1228, 0
        %v1328 = vsel %vm299, %v1229, 0
        %v1331 = vsel %vm299, %v1230, 0
        %v1334 = vsel %vm299, %v1231, 0
        %v1337 = vsel %vm299, %v1232, 0
        %v1340 = vsel %vm299, %v1233, 0
        %v1343 = vsel %vm299, %v1234, 0
        %v1346 = vsel %vm299, %v1235, 0
        %v1349 = vsel %vm299, %v1236, 0
        %v1352 = vsel %vm299, %v1237, 0
        %v1355 = vsel %vm299, %v1238, 0
        %v1358 = vsel %vm299, %v1239, 0
        %v1361 = vsel %vm299, %v1240, 0
        %v1364 = vsel %vm299, %v1241, 0
        %v1367 = vsel %vm299, %v1242, 0
        %v1370 = vsel %vm299, %v1243, 0
        %v1373 = vsel %vm299, %v1244, 0
        %v1376 = vsel %vm299, %v1245, 0
        %v1379 = vsel %vm299, %v1246, 0
        %v1382 = vsel %vm299, %v1247, 0
        %v1385 = vsel %vm299, %v1248, 0
        %v1388 = vsel %vm299, %v1249, 0
        %v1391 = vsel %vm299, %v1250, 0
        %v1394 = vsel %vm299, %v1251, 0
        %v1397 = vsel %vm299, %v1252, 0
        %v1400 = vsel %vm444, %v1254, 0
        %1402 = vmatprep.subr.mxu0 0.0
        %1403 = vmatpush1.msra.mxu0 %v1400
        %1404 = vmatprep.subr.mxu0 0.0
        %1405 = vmatpush1.msra.mxu0 0.0
        %1406 = vmatprep.subr.mxu0 0.0
        %1407 = vmatpush1.msra.mxu0 0.0
        %1408 = vmatprep.subr.mxu0 0.0
        %1409 = vmatpush1.msra.mxu0 0.0
        %1410 = vmatprep.subr.mxu0 0.0
        %1411 = vmatpush1.msra.mxu0 0.0
        %1412 = vmatprep.subr.mxu0 0.0
        %1413 = vmatpush1.msra.mxu0 0.0
        %1414 = vmatprep.subr.mxu0 0.0
        %1415 = vmatpush1.msra.mxu0 0.0
        %1416 = vmatprep.subr.mxu0 0.0
        %1417 = vmatpush1.msra.mxu0 0.0
        %1418 = vmatprep.subr.mxu0 0.0
        %1419 = vmatpush1.msra.mxu0 0.0
        %1420 = vmatprep.subr.mxu0 0.0
        %1421 = vmatpush1.msra.mxu0 0.0
        %1422 = vmatprep.subr.mxu0 0.0
        %1423 = vmatpush1.msra.mxu0 0.0
        %1424 = vmatprep.subr.mxu0 0.0
        %1425 = vmatpush1.msra.mxu0 0.0
        %1426 = vmatprep.subr.mxu0 0.0
        %1427 = vmatpush1.msra.mxu0 0.0
        %1428 = vmatprep.subr.mxu0 0.0
        %1429 = vmatpush1.msra.mxu0 0.0
        %1430 = vmatprep.subr.mxu0 0.0
        %1431 = vmatpush1.msra.mxu0 0.0
        %1432 = vmatprep.subr.mxu0 0.0
        %1433 = vmatpush1.msra.mxu0 0.0
        %1434 = vmatprep.subr.mxu0 0.0
        %1435 = vmatpush1.msra.mxu0 0.0
        %1436 = vmatprep.subr.mxu0 0.0
        %1437 = vmatpush1.msra.mxu0 0.0
        %1438 = vmatprep.subr.mxu0 0.0
        %1439 = vmatpush1.msra.mxu0 0.0
        %1440 = vmatprep.subr.mxu0 0.0
        %1441 = vmatpush1.msra.mxu0 0.0
        %1442 = vmatprep.subr.mxu0 0.0
        %1443 = vmatpush1.msra.mxu0 0.0
        %1444 = vmatprep.subr.mxu0 0.0
        %1445 = vmatpush1.msra.mxu0 0.0
        %1446 = vmatprep.subr.mxu0 0.0
        %1447 = vmatpush1.msra.mxu0 0.0
        %1448 = vmatprep.subr.mxu0 0.0
        %1449 = vmatpush1.msra.mxu0 0.0
        %1450 = vmatprep.subr.mxu0 0.0
        %1451 = vmatpush1.msra.mxu0 0.0
        %1452 = vmatprep.subr.mxu0 0.0
        %1453 = vmatpush1.msra.mxu0 0.0
        %1454 = vmatprep.subr.mxu0 0.0
        %1455 = vmatpush1.msra.mxu0 0.0
        %1456 = vmatprep.subr.mxu0 0.0
        %1457 = vmatpush1.msra.mxu0 0.0
        %1458 = vmatprep.subr.mxu0 0.0
        %1459 = vmatpush1.msra.mxu0 0.0
        %1460 = vmatprep.subr.mxu0 0.0
        %1461 = vmatpush1.msra.mxu0 0.0
        %1462 = vmatprep.subr.mxu0 0.0
        %1463 = vmatpush1.msra.mxu0 0.0
        %1464 = vmatprep.subr.mxu0 0.0
        %1465 = vmatpush1.msra.mxu0 0.0
        %1466 = vmatprep.mubr.f32.mxu0 0.0
        %1467 = vmatmul.mubr.f32.gmra.mrb[0].mxu0 %v1256
        %v1468 = vpop.f32.mrb[0].mxu0
        %v1469 = vadd.f32 0.0, %v1468
        %v1470 = vpop.f32.mrb[0].mxu0
        %1471 = vmatprep.mubr.f32.mxu0 0.0
        %1472 = vmatmul.mubr.f32.gmra.mrb[0].mxu0 %v1259
        %v1473 = vpop.f32.mrb[0].mxu0
        %v1474 = vadd.f32 0.0, %v1473
        %v1475 = vpop.f32.mrb[0].mxu0
        %1476 = vmatprep.mubr.f32.mxu0 0.0
        %1477 = vmatmul.mubr.f32.gmra.mrb[0].mxu0 %v1262
        %v1478 = vpop.f32.mrb[0].mxu0
        %v1479 = vadd.f32 0.0, %v1478
        %v1480 = vpop.f32.mrb[0].mxu0
        %1481 = vmatprep.mubr.f32.mxu0 0.0
        %1482 = vmatmul.mubr.f32.gmra.mrb[0].mxu0 %v1265
        %v1483 = vpop.f32.mrb[0].mxu0
        %v1484 = vadd.f32 0.0, %v1483
        %v1485 = vpop.f32.mrb[0].mxu0
        %1486 = vmatprep.mubr.f32.mxu0 0.0
        %1487 = vmatmul.mubr.f32.gmra.mrb[0].mxu0 %v1268
        %v1488 = vpop.f32.mrb[0].mxu0
        %v1489 = vadd.f32 0.0, %v1488
        %v1490 = vpop.f32.mrb[0].mxu0
        %1491 = vmatprep.mubr.f32.mxu0 0.0
        %1492 = vmatmul.mubr.f32.gmra.mrb[0].mxu0 %v1271
        %v1493 = vpop.f32.mrb[0].mxu0
        %v1494 = vadd.f32 0.0, %v1493
        %v1495 = vpop.f32.mrb[0].mxu0
        %1496 = vmatprep.mubr.f32.mxu0 0.0
        %1497 = vmatmul.mubr.f32.gmra.mrb[0].mxu0 %v1274
        %v1498 = vpop.f32.mrb[0].mxu0
        %v1499 = vadd.f32 0.0, %v1498
        %v1500 = vpop.f32.mrb[0].mxu0
        %1501 = vmatprep.mubr.f32.mxu0 0.0
        %1502 = vmatmul.mubr.f32.gmra.mrb[0].mxu0 %v1277
        %v1503 = vpop.f32.mrb[0].mxu0
        %v1504 = vadd.f32 0.0, %v1503
        %v1505 = vpop.f32.mrb[0].mxu0
        %1506 = vmatprep.mubr.f32.mxu0 0.0
        %1507 = vmatmul.mubr.f32.gmra.mrb[0].mxu0 %v1280
        %v1508 = vpop.f32.mrb[0].mxu0
        %v1509 = vadd.f32 0.0, %v1508
        %v1510 = vpop.f32.mrb[0].mxu0
        %1511 = vmatprep.mubr.f32.mxu0 0.0
        %1512 = vmatmul.mubr.f32.gmra.mrb[0].mxu0 %v1283
        %v1513 = vpop.f32.mrb[0].mxu0
        %v1514 = vadd.f32 0.0, %v1513
        %v1515 = vpop.f32.mrb[0].mxu0
        %1516 = vmatprep.mubr.f32.mxu0 0.0
        %1517 = vmatmul.mubr.f32.gmra.mrb[0].mxu0 %v1286
        %v1518 = vpop.f32.mrb[0].mxu0
        %v1519 = vadd.f32 0.0, %v1518
        %v1520 = vpop.f32.mrb[0].mxu0
        %1521 = vmatprep.mubr.f32.mxu0 0.0
        %1522 = vmatmul.mubr.f32.gmra.mrb[0].mxu0 %v1289
        %v1523 = vpop.f32.mrb[0].mxu0
        %v1524 = vadd.f32 0.0, %v1523
        %v1525 = vpop.f32.mrb[0].mxu0
        %1526 = vmatprep.mubr.f32.mxu0 0.0
        %1527 = vmatmul.mubr.f32.gmra.mrb[0].mxu0 %v1292
        %v1528 = vpop.f32.mrb[0].mxu0
        %v1529 = vadd.f32 0.0, %v1528
        %v1530 = vpop.f32.mrb[0].mxu0
        %1531 = vmatprep.mubr.f32.mxu0 0.0
        %1532 = vmatmul.mubr.f32.gmra.mrb[0].mxu0 %v1295
        %v1533 = vpop.f32.mrb[0].mxu0
        %v1534 = vadd.f32 0.0, %v1533
        %v1535 = vpop.f32.mrb[0].mxu0
        %1536 = vmatprep.mubr.f32.mxu0 0.0
        %1537 = vmatmul.mubr.f32.gmra.mrb[0].mxu0 %v1298
        %v1538 = vpop.f32.mrb[0].mxu0
        %v1539 = vadd.f32 0.0, %v1538
        %v1540 = vpop.f32.mrb[0].mxu0
        %1541 = vmatprep.mubr.f32.mxu0 0.0
        %1542 = vmatmul.mubr.f32.gmra.mrb[0].mxu0 %v1301
        %v1543 = vpop.f32.mrb[0].mxu0
        %v1544 = vadd.f32 0.0, %v1543
        %v1545 = vpop.f32.mrb[0].mxu0
        %1546 = vmatprep.mubr.f32.mxu0 0.0
        %1547 = vmatmul.mubr.f32.gmra.mrb[0].mxu0 %v1304
        %v1548 = vpop.f32.mrb[0].mxu0
        %v1549 = vadd.f32 0.0, %v1548
        %v1550 = vpop.f32.mrb[0].mxu0
        %1551 = vmatprep.mubr.f32.mxu0 0.0
        %1552 = vmatmul.mubr.f32.gmra.mrb[0].mxu0 %v1307
        %v1553 = vpop.f32.mrb[0].mxu0
        %v1554 = vadd.f32 0.0, %v1553
        %v1555 = vpop.f32.mrb[0].mxu0
        %1556 = vmatprep.mubr.f32.mxu0 0.0
        %1557 = vmatmul.mubr.f32.gmra.mrb[0].mxu0 %v1310
        %v1558 = vpop.f32.mrb[0].mxu0
        %v1559 = vadd.f32 0.0, %v1558
        %v1560 = vpop.f32.mrb[0].mxu0
        %1561 = vmatprep.mubr.f32.mxu0 0.0
        %1562 = vmatmul.mubr.f32.gmra.mrb[0].mxu0 %v1313
        %v1563 = vpop.f32.mrb[0].mxu0
        %v1564 = vadd.f32 0.0, %v1563
        %v1565 = vpop.f32.mrb[0].mxu0
        %1566 = vmatprep.mubr.f32.mxu0 0.0
        %1567 = vmatmul.mubr.f32.gmra.mrb[0].mxu0 %v1316
        %v1568 = vpop.f32.mrb[0].mxu0
        %v1569 = vadd.f32 0.0, %v1568
        %v1570 = vpop.f32.mrb[0].mxu0
        %1571 = vmatprep.mubr.f32.mxu0 0.0
        %1572 = vmatmul.mubr.f32.gmra.mrb[0].mxu0 %v1319
        %v1573 = vpop.f32.mrb[0].mxu0
        %v1574 = vadd.f32 0.0, %v1573
        %v1575 = vpop.f32.mrb[0].mxu0
        %1576 = vmatprep.mubr.f32.mxu0 0.0
        %1577 = vmatmul.mubr.f32.gmra.mrb[0].mxu0 %v1322
        %v1578 = vpop.f32.mrb[0].mxu0
        %v1579 = vadd.f32 0.0, %v1578
        %v1580 = vpop.f32.mrb[0].mxu0
        %1581 = vmatprep.mubr.f32.mxu0 0.0
        %1582 = vmatmul.mubr.f32.gmra.mrb[0].mxu0 %v1325
        %v1583 = vpop.f32.mrb[0].mxu0
        %v1584 = vadd.f32 0.0, %v1583
        %v1585 = vpop.f32.mrb[0].mxu0
        %1586 = vmatprep.mubr.f32.mxu0 0.0
        %1587 = vmatmul.mubr.f32.gmra.mrb[0].mxu0 %v1328
        %v1588 = vpop.f32.mrb[0].mxu0
        %v1589 = vadd.f32 0.0, %v1588
        %v1590 = vpop.f32.mrb[0].mxu0
        %1591 = vmatprep.mubr.f32.mxu0 0.0
        %1592 = vmatmul.mubr.f32.gmra.mrb[0].mxu0 %v1331
        %v1593 = vpop.f32.mrb[0].mxu0
        %v1594 = vadd.f32 0.0, %v1593
        %v1595 = vpop.f32.mrb[0].mxu0
        %1596 = vmatprep.mubr.f32.mxu0 0.0
        %1597 = vmatmul.mubr.f32.gmra.mrb[0].mxu0 %v1334
        %v1598 = vpop.f32.mrb[0].mxu0
        %v1599 = vadd.f32 0.0, %v1598
        %v1600 = vpop.f32.mrb[0].mxu0
        %1601 = vmatprep.mubr.f32.mxu0 0.0
        %1602 = vmatmul.mubr.f32.gmra.mrb[0].mxu0 %v1337
        %v1603 = vpop.f32.mrb[0].mxu0
        %v1604 = vadd.f32 0.0, %v1603
        %v1605 = vpop.f32.mrb[0].mxu0
        %1606 = vmatprep.mubr.f32.mxu0 0.0
        %1607 = vmatmul.mubr.f32.gmra.mrb[0].mxu0 %v1340
        %v1608 = vpop.f32.mrb[0].mxu0
        %v1609 = vadd.f32 0.0, %v1608
        %v1610 = vpop.f32.mrb[0].mxu0
        %1611 = vmatprep.mubr.f32.mxu0 0.0
        %1612 = vmatmul.mubr.f32.gmra.mrb[0].mxu0 %v1343
        %v1613 = vpop.f32.mrb[0].mxu0
        %v1614 = vadd.f32 0.0, %v1613
        %v1615 = vpop.f32.mrb[0].mxu0
        %1616 = vmatprep.mubr.f32.mxu0 0.0
        %1617 = vmatmul.mubr.f32.gmra.mrb[0].mxu0 %v1346
        %v1618 = vpop.f32.mrb[0].mxu0
        %v1619 = vadd.f32 0.0, %v1618
        %v1620 = vpop.f32.mrb[0].mxu0
        %1621 = vmatprep.mubr.f32.mxu0 0.0
        %1622 = vmatmul.mubr.f32.gmra.mrb[0].mxu0 %v1349
        %v1623 = vpop.f32.mrb[0].mxu0
        %v1624 = vadd.f32 0.0, %v1623
        %v1625 = vpop.f32.mrb[0].mxu0
        %1626 = vmatprep.mubr.f32.mxu0 0.0
        %1627 = vmatmul.mubr.f32.gmra.mrb[0].mxu0 %v1352
        %v1628 = vpop.f32.mrb[0].mxu0
        %v1629 = vadd.f32 0.0, %v1628
        %v1630 = vpop.f32.mrb[0].mxu0
        %1631 = vmatprep.mubr.f32.mxu0 0.0
        %1632 = vmatmul.mubr.f32.gmra.mrb[0].mxu0 %v1355
        %v1633 = vpop.f32.mrb[0].mxu0
        %v1634 = vadd.f32 0.0, %v1633
        %v1635 = vpop.f32.mrb[0].mxu0
        %1636 = vmatprep.mubr.f32.mxu0 0.0
        %1637 = vmatmul.mubr.f32.gmra.mrb[0].mxu0 %v1358
        %v1638 = vpop.f32.mrb[0].mxu0
        %v1639 = vadd.f32 0.0, %v1638
        %v1640 = vpop.f32.mrb[0].mxu0
        %1641 = vmatprep.mubr.f32.mxu0 0.0
        %1642 = vmatmul.mubr.f32.gmra.mrb[0].mxu0 %v1361
        %v1643 = vpop.f32.mrb[0].mxu0
        %v1644 = vadd.f32 0.0, %v1643
        %v1645 = vpop.f32.mrb[0].mxu0
        %1646 = vmatprep.mubr.f32.mxu0 0.0
        %1647 = vmatmul.mubr.f32.gmra.mrb[0].mxu0 %v1364
        %v1648 = vpop.f32.mrb[0].mxu0
        %v1649 = vadd.f32 0.0, %v1648
        %v1650 = vpop.f32.mrb[0].mxu0
        %1651 = vmatprep.mubr.f32.mxu0 0.0
        %1652 = vmatmul.mubr.f32.gmra.mrb[0].mxu0 %v1367
        %v1653 = vpop.f32.mrb[0].mxu0
        %v1654 = vadd.f32 0.0, %v1653
        %v1655 = vpop.f32.mrb[0].mxu0
        %1656 = vmatprep.mubr.f32.mxu0 0.0
        %1657 = vmatmul.mubr.f32.gmra.mrb[0].mxu0 %v1370
        %v1658 = vpop.f32.mrb[0].mxu0
        %v1659 = vadd.f32 0.0, %v1658
        %v1660 = vpop.f32.mrb[0].mxu0
        %1661 = vmatprep.mubr.f32.mxu0 0.0
        %1662 = vmatmul.mubr.f32.gmra.mrb[0].mxu0 %v1373
        %v1663 = vpop.f32.mrb[0].mxu0
        %v1664 = vadd.f32 0.0, %v1663
        %v1665 = vpop.f32.mrb[0].mxu0
        %1666 = vmatprep.mubr.f32.mxu0 0.0
        %1667 = vmatmul.mubr.f32.gmra.mrb[0].mxu0 %v1376
        %v1668 = vpop.f32.mrb[0].mxu0
        %v1669 = vadd.f32 0.0, %v1668
        %v1670 = vpop.f32.mrb[0].mxu0
        %1671 = vmatprep.mubr.f32.mxu0 0.0
        %1672 = vmatmul.mubr.f32.gmra.mrb[0].mxu0 %v1379
        %v1673 = vpop.f32.mrb[0].mxu0
        %v1674 = vadd.f32 0.0, %v1673
        %v1675 = vpop.f32.mrb[0].mxu0
        %1676 = vmatprep.mubr.f32.mxu0 0.0
        %1677 = vmatmul.mubr.f32.gmra.mrb[0].mxu0 %v1382
        %v1678 = vpop.f32.mrb[0].mxu0
        %v1679 = vadd.f32 0.0, %v1678
        %v1680 = vpop.f32.mrb[0].mxu0
        %1681 = vmatprep.mubr.f32.mxu0 0.0
        %1682 = vmatmul.mubr.f32.gmra.mrb[0].mxu0 %v1385
        %v1683 = vpop.f32.mrb[0].mxu0
        %v1684 = vadd.f32 0.0, %v1683
        %v1685 = vpop.f32.mrb[0].mxu0
        %1686 = vmatprep.mubr.f32.mxu0 0.0
        %1687 = vmatmul.mubr.f32.gmra.mrb[0].mxu0 %v1388
        %v1688 = vpop.f32.mrb[0].mxu0
        %v1689 = vadd.f32 0.0, %v1688
        %v1690 = vpop.f32.mrb[0].mxu0
        %1691 = vmatprep.mubr.f32.mxu0 0.0
        %1692 = vmatmul.mubr.f32.gmra.mrb[0].mxu0 %v1391
        %v1693 = vpop.f32.mrb[0].mxu0
        %v1694 = vadd.f32 0.0, %v1693
        %v1695 = vpop.f32.mrb[0].mxu0
        %1696 = vmatprep.mubr.f32.mxu0 0.0
        %1697 = vmatmul.mubr.f32.gmra.mrb[0].mxu0 %v1394
        %v1698 = vpop.f32.mrb[0].mxu0
        %v1699 = vadd.f32 0.0, %v1698
        %v1700 = vpop.f32.mrb[0].mxu0
        %1701 = vmatprep.mubr.f32.mxu0 0.0
        %1702 = vmatmul.mubr.f32.gmra.mrb[0].mxu0 %v1397
        %v1703 = vpop.f32.mrb[0].mxu0
        %v1704 = vadd.f32 0.0, %v1703
        %v1705 = vpop.f32.mrb[0].mxu0
        %1706 = vdwg.mxu0
        %v1707 = vadd.f32 %v967, %v1469
        %v1708 = vadd.f32 %v972, %v1474
        %v1709 = vadd.f32 %v977, %v1479
        %v1710 = vadd.f32 %v982, %v1484
        %v1711 = vadd.f32 %v987, %v1489
        %v1712 = vadd.f32 %v992, %v1494
        %v1713 = vadd.f32 %v997, %v1499
        %v1714 = vadd.f32 %v1002, %v1504
        %v1715 = vadd.f32 %v1007, %v1509
        %v1716 = vadd.f32 %v1012, %v1514
        %v1717 = vadd.f32 %v1017, %v1519
        %v1718 = vadd.f32 %v1022, %v1524
        %v1719 = vadd.f32 %v1027, %v1529
        %v1720 = vadd.f32 %v1032, %v1534
        %v1721 = vadd.f32 %v1037, %v1539
        %v1722 = vadd.f32 %v1042, %v1544
        %v1723 = vadd.f32 %v1047, %v1549
        %v1724 = vadd.f32 %v1052, %v1554
        %v1725 = vadd.f32 %v1057, %v1559
        %v1726 = vadd.f32 %v1062, %v1564
        %v1727 = vadd.f32 %v1067, %v1569
        %v1728 = vadd.f32 %v1072, %v1574
        %v1729 = vadd.f32 %v1077, %v1579
        %v1730 = vadd.f32 %v1082, %v1584
        %v1731 = vadd.f32 %v1087, %v1589
        %v1732 = vadd.f32 %v1092, %v1594
        %v1733 = vadd.f32 %v1097, %v1599
        %v1734 = vadd.f32 %v1102, %v1604
        %v1735 = vadd.f32 %v1107, %v1609
        %v1736 = vadd.f32 %v1112, %v1614
        %v1737 = vadd.f32 %v1117, %v1619
        %v1738 = vadd.f32 %v1122, %v1624
        %v1739 = vadd.f32 %v1127, %v1629
        %v1740 = vadd.f32 %v1132, %v1634
        %v1741 = vadd.f32 %v1137, %v1639
        %v1742 = vadd.f32 %v1142, %v1644
        %v1743 = vadd.f32 %v1147, %v1649
        %v1744 = vadd.f32 %v1152, %v1654
        %v1745 = vadd.f32 %v1157, %v1659
        %v1746 = vadd.f32 %v1162, %v1664
        %v1747 = vadd.f32 %v1167, %v1669
        %v1748 = vadd.f32 %v1172, %v1674
        %v1749 = vadd.f32 %v1177, %v1679
        %v1750 = vadd.f32 %v1182, %v1684
        %v1751 = vadd.f32 %v1187, %v1689
        %v1752 = vadd.f32 %v1192, %v1694
        %v1753 = vadd.f32 %v1197, %v1699
        %v1754 = vadd.f32 %v1202, %v1704
        %v1755 = vld [vmem:[%s195 + $0x18] sm:$0xff]
        %v1756 = vld [vmem:[%s195 + $0x20] sm:$0xff]
        %v1757 = vld [vmem:[%s195 + $0x28] sm:$0xff]
        %v1758 = vld [vmem:[%s195 + $0x30] sm:$0xff]
        %v1759 = vld [vmem:[%s195 + $0x38] sm:$0xff]
        %v1760 = vld [vmem:[%s195 + $0x40] sm:$0xff]
        %v1761 = vld [vmem:[%s195 + $0x48] sm:$0xff]
        %v1762 = vld [vmem:[%s195 + $0x50] sm:$0xff]
        %v1763 = vld [vmem:[%s195 + $0x58] sm:$0xff]
        %v1764 = vld [vmem:[%s195 + $0x60] sm:$0xff]
        %v1765 = vld [vmem:[%s195 + $0x68] sm:$0xff]
        %v1766 = vld [vmem:[%s195 + $0x70] sm:$0xff]
        %v1767 = vld [vmem:[%s195 + $0x78] sm:$0xff]
        %v1768 = vld [vmem:[%s195 + $0x80] sm:$0xff]
        %v1769 = vld [vmem:[%s195 + $0x88] sm:$0xff]
        %v1770 = vld [vmem:[%s195 + $0x90] sm:$0xff]
        %v1771 = vld [vmem:[%s195 + $0x98] sm:$0xff]
        %v1772 = vld [vmem:[%s195 + $0xa0] sm:$0xff]
        %v1773 = vld [vmem:[%s195 + $0xa8] sm:$0xff]
        %v1774 = vld [vmem:[%s195 + $0xb0] sm:$0xff]
        %v1775 = vld [vmem:[%s195 + $0xb8] sm:$0xff]
        %v1776 = vld [vmem:[%s195 + $0xc0] sm:$0xff]
        %v1777 = vld [vmem:[%s195 + $0xc8] sm:$0xff]
        %v1778 = vld [vmem:[%s195 + $0xd0] sm:$0xff]
        %v1779 = vld [vmem:[%s195 + $0xd8] sm:$0xff]
        %v1780 = vld [vmem:[%s195 + $0xe0] sm:$0xff]
        %v1781 = vld [vmem:[%s195 + $0xe8] sm:$0xff]
        %v1782 = vld [vmem:[%s195 + $0xf0] sm:$0xff]
        %v1783 = vld [vmem:[%s195 + $0xf8] sm:$0xff]
        %v1784 = vld [vmem:[%s195 + $0x100] sm:$0xff]
        %v1785 = vld [vmem:[%s195 + $0x108] sm:$0xff]
        %v1786 = vld [vmem:[%s195 + $0x110] sm:$0xff]
        %v1787 = vld [vmem:[%s195 + $0x118] sm:$0xff]
        %v1788 = vld [vmem:[%s195 + $0x120] sm:$0xff]
        %v1789 = vld [vmem:[%s195 + $0x128] sm:$0xff]
        %v1790 = vld [vmem:[%s195 + $0x130] sm:$0xff]
        %v1791 = vld [vmem:[%s195 + $0x138] sm:$0xff]
        %v1792 = vld [vmem:[%s195 + $0x140] sm:$0xff]
        %v1793 = vld [vmem:[%s195 + $0x148] sm:$0xff]
        %v1794 = vld [vmem:[%s195 + $0x150] sm:$0xff]
        %v1795 = vld [vmem:[%s195 + $0x158] sm:$0xff]
        %v1796 = vld [vmem:[%s195 + $0x160] sm:$0xff]
        %v1797 = vld [vmem:[%s195 + $0x168] sm:$0xff]
        %v1798 = vld [vmem:[%s195 + $0x170] sm:$0xff]
        %v1799 = vld [vmem:[%s195 + $0x178] sm:$0xff]
        %v1800 = vld [vmem:[%s195 + $0x180] sm:$0xff]
        %v1801 = vld [vmem:[%s195 + $0x188] sm:$0xff]
        %v1802 = vld [vmem:[%s195 + $0x190] sm:$0xff]
        %s1803 = scalar_lea.vmem %s199, 12
        %v1804 = vld [vmem:[%s1803] sm:$0xf]
        %v1806 = vsel %vm299, %v1755, 0
        %v1809 = vsel %vm299, %v1756, 0
        %v1812 = vsel %vm299, %v1757, 0
        %v1815 = vsel %vm299, %v1758, 0
        %v1818 = vsel %vm299, %v1759, 0
        %v1821 = vsel %vm299, %v1760, 0
        %v1824 = vsel %vm299, %v1761, 0
        %v1827 = vsel %vm299, %v1762, 0
        %v1830 = vsel %vm299, %v1763, 0
        %v1833 = vsel %vm299, %v1764, 0
        %v1836 = vsel %vm299, %v1765, 0
        %v1839 = vsel %vm299, %v1766, 0
        %v1842 = vsel %vm299, %v1767, 0
        %v1845 = vsel %vm299, %v1768, 0
        %v1848 = vsel %vm299, %v1769, 0
        %v1851 = vsel %vm299, %v1770, 0
        %v1854 = vsel %vm299, %v1771, 0
        %v1857 = vsel %vm299, %v1772, 0
        %v1860 = vsel %vm299, %v1773, 0
        %v1863 = vsel %vm299, %v1774, 0
        %v1866 = vsel %vm299, %v1775, 0
        %v1869 = vsel %vm299, %v1776, 0
        %v1872 = vsel %vm299, %v1777, 0
        %v1875 = vsel %vm299, %v1778, 0
        %v1878 = vsel %vm299, %v1779, 0
        %v1881 = vsel %vm299, %v1780, 0
        %v1884 = vsel %vm299, %v1781, 0
        %v1887 = vsel %vm299, %v1782, 0
        %v1890 = vsel %vm299, %v1783, 0
        %v1893 = vsel %vm299, %v1784, 0
        %v1896 = vsel %vm299, %v1785, 0
        %v1899 = vsel %vm299, %v1786, 0
        %v1902 = vsel %vm299, %v1787, 0
        %v1905 = vsel %vm299, %v1788, 0
        %v1908 = vsel %vm299, %v1789, 0
        %v1911 = vsel %vm299, %v1790, 0
        %v1914 = vsel %vm299, %v1791, 0
        %v1917 = vsel %vm299, %v1792, 0
        %v1920 = vsel %vm299, %v1793, 0
        %v1923 = vsel %vm299, %v1794, 0
        %v1926 = vsel %vm299, %v1795, 0
        %v1929 = vsel %vm299, %v1796, 0
        %v1932 = vsel %vm299, %v1797, 0
        %v1935 = vsel %vm299, %v1798, 0
        %v1938 = vsel %vm299, %v1799, 0
        %v1941 = vsel %vm299, %v1800, 0
        %v1944 = vsel %vm299, %v1801, 0
        %v1947 = vsel %vm299, %v1802, 0
        %v1950 = vsel %vm444, %v1804, 0
        %1952 = vmatprep.subr.mxu0 0.0
        %1953 = vmatpush1.msra.mxu0 %v1950
        %1954 = vmatprep.subr.mxu0 0.0
        %1955 = vmatpush1.msra.mxu0 0.0
        %1956 = vmatprep.subr.mxu0 0.0
        %1957 = vmatpush1.msra.mxu0 0.0
        %1958 = vmatprep.subr.mxu0 0.0
        %1959 = vmatpush1.msra.mxu0 0.0
        %1960 = vmatprep.subr.mxu0 0.0
        %1961 = vmatpush1.msra.mxu0 0.0
        %1962 = vmatprep.subr.mxu0 0.0
        %1963 = vmatpush1.msra.mxu0 0.0
        %1964 = vmatprep.subr.mxu0 0.0
        %1965 = vmatpush1.msra.mxu0 0.0
        %1966 = vmatprep.subr.mxu0 0.0
        %1967 = vmatpush1.msra.mxu0 0.0
        %1968 = vmatprep.subr.mxu0 0.0
        %1969 = vmatpush1.msra.mxu0 0.0
        %1970 = vmatprep.subr.mxu0 0.0
        %1971 = vmatpush1.msra.mxu0 0.0
        %1972 = vmatprep.subr.mxu0 0.0
        %1973 = vmatpush1.msra.mxu0 0.0
        %1974 = vmatprep.subr.mxu0 0.0
        %1975 = vmatpush1.msra.mxu0 0.0
        %1976 = vmatprep.subr.mxu0 0.0
        %1977 = vmatpush1.msra.mxu0 0.0
        %1978 = vmatprep.subr.mxu0 0.0
        %1979 = vmatpush1.msra.mxu0 0.0
        %1980 = vmatprep.subr.mxu0 0.0
        %1981 = vmatpush1.msra.mxu0 0.0
        %1982 = vmatprep.subr.mxu0 0.0
        %1983 = vmatpush1.msra.mxu0 0.0
        %1984 = vmatprep.subr.mxu0 0.0
        %1985 = vmatpush1.msra.mxu0 0.0
        %1986 = vmatprep.subr.mxu0 0.0
        %1987 = vmatpush1.msra.mxu0 0.0
        %1988 = vmatprep.subr.mxu0 0.0
        %1989 = vmatpush1.msra.mxu0 0.0
        %1990 = vmatprep.subr.mxu0 0.0
        %1991 = vmatpush1.msra.mxu0 0.0
        %1992 = vmatprep.subr.mxu0 0.0
        %1993 = vmatpush1.msra.mxu0 0.0
        %1994 = vmatprep.subr.mxu0 0.0
        %1995 = vmatpush1.msra.mxu0 0.0
        %1996 = vmatprep.subr.mxu0 0.0
        %1997 = vmatpush1.msra.mxu0 0.0
        %1998 = vmatprep.subr.mxu0 0.0
        %1999 = vmatpush1.msra.mxu0 0.0
        %2000 = vmatprep.subr.mxu0 0.0
        %2001 = vmatpush1.msra.mxu0 0.0
        %2002 = vmatprep.subr.mxu0 0.0
        %2003 = vmatpush1.msra.mxu0 0.0
        %2004 = vmatprep.subr.mxu0 0.0
        %2005 = vmatpush1.msra.mxu0 0.0
        %2006 = vmatprep.subr.mxu0 0.0
        %2007 = vmatpush1.msra.mxu0 0.0
        %2008 = vmatprep.subr.mxu0 0.0
        %2009 = vmatpush1.msra.mxu0 0.0
        %2010 = vmatprep.subr.mxu0 0.0
        %2011 = vmatpush1.msra.mxu0 0.0
        %2012 = vmatprep.subr.mxu0 0.0
        %2013 = vmatpush1.msra.mxu0 0.0
        %2014 = vmatprep.subr.mxu0 0.0
        %2015 = vmatpush1.msra.mxu0 0.0
        %2016 = vmatprep.mubr.f32.mxu0 0.0
        %2017 = vmatmul.mubr.f32.gmra.mrb[0].mxu0 %v1806
        %v2018 = vpop.f32.mrb[0].mxu0
        %v2019 = vadd.f32 0.0, %v2018
        %v2020 = vpop.f32.mrb[0].mxu0
        %2021 = vmatprep.mubr.f32.mxu0 0.0
        %2022 = vmatmul.mubr.f32.gmra.mrb[0].mxu0 %v1809
        %v2023 = vpop.f32.mrb[0].mxu0
        %v2024 = vadd.f32 0.0, %v2023
        %v2025 = vpop.f32.mrb[0].mxu0
        %2026 = vmatprep.mubr.f32.mxu0 0.0
        %2027 = vmatmul.mubr.f32.gmra.mrb[0].mxu0 %v1812
        %v2028 = vpop.f32.mrb[0].mxu0
        %v2029 = vadd.f32 0.0, %v2028
        %v2030 = vpop.f32.mrb[0].mxu0
        %2031 = vmatprep.mubr.f32.mxu0 0.0
        %2032 = vmatmul.mubr.f32.gmra.mrb[0].mxu0 %v1815
        %v2033 = vpop.f32.mrb[0].mxu0
        %v2034 = vadd.f32 0.0, %v2033
        %v2035 = vpop.f32.mrb[0].mxu0
        %2036 = vmatprep.mubr.f32.mxu0 0.0
        %2037 = vmatmul.mubr.f32.gmra.mrb[0].mxu0 %v1818
        %v2038 = vpop.f32.mrb[0].mxu0
        %v2039 = vadd.f32 0.0, %v2038
        %v2040 = vpop.f32.mrb[0].mxu0
        %2041 = vmatprep.mubr.f32.mxu0 0.0
        %2042 = vmatmul.mubr.f32.gmra.mrb[0].mxu0 %v1821
        %v2043 = vpop.f32.mrb[0].mxu0
        %v2044 = vadd.f32 0.0, %v2043
        %v2045 = vpop.f32.mrb[0].mxu0
        %2046 = vmatprep.mubr.f32.mxu0 0.0
        %2047 = vmatmul.mubr.f32.gmra.mrb[0].mxu0 %v1824
        %v2048 = vpop.f32.mrb[0].mxu0
        %v2049 = vadd.f32 0.0, %v2048
        %v2050 = vpop.f32.mrb[0].mxu0
        %2051 = vmatprep.mubr.f32.mxu0 0.0
        %2052 = vmatmul.mubr.f32.gmra.mrb[0].mxu0 %v1827
        %v2053 = vpop.f32.mrb[0].mxu0
        %v2054 = vadd.f32 0.0, %v2053
        %v2055 = vpop.f32.mrb[0].mxu0
        %2056 = vmatprep.mubr.f32.mxu0 0.0
        %2057 = vmatmul.mubr.f32.gmra.mrb[0].mxu0 %v1830
        %v2058 = vpop.f32.mrb[0].mxu0
        %v2059 = vadd.f32 0.0, %v2058
        %v2060 = vpop.f32.mrb[0].mxu0
        %2061 = vmatprep.mubr.f32.mxu0 0.0
        %2062 = vmatmul.mubr.f32.gmra.mrb[0].mxu0 %v1833
        %v2063 = vpop.f32.mrb[0].mxu0
        %v2064 = vadd.f32 0.0, %v2063
        %v2065 = vpop.f32.mrb[0].mxu0
        %2066 = vmatprep.mubr.f32.mxu0 0.0
        %2067 = vmatmul.mubr.f32.gmra.mrb[0].mxu0 %v1836
        %v2068 = vpop.f32.mrb[0].mxu0
        %v2069 = vadd.f32 0.0, %v2068
        %v2070 = vpop.f32.mrb[0].mxu0
        %2071 = vmatprep.mubr.f32.mxu0 0.0
        %2072 = vmatmul.mubr.f32.gmra.mrb[0].mxu0 %v1839
        %v2073 = vpop.f32.mrb[0].mxu0
        %v2074 = vadd.f32 0.0, %v2073
        %v2075 = vpop.f32.mrb[0].mxu0
        %2076 = vmatprep.mubr.f32.mxu0 0.0
        %2077 = vmatmul.mubr.f32.gmra.mrb[0].mxu0 %v1842
        %v2078 = vpop.f32.mrb[0].mxu0
        %v2079 = vadd.f32 0.0, %v2078
        %v2080 = vpop.f32.mrb[0].mxu0
        %2081 = vmatprep.mubr.f32.mxu0 0.0
        %2082 = vmatmul.mubr.f32.gmra.mrb[0].mxu0 %v1845
        %v2083 = vpop.f32.mrb[0].mxu0
        %v2084 = vadd.f32 0.0, %v2083
        %v2085 = vpop.f32.mrb[0].mxu0
        %2086 = vmatprep.mubr.f32.mxu0 0.0
        %2087 = vmatmul.mubr.f32.gmra.mrb[0].mxu0 %v1848
        %v2088 = vpop.f32.mrb[0].mxu0
        %v2089 = vadd.f32 0.0, %v2088
        %v2090 = vpop.f32.mrb[0].mxu0
        %2091 = vmatprep.mubr.f32.mxu0 0.0
        %2092 = vmatmul.mubr.f32.gmra.mrb[0].mxu0 %v1851
        %v2093 = vpop.f32.mrb[0].mxu0
        %v2094 = vadd.f32 0.0, %v2093
        %v2095 = vpop.f32.mrb[0].mxu0
        %2096 = vmatprep.mubr.f32.mxu0 0.0
        %2097 = vmatmul.mubr.f32.gmra.mrb[0].mxu0 %v1854
        %v2098 = vpop.f32.mrb[0].mxu0
        %v2099 = vadd.f32 0.0, %v2098
        %v2100 = vpop.f32.mrb[0].mxu0
        %2101 = vmatprep.mubr.f32.mxu0 0.0
        %2102 = vmatmul.mubr.f32.gmra.mrb[0].mxu0 %v1857
        %v2103 = vpop.f32.mrb[0].mxu0
        %v2104 = vadd.f32 0.0, %v2103
        %v2105 = vpop.f32.mrb[0].mxu0
        %2106 = vmatprep.mubr.f32.mxu0 0.0
        %2107 = vmatmul.mubr.f32.gmra.mrb[0].mxu0 %v1860
        %v2108 = vpop.f32.mrb[0].mxu0
        %v2109 = vadd.f32 0.0, %v2108
        %v2110 = vpop.f32.mrb[0].mxu0
        %2111 = vmatprep.mubr.f32.mxu0 0.0
        %2112 = vmatmul.mubr.f32.gmra.mrb[0].mxu0 %v1863
        %v2113 = vpop.f32.mrb[0].mxu0
        %v2114 = vadd.f32 0.0, %v2113
        %v2115 = vpop.f32.mrb[0].mxu0
        %2116 = vmatprep.mubr.f32.mxu0 0.0
        %2117 = vmatmul.mubr.f32.gmra.mrb[0].mxu0 %v1866
        %v2118 = vpop.f32.mrb[0].mxu0
        %v2119 = vadd.f32 0.0, %v2118
        %v2120 = vpop.f32.mrb[0].mxu0
        %2121 = vmatprep.mubr.f32.mxu0 0.0
        %2122 = vmatmul.mubr.f32.gmra.mrb[0].mxu0 %v1869
        %v2123 = vpop.f32.mrb[0].mxu0
        %v2124 = vadd.f32 0.0, %v2123
        %v2125 = vpop.f32.mrb[0].mxu0
        %2126 = vmatprep.mubr.f32.mxu0 0.0
        %2127 = vmatmul.mubr.f32.gmra.mrb[0].mxu0 %v1872
        %v2128 = vpop.f32.mrb[0].mxu0
        %v2129 = vadd.f32 0.0, %v2128
        %v2130 = vpop.f32.mrb[0].mxu0
        %2131 = vmatprep.mubr.f32.mxu0 0.0
        %2132 = vmatmul.mubr.f32.gmra.mrb[0].mxu0 %v1875
        %v2133 = vpop.f32.mrb[0].mxu0
        %v2134 = vadd.f32 0.0, %v2133
        %v2135 = vpop.f32.mrb[0].mxu0
        %2136 = vmatprep.mubr.f32.mxu0 0.0
        %2137 = vmatmul.mubr.f32.gmra.mrb[0].mxu0 %v1878
        %v2138 = vpop.f32.mrb[0].mxu0
        %v2139 = vadd.f32 0.0, %v2138
        %v2140 = vpop.f32.mrb[0].mxu0
        %2141 = vmatprep.mubr.f32.mxu0 0.0
        %2142 = vmatmul.mubr.f32.gmra.mrb[0].mxu0 %v1881
        %v2143 = vpop.f32.mrb[0].mxu0
        %v2144 = vadd.f32 0.0, %v2143
        %v2145 = vpop.f32.mrb[0].mxu0
        %2146 = vmatprep.mubr.f32.mxu0 0.0
        %2147 = vmatmul.mubr.f32.gmra.mrb[0].mxu0 %v1884
        %v2148 = vpop.f32.mrb[0].mxu0
        %v2149 = vadd.f32 0.0, %v2148
        %v2150 = vpop.f32.mrb[0].mxu0
        %2151 = vmatprep.mubr.f32.mxu0 0.0
        %2152 = vmatmul.mubr.f32.gmra.mrb[0].mxu0 %v1887
        %v2153 = vpop.f32.mrb[0].mxu0
        %v2154 = vadd.f32 0.0, %v2153
        %v2155 = vpop.f32.mrb[0].mxu0
        %2156 = vmatprep.mubr.f32.mxu0 0.0
        %2157 = vmatmul.mubr.f32.gmra.mrb[0].mxu0 %v1890
        %v2158 = vpop.f32.mrb[0].mxu0
        %v2159 = vadd.f32 0.0, %v2158
        %v2160 = vpop.f32.mrb[0].mxu0
        %2161 = vmatprep.mubr.f32.mxu0 0.0
        %2162 = vmatmul.mubr.f32.gmra.mrb[0].mxu0 %v1893
        %v2163 = vpop.f32.mrb[0].mxu0
        %v2164 = vadd.f32 0.0, %v2163
        %v2165 = vpop.f32.mrb[0].mxu0
        %2166 = vmatprep.mubr.f32.mxu0 0.0
        %2167 = vmatmul.mubr.f32.gmra.mrb[0].mxu0 %v1896
        %v2168 = vpop.f32.mrb[0].mxu0
        %v2169 = vadd.f32 0.0, %v2168
        %v2170 = vpop.f32.mrb[0].mxu0
        %2171 = vmatprep.mubr.f32.mxu0 0.0
        %2172 = vmatmul.mubr.f32.gmra.mrb[0].mxu0 %v1899
        %v2173 = vpop.f32.mrb[0].mxu0
        %v2174 = vadd.f32 0.0, %v2173
        %v2175 = vpop.f32.mrb[0].mxu0
        %2176 = vmatprep.mubr.f32.mxu0 0.0
        %2177 = vmatmul.mubr.f32.gmra.mrb[0].mxu0 %v1902
        %v2178 = vpop.f32.mrb[0].mxu0
        %v2179 = vadd.f32 0.0, %v2178
        %v2180 = vpop.f32.mrb[0].mxu0
        %2181 = vmatprep.mubr.f32.mxu0 0.0
        %2182 = vmatmul.mubr.f32.gmra.mrb[0].mxu0 %v1905
        %v2183 = vpop.f32.mrb[0].mxu0
        %v2184 = vadd.f32 0.0, %v2183
        %v2185 = vpop.f32.mrb[0].mxu0
        %2186 = vmatprep.mubr.f32.mxu0 0.0
        %2187 = vmatmul.mubr.f32.gmra.mrb[0].mxu0 %v1908
        %v2188 = vpop.f32.mrb[0].mxu0
        %v2189 = vadd.f32 0.0, %v2188
        %v2190 = vpop.f32.mrb[0].mxu0
        %2191 = vmatprep.mubr.f32.mxu0 0.0
        %2192 = vmatmul.mubr.f32.gmra.mrb[0].mxu0 %v1911
        %v2193 = vpop.f32.mrb[0].mxu0
        %v2194 = vadd.f32 0.0, %v2193
        %v2195 = vpop.f32.mrb[0].mxu0
        %2196 = vmatprep.mubr.f32.mxu0 0.0
        %2197 = vmatmul.mubr.f32.gmra.mrb[0].mxu0 %v1914
        %v2198 = vpop.f32.mrb[0].mxu0
        %v2199 = vadd.f32 0.0, %v2198
        %v2200 = vpop.f32.mrb[0].mxu0
        %2201 = vmatprep.mubr.f32.mxu0 0.0
        %2202 = vmatmul.mubr.f32.gmra.mrb[0].mxu0 %v1917
        %v2203 = vpop.f32.mrb[0].mxu0
        %v2204 = vadd.f32 0.0, %v2203
        %v2205 = vpop.f32.mrb[0].mxu0
        %2206 = vmatprep.mubr.f32.mxu0 0.0
        %2207 = vmatmul.mubr.f32.gmra.mrb[0].mxu0 %v1920
        %v2208 = vpop.f32.mrb[0].mxu0
        %v2209 = vadd.f32 0.0, %v2208
        %v2210 = vpop.f32.mrb[0].mxu0
        %2211 = vmatprep.mubr.f32.mxu0 0.0
        %2212 = vmatmul.mubr.f32.gmra.mrb[0].mxu0 %v1923
        %v2213 = vpop.f32.mrb[0].mxu0
        %v2214 = vadd.f32 0.0, %v2213
        %v2215 = vpop.f32.mrb[0].mxu0
        %2216 = vmatprep.mubr.f32.mxu0 0.0
        %2217 = vmatmul.mubr.f32.gmra.mrb[0].mxu0 %v1926
        %v2218 = vpop.f32.mrb[0].mxu0
        %v2219 = vadd.f32 0.0, %v2218
        %v2220 = vpop.f32.mrb[0].mxu0
        %2221 = vmatprep.mubr.f32.mxu0 0.0
        %2222 = vmatmul.mubr.f32.gmra.mrb[0].mxu0 %v1929
        %v2223 = vpop.f32.mrb[0].mxu0
        %v2224 = vadd.f32 0.0, %v2223
        %v2225 = vpop.f32.mrb[0].mxu0
        %2226 = vmatprep.mubr.f32.mxu0 0.0
        %2227 = vmatmul.mubr.f32.gmra.mrb[0].mxu0 %v1932
        %v2228 = vpop.f32.mrb[0].mxu0
        %v2229 = vadd.f32 0.0, %v2228
        %v2230 = vpop.f32.mrb[0].mxu0
        %2231 = vmatprep.mubr.f32.mxu0 0.0
        %2232 = vmatmul.mubr.f32.gmra.mrb[0].mxu0 %v1935
        %v2233 = vpop.f32.mrb[0].mxu0
        %v2234 = vadd.f32 0.0, %v2233
        %v2235 = vpop.f32.mrb[0].mxu0
        %2236 = vmatprep.mubr.f32.mxu0 0.0
        %2237 = vmatmul.mubr.f32.gmra.mrb[0].mxu0 %v1938
        %v2238 = vpop.f32.mrb[0].mxu0
        %v2239 = vadd.f32 0.0, %v2238
        %v2240 = vpop.f32.mrb[0].mxu0
        %2241 = vmatprep.mubr.f32.mxu0 0.0
        %2242 = vmatmul.mubr.f32.gmra.mrb[0].mxu0 %v1941
        %v2243 = vpop.f32.mrb[0].mxu0
        %v2244 = vadd.f32 0.0, %v2243
        %v2245 = vpop.f32.mrb[0].mxu0
        %2246 = vmatprep.mubr.f32.mxu0 0.0
        %2247 = vmatmul.mubr.f32.gmra.mrb[0].mxu0 %v1944
        %v2248 = vpop.f32.mrb[0].mxu0
        %v2249 = vadd.f32 0.0, %v2248
        %v2250 = vpop.f32.mrb[0].mxu0
        %2251 = vmatprep.mubr.f32.mxu0 0.0
        %2252 = vmatmul.mubr.f32.gmra.mrb[0].mxu0 %v1947
        %v2253 = vpop.f32.mrb[0].mxu0
        %v2254 = vadd.f32 0.0, %v2253
        %v2255 = vpop.f32.mrb[0].mxu0
        %2256 = vdwg.mxu0
        %v2257 = vadd.f32 %v1707, %v2019
        %v2258 = vadd.f32 %v1708, %v2024
        %v2259 = vadd.f32 %v1709, %v2029
        %v2260 = vadd.f32 %v1710, %v2034
        %v2261 = vadd.f32 %v1711, %v2039
        %v2262 = vadd.f32 %v1712, %v2044
        %v2263 = vadd.f32 %v1713, %v2049
        %v2264 = vadd.f32 %v1714, %v2054
        %v2265 = vadd.f32 %v1715, %v2059
        %v2266 = vadd.f32 %v1716, %v2064
        %v2267 = vadd.f32 %v1717, %v2069
        %v2268 = vadd.f32 %v1718, %v2074
        %v2269 = vadd.f32 %v1719, %v2079
        %v2270 = vadd.f32 %v1720, %v2084
        %v2271 = vadd.f32 %v1721, %v2089
        %v2272 = vadd.f32 %v1722, %v2094
        %v2273 = vadd.f32 %v1723, %v2099
        %v2274 = vadd.f32 %v1724, %v2104
        %v2275 = vadd.f32 %v1725, %v2109
        %v2276 = vadd.f32 %v1726, %v2114
        %v2277 = vadd.f32 %v1727, %v2119
        %v2278 = vadd.f32 %v1728, %v2124
        %v2279 = vadd.f32 %v1729, %v2129
        %v2280 = vadd.f32 %v1730, %v2134
        %v2281 = vadd.f32 %v1731, %v2139
        %v2282 = vadd.f32 %v1732, %v2144
        %v2283 = vadd.f32 %v1733, %v2149
        %v2284 = vadd.f32 %v1734, %v2154
        %v2285 = vadd.f32 %v1735, %v2159
        %v2286 = vadd.f32 %v1736, %v2164
        %v2287 = vadd.f32 %v1737, %v2169
        %v2288 = vadd.f32 %v1738, %v2174
        %v2289 = vadd.f32 %v1739, %v2179
        %v2290 = vadd.f32 %v1740, %v2184
        %v2291 = vadd.f32 %v1741, %v2189
        %v2292 = vadd.f32 %v1742, %v2194
        %v2293 = vadd.f32 %v1743, %v2199
        %v2294 = vadd.f32 %v1744, %v2204
        %v2295 = vadd.f32 %v1745, %v2209
        %v2296 = vadd.f32 %v1746, %v2214
        %v2297 = vadd.f32 %v1747, %v2219
        %v2298 = vadd.f32 %v1748, %v2224
        %v2299 = vadd.f32 %v1749, %v2229
        %v2300 = vadd.f32 %v1750, %v2234
        %v2301 = vadd.f32 %v1751, %v2239
        %v2302 = vadd.f32 %v1752, %v2244
        %v2303 = vadd.f32 %v1753, %v2249
        %v2304 = vadd.f32 %v1754, %v2254
        %v2305 = vld [vmem:[%s195 + $0x19] sm:$0xff]
        %v2306 = vld [vmem:[%s195 + $0x21] sm:$0xff]
        %v2307 = vld [vmem:[%s195 + $0x29] sm:$0xff]
        %v2308 = vld [vmem:[%s195 + $0x31] sm:$0xff]
        %v2309 = vld [vmem:[%s195 + $0x39] sm:$0xff]
        %v2310 = vld [vmem:[%s195 + $0x41] sm:$0xff]
        %v2311 = vld [vmem:[%s195 + $0x49] sm:$0xff]
        %v2312 = vld [vmem:[%s195 + $0x51] sm:$0xff]
        %v2313 = vld [vmem:[%s195 + $0x59] sm:$0xff]
        %v2314 = vld [vmem:[%s195 + $0x61] sm:$0xff]
        %v2315 = vld [vmem:[%s195 + $0x69] sm:$0xff]
        %v2316 = vld [vmem:[%s195 + $0x71] sm:$0xff]
        %v2317 = vld [vmem:[%s195 + $0x79] sm:$0xff]
        %v2318 = vld [vmem:[%s195 + $0x81] sm:$0xff]
        %v2319 = vld [vmem:[%s195 + $0x89] sm:$0xff]
        %v2320 = vld [vmem:[%s195 + $0x91] sm:$0xff]
        %v2321 = vld [vmem:[%s195 + $0x99] sm:$0xff]
        %v2322 = vld [vmem:[%s195 + $0xa1] sm:$0xff]
        %v2323 = vld [vmem:[%s195 + $0xa9] sm:$0xff]
        %v2324 = vld [vmem:[%s195 + $0xb1] sm:$0xff]
        %v2325 = vld [vmem:[%s195 + $0xb9] sm:$0xff]
        %v2326 = vld [vmem:[%s195 + $0xc1] sm:$0xff]
        %v2327 = vld [vmem:[%s195 + $0xc9] sm:$0xff]
        %v2328 = vld [vmem:[%s195 + $0xd1] sm:$0xff]
        %v2329 = vld [vmem:[%s195 + $0xd9] sm:$0xff]
        %v2330 = vld [vmem:[%s195 + $0xe1] sm:$0xff]
        %v2331 = vld [vmem:[%s195 + $0xe9] sm:$0xff]
        %v2332 = vld [vmem:[%s195 + $0xf1] sm:$0xff]
        %v2333 = vld [vmem:[%s195 + $0xf9] sm:$0xff]
        %v2334 = vld [vmem:[%s195 + $0x101] sm:$0xff]
        %v2335 = vld [vmem:[%s195 + $0x109] sm:$0xff]
        %v2336 = vld [vmem:[%s195 + $0x111] sm:$0xff]
        %v2337 = vld [vmem:[%s195 + $0x119] sm:$0xff]
        %v2338 = vld [vmem:[%s195 + $0x121] sm:$0xff]
        %v2339 = vld [vmem:[%s195 + $0x129] sm:$0xff]
        %v2340 = vld [vmem:[%s195 + $0x131] sm:$0xff]
        %v2341 = vld [vmem:[%s195 + $0x139] sm:$0xff]
        %v2342 = vld [vmem:[%s195 + $0x141] sm:$0xff]
        %v2343 = vld [vmem:[%s195 + $0x149] sm:$0xff]
        %v2344 = vld [vmem:[%s195 + $0x151] sm:$0xff]
        %v2345 = vld [vmem:[%s195 + $0x159] sm:$0xff]
        %v2346 = vld [vmem:[%s195 + $0x161] sm:$0xff]
        %v2347 = vld [vmem:[%s195 + $0x169] sm:$0xff]
        %v2348 = vld [vmem:[%s195 + $0x171] sm:$0xff]
        %v2349 = vld [vmem:[%s195 + $0x179] sm:$0xff]
        %v2350 = vld [vmem:[%s195 + $0x181] sm:$0xff]
        %v2351 = vld [vmem:[%s195 + $0x189] sm:$0xff]
        %v2352 = vld [vmem:[%s195 + $0x191] sm:$0xff]
        %s2353 = scalar_lea.vmem %s199, 16
        %v2354 = vld [vmem:[%s2353] sm:$0xf]
        %v2356 = vsel %vm299, %v2305, 0
        %v2359 = vsel %vm299, %v2306, 0
        %v2362 = vsel %vm299, %v2307, 0
        %v2365 = vsel %vm299, %v2308, 0
        %v2368 = vsel %vm299, %v2309, 0
        %v2371 = vsel %vm299, %v2310, 0
        %v2374 = vsel %vm299, %v2311, 0
        %v2377 = vsel %vm299, %v2312, 0
        %v2380 = vsel %vm299, %v2313, 0
        %v2383 = vsel %vm299, %v2314, 0
        %v2386 = vsel %vm299, %v2315, 0
        %v2389 = vsel %vm299, %v2316, 0
        %v2392 = vsel %vm299, %v2317, 0
        %v2395 = vsel %vm299, %v2318, 0
        %v2398 = vsel %vm299, %v2319, 0
        %v2401 = vsel %vm299, %v2320, 0
        %v2404 = vsel %vm299, %v2321, 0
        %v2407 = vsel %vm299, %v2322, 0
        %v2410 = vsel %vm299, %v2323, 0
        %v2413 = vsel %vm299, %v2324, 0
        %v2416 = vsel %vm299, %v2325, 0
        %v2419 = vsel %vm299, %v2326, 0
        %v2422 = vsel %vm299, %v2327, 0
        %v2425 = vsel %vm299, %v2328, 0
        %v2428 = vsel %vm299, %v2329, 0
        %v2431 = vsel %vm299, %v2330, 0
        %v2434 = vsel %vm299, %v2331, 0
        %v2437 = vsel %vm299, %v2332, 0
        %v2440 = vsel %vm299, %v2333, 0
        %v2443 = vsel %vm299, %v2334, 0
        %v2446 = vsel %vm299, %v2335, 0
        %v2449 = vsel %vm299, %v2336, 0
        %v2452 = vsel %vm299, %v2337, 0
        %v2455 = vsel %vm299, %v2338, 0
        %v2458 = vsel %vm299, %v2339, 0
        %v2461 = vsel %vm299, %v2340, 0
        %v2464 = vsel %vm299, %v2341, 0
        %v2467 = vsel %vm299, %v2342, 0
        %v2470 = vsel %vm299, %v2343, 0
        %v2473 = vsel %vm299, %v2344, 0
        %v2476 = vsel %vm299, %v2345, 0
        %v2479 = vsel %vm299, %v2346, 0
        %v2482 = vsel %vm299, %v2347, 0
        %v2485 = vsel %vm299, %v2348, 0
        %v2488 = vsel %vm299, %v2349, 0
        %v2491 = vsel %vm299, %v2350, 0
        %v2494 = vsel %vm299, %v2351, 0
        %v2497 = vsel %vm299, %v2352, 0
        %v2500 = vsel %vm444, %v2354, 0
        %2502 = vmatprep.subr.mxu0 0.0
        %2503 = vmatpush1.msra.mxu0 %v2500
        %2504 = vmatprep.subr.mxu0 0.0
        %2505 = vmatpush1.msra.mxu0 0.0
        %2506 = vmatprep.subr.mxu0 0.0
        %2507 = vmatpush1.msra.mxu0 0.0
        %2508 = vmatprep.subr.mxu0 0.0
        %2509 = vmatpush1.msra.mxu0 0.0
        %2510 = vmatprep.subr.mxu0 0.0
        %2511 = vmatpush1.msra.mxu0 0.0
        %2512 = vmatprep.subr.mxu0 0.0
        %2513 = vmatpush1.msra.mxu0 0.0
        %2514 = vmatprep.subr.mxu0 0.0
        %2515 = vmatpush1.msra.mxu0 0.0
        %2516 = vmatprep.subr.mxu0 0.0
        %2517 = vmatpush1.msra.mxu0 0.0
        %2518 = vmatprep.subr.mxu0 0.0
        %2519 = vmatpush1.msra.mxu0 0.0
        %2520 = vmatprep.subr.mxu0 0.0
        %2521 = vmatpush1.msra.mxu0 0.0
        %2522 = vmatprep.subr.mxu0 0.0
        %2523 = vmatpush1.msra.mxu0 0.0
        %2524 = vmatprep.subr.mxu0 0.0
        %2525 = vmatpush1.msra.mxu0 0.0
        %2526 = vmatprep.subr.mxu0 0.0
        %2527 = vmatpush1.msra.mxu0 0.0
        %2528 = vmatprep.subr.mxu0 0.0
        %2529 = vmatpush1.msra.mxu0 0.0
        %2530 = vmatprep.subr.mxu0 0.0
        %2531 = vmatpush1.msra.mxu0 0.0
        %2532 = vmatprep.subr.mxu0 0.0
        %2533 = vmatpush1.msra.mxu0 0.0
        %2534 = vmatprep.subr.mxu0 0.0
        %2535 = vmatpush1.msra.mxu0 0.0
        %2536 = vmatprep.subr.mxu0 0.0
        %2537 = vmatpush1.msra.mxu0 0.0
        %2538 = vmatprep.subr.mxu0 0.0
        %2539 = vmatpush1.msra.mxu0 0.0
        %2540 = vmatprep.subr.mxu0 0.0
        %2541 = vmatpush1.msra.mxu0 0.0
        %2542 = vmatprep.subr.mxu0 0.0
        %2543 = vmatpush1.msra.mxu0 0.0
        %2544 = vmatprep.subr.mxu0 0.0
        %2545 = vmatpush1.msra.mxu0 0.0
        %2546 = vmatprep.subr.mxu0 0.0
        %2547 = vmatpush1.msra.mxu0 0.0
        %2548 = vmatprep.subr.mxu0 0.0
        %2549 = vmatpush1.msra.mxu0 0.0
        %2550 = vmatprep.subr.mxu0 0.0
        %2551 = vmatpush1.msra.mxu0 0.0
        %2552 = vmatprep.subr.mxu0 0.0
        %2553 = vmatpush1.msra.mxu0 0.0
        %2554 = vmatprep.subr.mxu0 0.0
        %2555 = vmatpush1.msra.mxu0 0.0
        %2556 = vmatprep.subr.mxu0 0.0
        %2557 = vmatpush1.msra.mxu0 0.0
        %2558 = vmatprep.subr.mxu0 0.0
        %2559 = vmatpush1.msra.mxu0 0.0
        %2560 = vmatprep.subr.mxu0 0.0
        %2561 = vmatpush1.msra.mxu0 0.0
        %2562 = vmatprep.subr.mxu0 0.0
        %2563 = vmatpush1.msra.mxu0 0.0
        %2564 = vmatprep.subr.mxu0 0.0
        %2565 = vmatpush1.msra.mxu0 0.0
        %2566 = vmatprep.mubr.f32.mxu0 0.0
        %2567 = vmatmul.mubr.f32.gmra.mrb[0].mxu0 %v2356
        %v2568 = vpop.f32.mrb[0].mxu0
        %v2569 = vadd.f32 0.0, %v2568
        %v2570 = vpop.f32.mrb[0].mxu0
        %2571 = vmatprep.mubr.f32.mxu0 0.0
        %2572 = vmatmul.mubr.f32.gmra.mrb[0].mxu0 %v2359
        %v2573 = vpop.f32.mrb[0].mxu0
        %v2574 = vadd.f32 0.0, %v2573
        %v2575 = vpop.f32.mrb[0].mxu0
        %2576 = vmatprep.mubr.f32.mxu0 0.0
        %2577 = vmatmul.mubr.f32.gmra.mrb[0].mxu0 %v2362
        %v2578 = vpop.f32.mrb[0].mxu0
        %v2579 = vadd.f32 0.0, %v2578
        %v2580 = vpop.f32.mrb[0].mxu0
        %2581 = vmatprep.mubr.f32.mxu0 0.0
        %2582 = vmatmul.mubr.f32.gmra.mrb[0].mxu0 %v2365
        %v2583 = vpop.f32.mrb[0].mxu0
        %v2584 = vadd.f32 0.0, %v2583
        %v2585 = vpop.f32.mrb[0].mxu0
        %2586 = vmatprep.mubr.f32.mxu0 0.0
        %2587 = vmatmul.mubr.f32.gmra.mrb[0].mxu0 %v2368
        %v2588 = vpop.f32.mrb[0].mxu0
        %v2589 = vadd.f32 0.0, %v2588
        %v2590 = vpop.f32.mrb[0].mxu0
        %2591 = vmatprep.mubr.f32.mxu0 0.0
        %2592 = vmatmul.mubr.f32.gmra.mrb[0].mxu0 %v2371
        %v2593 = vpop.f32.mrb[0].mxu0
        %v2594 = vadd.f32 0.0, %v2593
        %v2595 = vpop.f32.mrb[0].mxu0
        %2596 = vmatprep.mubr.f32.mxu0 0.0
        %2597 = vmatmul.mubr.f32.gmra.mrb[0].mxu0 %v2374
        %v2598 = vpop.f32.mrb[0].mxu0
        %v2599 = vadd.f32 0.0, %v2598
        %v2600 = vpop.f32.mrb[0].mxu0
        %2601 = vmatprep.mubr.f32.mxu0 0.0
        %2602 = vmatmul.mubr.f32.gmra.mrb[0].mxu0 %v2377
        %v2603 = vpop.f32.mrb[0].mxu0
        %v2604 = vadd.f32 0.0, %v2603
        %v2605 = vpop.f32.mrb[0].mxu0
        %2606 = vmatprep.mubr.f32.mxu0 0.0
        %2607 = vmatmul.mubr.f32.gmra.mrb[0].mxu0 %v2380
        %v2608 = vpop.f32.mrb[0].mxu0
        %v2609 = vadd.f32 0.0, %v2608
        %v2610 = vpop.f32.mrb[0].mxu0
        %2611 = vmatprep.mubr.f32.mxu0 0.0
        %2612 = vmatmul.mubr.f32.gmra.mrb[0].mxu0 %v2383
        %v2613 = vpop.f32.mrb[0].mxu0
        %v2614 = vadd.f32 0.0, %v2613
        %v2615 = vpop.f32.mrb[0].mxu0
        %2616 = vmatprep.mubr.f32.mxu0 0.0
        %2617 = vmatmul.mubr.f32.gmra.mrb[0].mxu0 %v2386
        %v2618 = vpop.f32.mrb[0].mxu0
        %v2619 = vadd.f32 0.0, %v2618
        %v2620 = vpop.f32.mrb[0].mxu0
        %2621 = vmatprep.mubr.f32.mxu0 0.0
        %2622 = vmatmul.mubr.f32.gmra.mrb[0].mxu0 %v2389
        %v2623 = vpop.f32.mrb[0].mxu0
        %v2624 = vadd.f32 0.0, %v2623
        %v2625 = vpop.f32.mrb[0].mxu0
        %2626 = vmatprep.mubr.f32.mxu0 0.0
        %2627 = vmatmul.mubr.f32.gmra.mrb[0].mxu0 %v2392
        %v2628 = vpop.f32.mrb[0].mxu0
        %v2629 = vadd.f32 0.0, %v2628
        %v2630 = vpop.f32.mrb[0].mxu0
        %2631 = vmatprep.mubr.f32.mxu0 0.0
        %2632 = vmatmul.mubr.f32.gmra.mrb[0].mxu0 %v2395
        %v2633 = vpop.f32.mrb[0].mxu0
        %v2634 = vadd.f32 0.0, %v2633
        %v2635 = vpop.f32.mrb[0].mxu0
        %2636 = vmatprep.mubr.f32.mxu0 0.0
        %2637 = vmatmul.mubr.f32.gmra.mrb[0].mxu0 %v2398
        %v2638 = vpop.f32.mrb[0].mxu0
        %v2639 = vadd.f32 0.0, %v2638
        %v2640 = vpop.f32.mrb[0].mxu0
        %2641 = vmatprep.mubr.f32.mxu0 0.0
        %2642 = vmatmul.mubr.f32.gmra.mrb[0].mxu0 %v2401
        %v2643 = vpop.f32.mrb[0].mxu0
        %v2644 = vadd.f32 0.0, %v2643
        %v2645 = vpop.f32.mrb[0].mxu0
        %2646 = vmatprep.mubr.f32.mxu0 0.0
        %2647 = vmatmul.mubr.f32.gmra.mrb[0].mxu0 %v2404
        %v2648 = vpop.f32.mrb[0].mxu0
        %v2649 = vadd.f32 0.0, %v2648
        %v2650 = vpop.f32.mrb[0].mxu0
        %2651 = vmatprep.mubr.f32.mxu0 0.0
        %2652 = vmatmul.mubr.f32.gmra.mrb[0].mxu0 %v2407
        %v2653 = vpop.f32.mrb[0].mxu0
        %v2654 = vadd.f32 0.0, %v2653
        %v2655 = vpop.f32.mrb[0].mxu0
        %2656 = vmatprep.mubr.f32.mxu0 0.0
        %2657 = vmatmul.mubr.f32.gmra.mrb[0].mxu0 %v2410
        %v2658 = vpop.f32.mrb[0].mxu0
        %v2659 = vadd.f32 0.0, %v2658
        %v2660 = vpop.f32.mrb[0].mxu0
        %2661 = vmatprep.mubr.f32.mxu0 0.0
        %2662 = vmatmul.mubr.f32.gmra.mrb[0].mxu0 %v2413
        %v2663 = vpop.f32.mrb[0].mxu0
        %v2664 = vadd.f32 0.0, %v2663
        %v2665 = vpop.f32.mrb[0].mxu0
        %2666 = vmatprep.mubr.f32.mxu0 0.0
        %2667 = vmatmul.mubr.f32.gmra.mrb[0].mxu0 %v2416
        %v2668 = vpop.f32.mrb[0].mxu0
        %v2669 = vadd.f32 0.0, %v2668
        %v2670 = vpop.f32.mrb[0].mxu0
        %2671 = vmatprep.mubr.f32.mxu0 0.0
        %2672 = vmatmul.mubr.f32.gmra.mrb[0].mxu0 %v2419
        %v2673 = vpop.f32.mrb[0].mxu0
        %v2674 = vadd.f32 0.0, %v2673
        %v2675 = vpop.f32.mrb[0].mxu0
        %2676 = vmatprep.mubr.f32.mxu0 0.0
        %2677 = vmatmul.mubr.f32.gmra.mrb[0].mxu0 %v2422
        %v2678 = vpop.f32.mrb[0].mxu0
        %v2679 = vadd.f32 0.0, %v2678
        %v2680 = vpop.f32.mrb[0].mxu0
        %2681 = vmatprep.mubr.f32.mxu0 0.0
        %2682 = vmatmul.mubr.f32.gmra.mrb[0].mxu0 %v2425
        %v2683 = vpop.f32.mrb[0].mxu0
        %v2684 = vadd.f32 0.0, %v2683
        %v2685 = vpop.f32.mrb[0].mxu0
        %2686 = vmatprep.mubr.f32.mxu0 0.0
        %2687 = vmatmul.mubr.f32.gmra.mrb[0].mxu0 %v2428
        %v2688 = vpop.f32.mrb[0].mxu0
        %v2689 = vadd.f32 0.0, %v2688
        %v2690 = vpop.f32.mrb[0].mxu0
        %2691 = vmatprep.mubr.f32.mxu0 0.0
        %2692 = vmatmul.mubr.f32.gmra.mrb[0].mxu0 %v2431
        %v2693 = vpop.f32.mrb[0].mxu0
        %v2694 = vadd.f32 0.0, %v2693
        %v2695 = vpop.f32.mrb[0].mxu0
        %2696 = vmatprep.mubr.f32.mxu0 0.0
        %2697 = vmatmul.mubr.f32.gmra.mrb[0].mxu0 %v2434
        %v2698 = vpop.f32.mrb[0].mxu0
        %v2699 = vadd.f32 0.0, %v2698
        %v2700 = vpop.f32.mrb[0].mxu0
        %2701 = vmatprep.mubr.f32.mxu0 0.0
        %2702 = vmatmul.mubr.f32.gmra.mrb[0].mxu0 %v2437
        %v2703 = vpop.f32.mrb[0].mxu0
        %v2704 = vadd.f32 0.0, %v2703
        %v2705 = vpop.f32.mrb[0].mxu0
        %2706 = vmatprep.mubr.f32.mxu0 0.0
        %2707 = vmatmul.mubr.f32.gmra.mrb[0].mxu0 %v2440
        %v2708 = vpop.f32.mrb[0].mxu0
        %v2709 = vadd.f32 0.0, %v2708
        %v2710 = vpop.f32.mrb[0].mxu0
        %2711 = vmatprep.mubr.f32.mxu0 0.0
        %2712 = vmatmul.mubr.f32.gmra.mrb[0].mxu0 %v2443
        %v2713 = vpop.f32.mrb[0].mxu0
        %v2714 = vadd.f32 0.0, %v2713
        %v2715 = vpop.f32.mrb[0].mxu0
        %2716 = vmatprep.mubr.f32.mxu0 0.0
        %2717 = vmatmul.mubr.f32.gmra.mrb[0].mxu0 %v2446
        %v2718 = vpop.f32.mrb[0].mxu0
        %v2719 = vadd.f32 0.0, %v2718
        %v2720 = vpop.f32.mrb[0].mxu0
        %2721 = vmatprep.mubr.f32.mxu0 0.0
        %2722 = vmatmul.mubr.f32.gmra.mrb[0].mxu0 %v2449
        %v2723 = vpop.f32.mrb[0].mxu0
        %v2724 = vadd.f32 0.0, %v2723
        %v2725 = vpop.f32.mrb[0].mxu0
        %2726 = vmatprep.mubr.f32.mxu0 0.0
        %2727 = vmatmul.mubr.f32.gmra.mrb[0].mxu0 %v2452
        %v2728 = vpop.f32.mrb[0].mxu0
        %v2729 = vadd.f32 0.0, %v2728
        %v2730 = vpop.f32.mrb[0].mxu0
        %2731 = vmatprep.mubr.f32.mxu0 0.0
        %2732 = vmatmul.mubr.f32.gmra.mrb[0].mxu0 %v2455
        %v2733 = vpop.f32.mrb[0].mxu0
        %v2734 = vadd.f32 0.0, %v2733
        %v2735 = vpop.f32.mrb[0].mxu0
        %2736 = vmatprep.mubr.f32.mxu0 0.0
        %2737 = vmatmul.mubr.f32.gmra.mrb[0].mxu0 %v2458
        %v2738 = vpop.f32.mrb[0].mxu0
        %v2739 = vadd.f32 0.0, %v2738
        %v2740 = vpop.f32.mrb[0].mxu0
        %2741 = vmatprep.mubr.f32.mxu0 0.0
        %2742 = vmatmul.mubr.f32.gmra.mrb[0].mxu0 %v2461
        %v2743 = vpop.f32.mrb[0].mxu0
        %v2744 = vadd.f32 0.0, %v2743
        %v2745 = vpop.f32.mrb[0].mxu0
        %2746 = vmatprep.mubr.f32.mxu0 0.0
        %2747 = vmatmul.mubr.f32.gmra.mrb[0].mxu0 %v2464
        %v2748 = vpop.f32.mrb[0].mxu0
        %v2749 = vadd.f32 0.0, %v2748
        %v2750 = vpop.f32.mrb[0].mxu0
        %2751 = vmatprep.mubr.f32.mxu0 0.0
        %2752 = vmatmul.mubr.f32.gmra.mrb[0].mxu0 %v2467
        %v2753 = vpop.f32.mrb[0].mxu0
        %v2754 = vadd.f32 0.0, %v2753
        %v2755 = vpop.f32.mrb[0].mxu0
        %2756 = vmatprep.mubr.f32.mxu0 0.0
        %2757 = vmatmul.mubr.f32.gmra.mrb[0].mxu0 %v2470
        %v2758 = vpop.f32.mrb[0].mxu0
        %v2759 = vadd.f32 0.0, %v2758
        %v2760 = vpop.f32.mrb[0].mxu0
        %2761 = vmatprep.mubr.f32.mxu0 0.0
        %2762 = vmatmul.mubr.f32.gmra.mrb[0].mxu0 %v2473
        %v2763 = vpop.f32.mrb[0].mxu0
        %v2764 = vadd.f32 0.0, %v2763
        %v2765 = vpop.f32.mrb[0].mxu0
        %2766 = vmatprep.mubr.f32.mxu0 0.0
        %2767 = vmatmul.mubr.f32.gmra.mrb[0].mxu0 %v2476
        %v2768 = vpop.f32.mrb[0].mxu0
        %v2769 = vadd.f32 0.0, %v2768
        %v2770 = vpop.f32.mrb[0].mxu0
        %2771 = vmatprep.mubr.f32.mxu0 0.0
        %2772 = vmatmul.mubr.f32.gmra.mrb[0].mxu0 %v2479
        %v2773 = vpop.f32.mrb[0].mxu0
        %v2774 = vadd.f32 0.0, %v2773
        %v2775 = vpop.f32.mrb[0].mxu0
        %2776 = vmatprep.mubr.f32.mxu0 0.0
        %2777 = vmatmul.mubr.f32.gmra.mrb[0].mxu0 %v2482
        %v2778 = vpop.f32.mrb[0].mxu0
        %v2779 = vadd.f32 0.0, %v2778
        %v2780 = vpop.f32.mrb[0].mxu0
        %2781 = vmatprep.mubr.f32.mxu0 0.0
        %2782 = vmatmul.mubr.f32.gmra.mrb[0].mxu0 %v2485
        %v2783 = vpop.f32.mrb[0].mxu0
        %v2784 = vadd.f32 0.0, %v2783
        %v2785 = vpop.f32.mrb[0].mxu0
        %2786 = vmatprep.mubr.f32.mxu0 0.0
        %2787 = vmatmul.mubr.f32.gmra.mrb[0].mxu0 %v2488
        %v2788 = vpop.f32.mrb[0].mxu0
        %v2789 = vadd.f32 0.0, %v2788
        %v2790 = vpop.f32.mrb[0].mxu0
        %2791 = vmatprep.mubr.f32.mxu0 0.0
        %2792 = vmatmul.mubr.f32.gmra.mrb[0].mxu0 %v2491
        %v2793 = vpop.f32.mrb[0].mxu0
        %v2794 = vadd.f32 0.0, %v2793
        %v2795 = vpop.f32.mrb[0].mxu0
        %2796 = vmatprep.mubr.f32.mxu0 0.0
        %2797 = vmatmul.mubr.f32.gmra.mrb[0].mxu0 %v2494
        %v2798 = vpop.f32.mrb[0].mxu0
        %v2799 = vadd.f32 0.0, %v2798
        %v2800 = vpop.f32.mrb[0].mxu0
        %2801 = vmatprep.mubr.f32.mxu0 0.0
        %2802 = vmatmul.mubr.f32.gmra.mrb[0].mxu0 %v2497
        %v2803 = vpop.f32.mrb[0].mxu0
        %v2804 = vadd.f32 0.0, %v2803
        %v2805 = vpop.f32.mrb[0].mxu0
        %2806 = vdwg.mxu0
        %v2807 = vadd.f32 %v2257, %v2569
        %v2808 = vadd.f32 %v2258, %v2574
        %v2809 = vadd.f32 %v2259, %v2579
        %v2810 = vadd.f32 %v2260, %v2584
        %v2811 = vadd.f32 %v2261, %v2589
        %v2812 = vadd.f32 %v2262, %v2594
        %v2813 = vadd.f32 %v2263, %v2599
        %v2814 = vadd.f32 %v2264, %v2604
        %v2815 = vadd.f32 %v2265, %v2609
        %v2816 = vadd.f32 %v2266, %v2614
        %v2817 = vadd.f32 %v2267, %v2619
        %v2818 = vadd.f32 %v2268, %v2624
        %v2819 = vadd.f32 %v2269, %v2629
        %v2820 = vadd.f32 %v2270, %v2634
        %v2821 = vadd.f32 %v2271, %v2639
        %v2822 = vadd.f32 %v2272, %v2644
        %v2823 = vadd.f32 %v2273, %v2649
        %v2824 = vadd.f32 %v2274, %v2654
        %v2825 = vadd.f32 %v2275, %v2659
        %v2826 = vadd.f32 %v2276, %v2664
        %v2827 = vadd.f32 %v2277, %v2669
        %v2828 = vadd.f32 %v2278, %v2674
        %v2829 = vadd.f32 %v2279, %v2679
        %v2830 = vadd.f32 %v2280, %v2684
        %v2831 = vadd.f32 %v2281, %v2689
        %v2832 = vadd.f32 %v2282, %v2694
        %v2833 = vadd.f32 %v2283, %v2699
        %v2834 = vadd.f32 %v2284, %v2704
        %v2835 = vadd.f32 %v2285, %v2709
        %v2836 = vadd.f32 %v2286, %v2714
        %v2837 = vadd.f32 %v2287, %v2719
        %v2838 = vadd.f32 %v2288, %v2724
        %v2839 = vadd.f32 %v2289, %v2729
        %v2840 = vadd.f32 %v2290, %v2734
        %v2841 = vadd.f32 %v2291, %v2739
        %v2842 = vadd.f32 %v2292, %v2744
        %v2843 = vadd.f32 %v2293, %v2749
        %v2844 = vadd.f32 %v2294, %v2754
        %v2845 = vadd.f32 %v2295, %v2759
        %v2846 = vadd.f32 %v2296, %v2764
        %v2847 = vadd.f32 %v2297, %v2769
        %v2848 = vadd.f32 %v2298, %v2774
        %v2849 = vadd.f32 %v2299, %v2779
        %v2850 = vadd.f32 %v2300, %v2784
        %v2851 = vadd.f32 %v2301, %v2789
        %v2852 = vadd.f32 %v2302, %v2794
        %v2853 = vadd.f32 %v2303, %v2799
        %v2854 = vadd.f32 %v2304, %v2804
        %v2855 = vld [vmem:[%s195 + $0x1a] sm:$0xff]
        %v2856 = vld [vmem:[%s195 + $0x22] sm:$0xff]
        %v2857 = vld [vmem:[%s195 + $0x2a] sm:$0xff]
        %v2858 = vld [vmem:[%s195 + $0x32] sm:$0xff]
        %v2859 = vld [vmem:[%s195 + $0x3a] sm:$0xff]
        %v2860 = vld [vmem:[%s195 + $0x42] sm:$0xff]
        %v2861 = vld [vmem:[%s195 + $0x4a] sm:$0xff]
        %v2862 = vld [vmem:[%s195 + $0x52] sm:$0xff]
        %v2863 = vld [vmem:[%s195 + $0x5a] sm:$0xff]
        %v2864 = vld [vmem:[%s195 + $0x62] sm:$0xff]
        %v2865 = vld [vmem:[%s195 + $0x6a] sm:$0xff]
        %v2866 = vld [vmem:[%s195 + $0x72] sm:$0xff]
        %v2867 = vld [vmem:[%s195 + $0x7a] sm:$0xff]
        %v2868 = vld [vmem:[%s195 + $0x82] sm:$0xff]
        %v2869 = vld [vmem:[%s195 + $0x8a] sm:$0xff]
        %v2870 = vld [vmem:[%s195 + $0x92] sm:$0xff]
        %v2871 = vld [vmem:[%s195 + $0x9a] sm:$0xff]
        %v2872 = vld [vmem:[%s195 + $0xa2] sm:$0xff]
        %v2873 = vld [vmem:[%s195 + $0xaa] sm:$0xff]
        %v2874 = vld [vmem:[%s195 + $0xb2] sm:$0xff]
        %v2875 = vld [vmem:[%s195 + $0xba] sm:$0xff]
        %v2876 = vld [vmem:[%s195 + $0xc2] sm:$0xff]
        %v2877 = vld [vmem:[%s195 + $0xca] sm:$0xff]
        %v2878 = vld [vmem:[%s195 + $0xd2] sm:$0xff]
        %v2879 = vld [vmem:[%s195 + $0xda] sm:$0xff]
        %v2880 = vld [vmem:[%s195 + $0xe2] sm:$0xff]
        %v2881 = vld [vmem:[%s195 + $0xea] sm:$0xff]
        %v2882 = vld [vmem:[%s195 + $0xf2] sm:$0xff]
        %v2883 = vld [vmem:[%s195 + $0xfa] sm:$0xff]
        %v2884 = vld [vmem:[%s195 + $0x102] sm:$0xff]
        %v2885 = vld [vmem:[%s195 + $0x10a] sm:$0xff]
        %v2886 = vld [vmem:[%s195 + $0x112] sm:$0xff]
        %v2887 = vld [vmem:[%s195 + $0x11a] sm:$0xff]
        %v2888 = vld [vmem:[%s195 + $0x122] sm:$0xff]
        %v2889 = vld [vmem:[%s195 + $0x12a] sm:$0xff]
        %v2890 = vld [vmem:[%s195 + $0x132] sm:$0xff]
        %v2891 = vld [vmem:[%s195 + $0x13a] sm:$0xff]
        %v2892 = vld [vmem:[%s195 + $0x142] sm:$0xff]
        %v2893 = vld [vmem:[%s195 + $0x14a] sm:$0xff]
        %v2894 = vld [vmem:[%s195 + $0x152] sm:$0xff]
        %v2895 = vld [vmem:[%s195 + $0x15a] sm:$0xff]
        %v2896 = vld [vmem:[%s195 + $0x162] sm:$0xff]
        %v2897 = vld [vmem:[%s195 + $0x16a] sm:$0xff]
        %v2898 = vld [vmem:[%s195 + $0x172] sm:$0xff]
        %v2899 = vld [vmem:[%s195 + $0x17a] sm:$0xff]
        %v2900 = vld [vmem:[%s195 + $0x182] sm:$0xff]
        %v2901 = vld [vmem:[%s195 + $0x18a] sm:$0xff]
        %v2902 = vld [vmem:[%s195 + $0x192] sm:$0xff]
        %s2903 = scalar_lea.vmem %s199, 20
        %v2904 = vld [vmem:[%s2903] sm:$0xf]
        %v2906 = vsel %vm299, %v2855, 0
        %v2909 = vsel %vm299, %v2856, 0
        %v2912 = vsel %vm299, %v2857, 0
        %v2915 = vsel %vm299, %v2858, 0
        %v2918 = vsel %vm299, %v2859, 0
        %v2921 = vsel %vm299, %v2860, 0
        %v2924 = vsel %vm299, %v2861, 0
        %v2927 = vsel %vm299, %v2862, 0
        %v2930 = vsel %vm299, %v2863, 0
        %v2933 = vsel %vm299, %v2864, 0
        %v2936 = vsel %vm299, %v2865, 0
        %v2939 = vsel %vm299, %v2866, 0
        %v2942 = vsel %vm299, %v2867, 0
        %v2945 = vsel %vm299, %v2868, 0
        %v2948 = vsel %vm299, %v2869, 0
        %v2951 = vsel %vm299, %v2870, 0
        %v2954 = vsel %vm299, %v2871, 0
        %v2957 = vsel %vm299, %v2872, 0
        %v2960 = vsel %vm299, %v2873, 0
        %v2963 = vsel %vm299, %v2874, 0
        %v2966 = vsel %vm299, %v2875, 0
        %v2969 = vsel %vm299, %v2876, 0
        %v2972 = vsel %vm299, %v2877, 0
        %v2975 = vsel %vm299, %v2878, 0
        %v2978 = vsel %vm299, %v2879, 0
        %v2981 = vsel %vm299, %v2880, 0
        %v2984 = vsel %vm299, %v2881, 0
        %v2987 = vsel %vm299, %v2882, 0
        %v2990 = vsel %vm299, %v2883, 0
        %v2993 = vsel %vm299, %v2884, 0
        %v2996 = vsel %vm299, %v2885, 0
        %v2999 = vsel %vm299, %v2886, 0
        %v3002 = vsel %vm299, %v2887, 0
        %v3005 = vsel %vm299, %v2888, 0
        %v3008 = vsel %vm299, %v2889, 0
        %v3011 = vsel %vm299, %v2890, 0
        %v3014 = vsel %vm299, %v2891, 0
        %v3017 = vsel %vm299, %v2892, 0
        %v3020 = vsel %vm299, %v2893, 0
        %v3023 = vsel %vm299, %v2894, 0
        %v3026 = vsel %vm299, %v2895, 0
        %v3029 = vsel %vm299, %v2896, 0
        %v3032 = vsel %vm299, %v2897, 0
        %v3035 = vsel %vm299, %v2898, 0
        %v3038 = vsel %vm299, %v2899, 0
        %v3041 = vsel %vm299, %v2900, 0
        %v3044 = vsel %vm299, %v2901, 0
        %v3047 = vsel %vm299, %v2902, 0
        %v3050 = vsel %vm444, %v2904, 0
        %3052 = vmatprep.subr.mxu0 0.0
        %3053 = vmatpush1.msra.mxu0 %v3050
        %3054 = vmatprep.subr.mxu0 0.0
        %3055 = vmatpush1.msra.mxu0 0.0
        %3056 = vmatprep.subr.mxu0 0.0
        %3057 = vmatpush1.msra.mxu0 0.0
        %3058 = vmatprep.subr.mxu0 0.0
        %3059 = vmatpush1.msra.mxu0 0.0
        %3060 = vmatprep.subr.mxu0 0.0
        %3061 = vmatpush1.msra.mxu0 0.0
        %3062 = vmatprep.subr.mxu0 0.0
        %3063 = vmatpush1.msra.mxu0 0.0
        %3064 = vmatprep.subr.mxu0 0.0
        %3065 = vmatpush1.msra.mxu0 0.0
        %3066 = vmatprep.subr.mxu0 0.0
        %3067 = vmatpush1.msra.mxu0 0.0
        %3068 = vmatprep.subr.mxu0 0.0
        %3069 = vmatpush1.msra.mxu0 0.0
        %3070 = vmatprep.subr.mxu0 0.0
        %3071 = vmatpush1.msra.mxu0 0.0
        %3072 = vmatprep.subr.mxu0 0.0
        %3073 = vmatpush1.msra.mxu0 0.0
        %3074 = vmatprep.subr.mxu0 0.0
        %3075 = vmatpush1.msra.mxu0 0.0
        %3076 = vmatprep.subr.mxu0 0.0
        %3077 = vmatpush1.msra.mxu0 0.0
        %3078 = vmatprep.subr.mxu0 0.0
        %3079 = vmatpush1.msra.mxu0 0.0
        %3080 = vmatprep.subr.mxu0 0.0
        %3081 = vmatpush1.msra.mxu0 0.0
        %3082 = vmatprep.subr.mxu0 0.0
        %3083 = vmatpush1.msra.mxu0 0.0
        %3084 = vmatprep.subr.mxu0 0.0
        %3085 = vmatpush1.msra.mxu0 0.0
        %3086 = vmatprep.subr.mxu0 0.0
        %3087 = vmatpush1.msra.mxu0 0.0
        %3088 = vmatprep.subr.mxu0 0.0
        %3089 = vmatpush1.msra.mxu0 0.0
        %3090 = vmatprep.subr.mxu0 0.0
        %3091 = vmatpush1.msra.mxu0 0.0
        %3092 = vmatprep.subr.mxu0 0.0
        %3093 = vmatpush1.msra.mxu0 0.0
        %3094 = vmatprep.subr.mxu0 0.0
        %3095 = vmatpush1.msra.mxu0 0.0
        %3096 = vmatprep.subr.mxu0 0.0
        %3097 = vmatpush1.msra.mxu0 0.0
        %3098 = vmatprep.subr.mxu0 0.0
        %3099 = vmatpush1.msra.mxu0 0.0
        %3100 = vmatprep.subr.mxu0 0.0
        %3101 = vmatpush1.msra.mxu0 0.0
        %3102 = vmatprep.subr.mxu0 0.0
        %3103 = vmatpush1.msra.mxu0 0.0
        %3104 = vmatprep.subr.mxu0 0.0
        %3105 = vmatpush1.msra.mxu0 0.0
        %3106 = vmatprep.subr.mxu0 0.0
        %3107 = vmatpush1.msra.mxu0 0.0
        %3108 = vmatprep.subr.mxu0 0.0
        %3109 = vmatpush1.msra.mxu0 0.0
        %3110 = vmatprep.subr.mxu0 0.0
        %3111 = vmatpush1.msra.mxu0 0.0
        %3112 = vmatprep.subr.mxu0 0.0
        %3113 = vmatpush1.msra.mxu0 0.0
        %3114 = vmatprep.subr.mxu0 0.0
        %3115 = vmatpush1.msra.mxu0 0.0
        %3116 = vmatprep.mubr.f32.mxu0 0.0
        %3117 = vmatmul.mubr.f32.gmra.mrb[0].mxu0 %v2906
        %v3118 = vpop.f32.mrb[0].mxu0
        %v3119 = vadd.f32 0.0, %v3118
        %v3120 = vpop.f32.mrb[0].mxu0
        %3121 = vmatprep.mubr.f32.mxu0 0.0
        %3122 = vmatmul.mubr.f32.gmra.mrb[0].mxu0 %v2909
        %v3123 = vpop.f32.mrb[0].mxu0
        %v3124 = vadd.f32 0.0, %v3123
        %v3125 = vpop.f32.mrb[0].mxu0
        %3126 = vmatprep.mubr.f32.mxu0 0.0
        %3127 = vmatmul.mubr.f32.gmra.mrb[0].mxu0 %v2912
        %v3128 = vpop.f32.mrb[0].mxu0
        %v3129 = vadd.f32 0.0, %v3128
        %v3130 = vpop.f32.mrb[0].mxu0
        %3131 = vmatprep.mubr.f32.mxu0 0.0
        %3132 = vmatmul.mubr.f32.gmra.mrb[0].mxu0 %v2915
        %v3133 = vpop.f32.mrb[0].mxu0
        %v3134 = vadd.f32 0.0, %v3133
        %v3135 = vpop.f32.mrb[0].mxu0
        %3136 = vmatprep.mubr.f32.mxu0 0.0
        %3137 = vmatmul.mubr.f32.gmra.mrb[0].mxu0 %v2918
        %v3138 = vpop.f32.mrb[0].mxu0
        %v3139 = vadd.f32 0.0, %v3138
        %v3140 = vpop.f32.mrb[0].mxu0
        %3141 = vmatprep.mubr.f32.mxu0 0.0
        %3142 = vmatmul.mubr.f32.gmra.mrb[0].mxu0 %v2921
        %v3143 = vpop.f32.mrb[0].mxu0
        %v3144 = vadd.f32 0.0, %v3143
        %v3145 = vpop.f32.mrb[0].mxu0
        %3146 = vmatprep.mubr.f32.mxu0 0.0
        %3147 = vmatmul.mubr.f32.gmra.mrb[0].mxu0 %v2924
        %v3148 = vpop.f32.mrb[0].mxu0
        %v3149 = vadd.f32 0.0, %v3148
        %v3150 = vpop.f32.mrb[0].mxu0
        %3151 = vmatprep.mubr.f32.mxu0 0.0
        %3152 = vmatmul.mubr.f32.gmra.mrb[0].mxu0 %v2927
        %v3153 = vpop.f32.mrb[0].mxu0
        %v3154 = vadd.f32 0.0, %v3153
        %v3155 = vpop.f32.mrb[0].mxu0
        %3156 = vmatprep.mubr.f32.mxu0 0.0
        %3157 = vmatmul.mubr.f32.gmra.mrb[0].mxu0 %v2930
        %v3158 = vpop.f32.mrb[0].mxu0
        %v3159 = vadd.f32 0.0, %v3158
        %v3160 = vpop.f32.mrb[0].mxu0
        %3161 = vmatprep.mubr.f32.mxu0 0.0
        %3162 = vmatmul.mubr.f32.gmra.mrb[0].mxu0 %v2933
        %v3163 = vpop.f32.mrb[0].mxu0
        %v3164 = vadd.f32 0.0, %v3163
        %v3165 = vpop.f32.mrb[0].mxu0
        %3166 = vmatprep.mubr.f32.mxu0 0.0
        %3167 = vmatmul.mubr.f32.gmra.mrb[0].mxu0 %v2936
        %v3168 = vpop.f32.mrb[0].mxu0
        %v3169 = vadd.f32 0.0, %v3168
        %v3170 = vpop.f32.mrb[0].mxu0
        %3171 = vmatprep.mubr.f32.mxu0 0.0
        %3172 = vmatmul.mubr.f32.gmra.mrb[0].mxu0 %v2939
        %v3173 = vpop.f32.mrb[0].mxu0
        %v3174 = vadd.f32 0.0, %v3173
        %v3175 = vpop.f32.mrb[0].mxu0
        %3176 = vmatprep.mubr.f32.mxu0 0.0
        %3177 = vmatmul.mubr.f32.gmra.mrb[0].mxu0 %v2942
        %v3178 = vpop.f32.mrb[0].mxu0
        %v3179 = vadd.f32 0.0, %v3178
        %v3180 = vpop.f32.mrb[0].mxu0
        %3181 = vmatprep.mubr.f32.mxu0 0.0
        %3182 = vmatmul.mubr.f32.gmra.mrb[0].mxu0 %v2945
        %v3183 = vpop.f32.mrb[0].mxu0
        %v3184 = vadd.f32 0.0, %v3183
        %v3185 = vpop.f32.mrb[0].mxu0
        %3186 = vmatprep.mubr.f32.mxu0 0.0
        %3187 = vmatmul.mubr.f32.gmra.mrb[0].mxu0 %v2948
        %v3188 = vpop.f32.mrb[0].mxu0
        %v3189 = vadd.f32 0.0, %v3188
        %v3190 = vpop.f32.mrb[0].mxu0
        %3191 = vmatprep.mubr.f32.mxu0 0.0
        %3192 = vmatmul.mubr.f32.gmra.mrb[0].mxu0 %v2951
        %v3193 = vpop.f32.mrb[0].mxu0
        %v3194 = vadd.f32 0.0, %v3193
        %v3195 = vpop.f32.mrb[0].mxu0
        %3196 = vmatprep.mubr.f32.mxu0 0.0
        %3197 = vmatmul.mubr.f32.gmra.mrb[0].mxu0 %v2954
        %v3198 = vpop.f32.mrb[0].mxu0
        %v3199 = vadd.f32 0.0, %v3198
        %v3200 = vpop.f32.mrb[0].mxu0
        %3201 = vmatprep.mubr.f32.mxu0 0.0
        %3202 = vmatmul.mubr.f32.gmra.mrb[0].mxu0 %v2957
        %v3203 = vpop.f32.mrb[0].mxu0
        %v3204 = vadd.f32 0.0, %v3203
        %v3205 = vpop.f32.mrb[0].mxu0
        %3206 = vmatprep.mubr.f32.mxu0 0.0
        %3207 = vmatmul.mubr.f32.gmra.mrb[0].mxu0 %v2960
        %v3208 = vpop.f32.mrb[0].mxu0
        %v3209 = vadd.f32 0.0, %v3208
        %v3210 = vpop.f32.mrb[0].mxu0
        %3211 = vmatprep.mubr.f32.mxu0 0.0
        %3212 = vmatmul.mubr.f32.gmra.mrb[0].mxu0 %v2963
        %v3213 = vpop.f32.mrb[0].mxu0
        %v3214 = vadd.f32 0.0, %v3213
        %v3215 = vpop.f32.mrb[0].mxu0
        %3216 = vmatprep.mubr.f32.mxu0 0.0
        %3217 = vmatmul.mubr.f32.gmra.mrb[0].mxu0 %v2966
        %v3218 = vpop.f32.mrb[0].mxu0
        %v3219 = vadd.f32 0.0, %v3218
        %v3220 = vpop.f32.mrb[0].mxu0
        %3221 = vmatprep.mubr.f32.mxu0 0.0
        %3222 = vmatmul.mubr.f32.gmra.mrb[0].mxu0 %v2969
        %v3223 = vpop.f32.mrb[0].mxu0
        %v3224 = vadd.f32 0.0, %v3223
        %v3225 = vpop.f32.mrb[0].mxu0
        %3226 = vmatprep.mubr.f32.mxu0 0.0
        %3227 = vmatmul.mubr.f32.gmra.mrb[0].mxu0 %v2972
        %v3228 = vpop.f32.mrb[0].mxu0
        %v3229 = vadd.f32 0.0, %v3228
        %v3230 = vpop.f32.mrb[0].mxu0
        %3231 = vmatprep.mubr.f32.mxu0 0.0
        %3232 = vmatmul.mubr.f32.gmra.mrb[0].mxu0 %v2975
        %v3233 = vpop.f32.mrb[0].mxu0
        %v3234 = vadd.f32 0.0, %v3233
        %v3235 = vpop.f32.mrb[0].mxu0
        %3236 = vmatprep.mubr.f32.mxu0 0.0
        %3237 = vmatmul.mubr.f32.gmra.mrb[0].mxu0 %v2978
        %v3238 = vpop.f32.mrb[0].mxu0
        %v3239 = vadd.f32 0.0, %v3238
        %v3240 = vpop.f32.mrb[0].mxu0
        %3241 = vmatprep.mubr.f32.mxu0 0.0
        %3242 = vmatmul.mubr.f32.gmra.mrb[0].mxu0 %v2981
        %v3243 = vpop.f32.mrb[0].mxu0
        %v3244 = vadd.f32 0.0, %v3243
        %v3245 = vpop.f32.mrb[0].mxu0
        %3246 = vmatprep.mubr.f32.mxu0 0.0
        %3247 = vmatmul.mubr.f32.gmra.mrb[0].mxu0 %v2984
        %v3248 = vpop.f32.mrb[0].mxu0
        %v3249 = vadd.f32 0.0, %v3248
        %v3250 = vpop.f32.mrb[0].mxu0
        %3251 = vmatprep.mubr.f32.mxu0 0.0
        %3252 = vmatmul.mubr.f32.gmra.mrb[0].mxu0 %v2987
        %v3253 = vpop.f32.mrb[0].mxu0
        %v3254 = vadd.f32 0.0, %v3253
        %v3255 = vpop.f32.mrb[0].mxu0
        %3256 = vmatprep.mubr.f32.mxu0 0.0
        %3257 = vmatmul.mubr.f32.gmra.mrb[0].mxu0 %v2990
        %v3258 = vpop.f32.mrb[0].mxu0
        %v3259 = vadd.f32 0.0, %v3258
        %v3260 = vpop.f32.mrb[0].mxu0
        %3261 = vmatprep.mubr.f32.mxu0 0.0
        %3262 = vmatmul.mubr.f32.gmra.mrb[0].mxu0 %v2993
        %v3263 = vpop.f32.mrb[0].mxu0
        %v3264 = vadd.f32 0.0, %v3263
        %v3265 = vpop.f32.mrb[0].mxu0
        %3266 = vmatprep.mubr.f32.mxu0 0.0
        %3267 = vmatmul.mubr.f32.gmra.mrb[0].mxu0 %v2996
        %v3268 = vpop.f32.mrb[0].mxu0
        %v3269 = vadd.f32 0.0, %v3268
        %v3270 = vpop.f32.mrb[0].mxu0
        %3271 = vmatprep.mubr.f32.mxu0 0.0
        %3272 = vmatmul.mubr.f32.gmra.mrb[0].mxu0 %v2999
        %v3273 = vpop.f32.mrb[0].mxu0
        %v3274 = vadd.f32 0.0, %v3273
        %v3275 = vpop.f32.mrb[0].mxu0
        %3276 = vmatprep.mubr.f32.mxu0 0.0
        %3277 = vmatmul.mubr.f32.gmra.mrb[0].mxu0 %v3002
        %v3278 = vpop.f32.mrb[0].mxu0
        %v3279 = vadd.f32 0.0, %v3278
        %v3280 = vpop.f32.mrb[0].mxu0
        %3281 = vmatprep.mubr.f32.mxu0 0.0
        %3282 = vmatmul.mubr.f32.gmra.mrb[0].mxu0 %v3005
        %v3283 = vpop.f32.mrb[0].mxu0
        %v3284 = vadd.f32 0.0, %v3283
        %v3285 = vpop.f32.mrb[0].mxu0
        %3286 = vmatprep.mubr.f32.mxu0 0.0
        %3287 = vmatmul.mubr.f32.gmra.mrb[0].mxu0 %v3008
        %v3288 = vpop.f32.mrb[0].mxu0
        %v3289 = vadd.f32 0.0, %v3288
        %v3290 = vpop.f32.mrb[0].mxu0
        %3291 = vmatprep.mubr.f32.mxu0 0.0
        %3292 = vmatmul.mubr.f32.gmra.mrb[0].mxu0 %v3011
        %v3293 = vpop.f32.mrb[0].mxu0
        %v3294 = vadd.f32 0.0, %v3293
        %v3295 = vpop.f32.mrb[0].mxu0
        %3296 = vmatprep.mubr.f32.mxu0 0.0
        %3297 = vmatmul.mubr.f32.gmra.mrb[0].mxu0 %v3014
        %v3298 = vpop.f32.mrb[0].mxu0
        %v3299 = vadd.f32 0.0, %v3298
        %v3300 = vpop.f32.mrb[0].mxu0
        %3301 = vmatprep.mubr.f32.mxu0 0.0
        %3302 = vmatmul.mubr.f32.gmra.mrb[0].mxu0 %v3017
        %v3303 = vpop.f32.mrb[0].mxu0
        %v3304 = vadd.f32 0.0, %v3303
        %v3305 = vpop.f32.mrb[0].mxu0
        %3306 = vmatprep.mubr.f32.mxu0 0.0
        %3307 = vmatmul.mubr.f32.gmra.mrb[0].mxu0 %v3020
        %v3308 = vpop.f32.mrb[0].mxu0
        %v3309 = vadd.f32 0.0, %v3308
        %v3310 = vpop.f32.mrb[0].mxu0
        %3311 = vmatprep.mubr.f32.mxu0 0.0
        %3312 = vmatmul.mubr.f32.gmra.mrb[0].mxu0 %v3023
        %v3313 = vpop.f32.mrb[0].mxu0
        %v3314 = vadd.f32 0.0, %v3313
        %v3315 = vpop.f32.mrb[0].mxu0
        %3316 = vmatprep.mubr.f32.mxu0 0.0
        %3317 = vmatmul.mubr.f32.gmra.mrb[0].mxu0 %v3026
        %v3318 = vpop.f32.mrb[0].mxu0
        %v3319 = vadd.f32 0.0, %v3318
        %v3320 = vpop.f32.mrb[0].mxu0
        %3321 = vmatprep.mubr.f32.mxu0 0.0
        %3322 = vmatmul.mubr.f32.gmra.mrb[0].mxu0 %v3029
        %v3323 = vpop.f32.mrb[0].mxu0
        %v3324 = vadd.f32 0.0, %v3323
        %v3325 = vpop.f32.mrb[0].mxu0
        %3326 = vmatprep.mubr.f32.mxu0 0.0
        %3327 = vmatmul.mubr.f32.gmra.mrb[0].mxu0 %v3032
        %v3328 = vpop.f32.mrb[0].mxu0
        %v3329 = vadd.f32 0.0, %v3328
        %v3330 = vpop.f32.mrb[0].mxu0
        %3331 = vmatprep.mubr.f32.mxu0 0.0
        %3332 = vmatmul.mubr.f32.gmra.mrb[0].mxu0 %v3035
        %v3333 = vpop.f32.mrb[0].mxu0
        %v3334 = vadd.f32 0.0, %v3333
        %v3335 = vpop.f32.mrb[0].mxu0
        %3336 = vmatprep.mubr.f32.mxu0 0.0
        %3337 = vmatmul.mubr.f32.gmra.mrb[0].mxu0 %v3038
        %v3338 = vpop.f32.mrb[0].mxu0
        %v3339 = vadd.f32 0.0, %v3338
        %v3340 = vpop.f32.mrb[0].mxu0
        %3341 = vmatprep.mubr.f32.mxu0 0.0
        %3342 = vmatmul.mubr.f32.gmra.mrb[0].mxu0 %v3041
        %v3343 = vpop.f32.mrb[0].mxu0
        %v3344 = vadd.f32 0.0, %v3343
        %v3345 = vpop.f32.mrb[0].mxu0
        %3346 = vmatprep.mubr.f32.mxu0 0.0
        %3347 = vmatmul.mubr.f32.gmra.mrb[0].mxu0 %v3044
        %v3348 = vpop.f32.mrb[0].mxu0
        %v3349 = vadd.f32 0.0, %v3348
        %v3350 = vpop.f32.mrb[0].mxu0
        %3351 = vmatprep.mubr.f32.mxu0 0.0
        %3352 = vmatmul.mubr.f32.gmra.mrb[0].mxu0 %v3047
        %v3353 = vpop.f32.mrb[0].mxu0
        %v3354 = vadd.f32 0.0, %v3353
        %v3355 = vpop.f32.mrb[0].mxu0
        %3356 = vdwg.mxu0
        %v3357 = vadd.f32 %v2807, %v3119
        %v3358 = vadd.f32 %v2808, %v3124
        %v3359 = vadd.f32 %v2809, %v3129
        %v3360 = vadd.f32 %v2810, %v3134
        %v3361 = vadd.f32 %v2811, %v3139
        %v3362 = vadd.f32 %v2812, %v3144
        %v3363 = vadd.f32 %v2813, %v3149
        %v3364 = vadd.f32 %v2814, %v3154
        %v3365 = vadd.f32 %v2815, %v3159
        %v3366 = vadd.f32 %v2816, %v3164
        %v3367 = vadd.f32 %v2817, %v3169
        %v3368 = vadd.f32 %v2818, %v3174
        %v3369 = vadd.f32 %v2819, %v3179
        %v3370 = vadd.f32 %v2820, %v3184
        %v3371 = vadd.f32 %v2821, %v3189
        %v3372 = vadd.f32 %v2822, %v3194
        %v3373 = vadd.f32 %v2823, %v3199
        %v3374 = vadd.f32 %v2824, %v3204
        %v3375 = vadd.f32 %v2825, %v3209
        %v3376 = vadd.f32 %v2826, %v3214
        %v3377 = vadd.f32 %v2827, %v3219
        %v3378 = vadd.f32 %v2828, %v3224
        %v3379 = vadd.f32 %v2829, %v3229
        %v3380 = vadd.f32 %v2830, %v3234
        %v3381 = vadd.f32 %v2831, %v3239
        %v3382 = vadd.f32 %v2832, %v3244
        %v3383 = vadd.f32 %v2833, %v3249
        %v3384 = vadd.f32 %v2834, %v3254
        %v3385 = vadd.f32 %v2835, %v3259
        %v3386 = vadd.f32 %v2836, %v3264
        %v3387 = vadd.f32 %v2837, %v3269
        %v3388 = vadd.f32 %v2838, %v3274
        %v3389 = vadd.f32 %v2839, %v3279
        %v3390 = vadd.f32 %v2840, %v3284
        %v3391 = vadd.f32 %v2841, %v3289
        %v3392 = vadd.f32 %v2842, %v3294
        %v3393 = vadd.f32 %v2843, %v3299
        %v3394 = vadd.f32 %v2844, %v3304
        %v3395 = vadd.f32 %v2845, %v3309
        %v3396 = vadd.f32 %v2846, %v3314
        %v3397 = vadd.f32 %v2847, %v3319
        %v3398 = vadd.f32 %v2848, %v3324
        %v3399 = vadd.f32 %v2849, %v3329
        %v3400 = vadd.f32 %v2850, %v3334
        %v3401 = vadd.f32 %v2851, %v3339
        %v3402 = vadd.f32 %v2852, %v3344
        %v3403 = vadd.f32 %v2853, %v3349
        %v3404 = vadd.f32 %v2854, %v3354
        %v3405 = vld [vmem:[%s195 + $0x30] sm:$0xff]
        %v3406 = vld [vmem:[%s195 + $0x38] sm:$0xff]
        %v3407 = vld [vmem:[%s195 + $0x40] sm:$0xff]
        %v3408 = vld [vmem:[%s195 + $0x48] sm:$0xff]
        %v3409 = vld [vmem:[%s195 + $0x50] sm:$0xff]
        %v3410 = vld [vmem:[%s195 + $0x58] sm:$0xff]
        %v3411 = vld [vmem:[%s195 + $0x60] sm:$0xff]
        %v3412 = vld [vmem:[%s195 + $0x68] sm:$0xff]
        %v3413 = vld [vmem:[%s195 + $0x70] sm:$0xff]
        %v3414 = vld [vmem:[%s195 + $0x78] sm:$0xff]
        %v3415 = vld [vmem:[%s195 + $0x80] sm:$0xff]
        %v3416 = vld [vmem:[%s195 + $0x88] sm:$0xff]
        %v3417 = vld [vmem:[%s195 + $0x90] sm:$0xff]
        %v3418 = vld [vmem:[%s195 + $0x98] sm:$0xff]
        %v3419 = vld [vmem:[%s195 + $0xa0] sm:$0xff]
        %v3420 = vld [vmem:[%s195 + $0xa8] sm:$0xff]
        %v3421 = vld [vmem:[%s195 + $0xb0] sm:$0xff]
        %v3422 = vld [vmem:[%s195 + $0xb8] sm:$0xff]
        %v3423 = vld [vmem:[%s195 + $0xc0] sm:$0xff]
        %v3424 = vld [vmem:[%s195 + $0xc8] sm:$0xff]
        %v3425 = vld [vmem:[%s195 + $0xd0] sm:$0xff]
        %v3426 = vld [vmem:[%s195 + $0xd8] sm:$0xff]
        %v3427 = vld [vmem:[%s195 + $0xe0] sm:$0xff]
        %v3428 = vld [vmem:[%s195 + $0xe8] sm:$0xff]
        %v3429 = vld [vmem:[%s195 + $0xf0] sm:$0xff]
        %v3430 = vld [vmem:[%s195 + $0xf8] sm:$0xff]
        %v3431 = vld [vmem:[%s195 + $0x100] sm:$0xff]
        %v3432 = vld [vmem:[%s195 + $0x108] sm:$0xff]
        %v3433 = vld [vmem:[%s195 + $0x110] sm:$0xff]
        %v3434 = vld [vmem:[%s195 + $0x118] sm:$0xff]
        %v3435 = vld [vmem:[%s195 + $0x120] sm:$0xff]
        %v3436 = vld [vmem:[%s195 + $0x128] sm:$0xff]
        %v3437 = vld [vmem:[%s195 + $0x130] sm:$0xff]
        %v3438 = vld [vmem:[%s195 + $0x138] sm:$0xff]
        %v3439 = vld [vmem:[%s195 + $0x140] sm:$0xff]
        %v3440 = vld [vmem:[%s195 + $0x148] sm:$0xff]
        %v3441 = vld [vmem:[%s195 + $0x150] sm:$0xff]
        %v3442 = vld [vmem:[%s195 + $0x158] sm:$0xff]
        %v3443 = vld [vmem:[%s195 + $0x160] sm:$0xff]
        %v3444 = vld [vmem:[%s195 + $0x168] sm:$0xff]
        %v3445 = vld [vmem:[%s195 + $0x170] sm:$0xff]
        %v3446 = vld [vmem:[%s195 + $0x178] sm:$0xff]
        %v3447 = vld [vmem:[%s195 + $0x180] sm:$0xff]
        %v3448 = vld [vmem:[%s195 + $0x188] sm:$0xff]
        %v3449 = vld [vmem:[%s195 + $0x190] sm:$0xff]
        %v3450 = vld [vmem:[%s195 + $0x198] sm:$0xff]
        %v3451 = vld [vmem:[%s195 + $0x1a0] sm:$0xff]
        %v3452 = vld [vmem:[%s195 + $0x1a8] sm:$0xff]
        %s3453 = scalar_lea.vmem %s199, 24
        %v3454 = vld [vmem:[%s3453] sm:$0xf]
        %v3456 = vsel %vm299, %v3405, 0
        %v3459 = vsel %vm299, %v3406, 0
        %v3462 = vsel %vm299, %v3407, 0
        %v3465 = vsel %vm299, %v3408, 0
        %v3468 = vsel %vm299, %v3409, 0
        %v3471 = vsel %vm299, %v3410, 0
        %v3474 = vsel %vm299, %v3411, 0
        %v3477 = vsel %vm299, %v3412, 0
        %v3480 = vsel %vm299, %v3413, 0
        %v3483 = vsel %vm299, %v3414, 0
        %v3486 = vsel %vm299, %v3415, 0
        %v3489 = vsel %vm299, %v3416, 0
        %v3492 = vsel %vm299, %v3417, 0
        %v3495 = vsel %vm299, %v3418, 0
        %v3498 = vsel %vm299, %v3419, 0
        %v3501 = vsel %vm299, %v3420, 0
        %v3504 = vsel %vm299, %v3421, 0
        %v3507 = vsel %vm299, %v3422, 0
        %v3510 = vsel %vm299, %v3423, 0
        %v3513 = vsel %vm299, %v3424, 0
        %v3516 = vsel %vm299, %v3425, 0
        %v3519 = vsel %vm299, %v3426, 0
        %v3522 = vsel %vm299, %v3427, 0
        %v3525 = vsel %vm299, %v3428, 0
        %v3528 = vsel %vm299, %v3429, 0
        %v3531 = vsel %vm299, %v3430, 0
        %v3534 = vsel %vm299, %v3431, 0
        %v3537 = vsel %vm299, %v3432, 0
        %v3540 = vsel %vm299, %v3433, 0
        %v3543 = vsel %vm299, %v3434, 0
        %v3546 = vsel %vm299, %v3435, 0
        %v3549 = vsel %vm299, %v3436, 0
        %v3552 = vsel %vm299, %v3437, 0
        %v3555 = vsel %vm299, %v3438, 0
        %v3558 = vsel %vm299, %v3439, 0
        %v3561 = vsel %vm299, %v3440, 0
        %v3564 = vsel %vm299, %v3441, 0
        %v3567 = vsel %vm299, %v3442, 0
        %v3570 = vsel %vm299, %v3443, 0
        %v3573 = vsel %vm299, %v3444, 0
        %v3576 = vsel %vm299, %v3445, 0
        %v3579 = vsel %vm299, %v3446, 0
        %v3582 = vsel %vm299, %v3447, 0
        %v3585 = vsel %vm299, %v3448, 0
        %v3588 = vsel %vm299, %v3449, 0
        %v3591 = vsel %vm299, %v3450, 0
        %v3594 = vsel %vm299, %v3451, 0
        %v3597 = vsel %vm299, %v3452, 0
        %v3600 = vsel %vm444, %v3454, 0
        %3602 = vmatprep.subr.mxu0 0.0
        %3603 = vmatpush1.msra.mxu0 %v3600
        %3604 = vmatprep.subr.mxu0 0.0
        %3605 = vmatpush1.msra.mxu0 0.0
        %3606 = vmatprep.subr.mxu0 0.0
        %3607 = vmatpush1.msra.mxu0 0.0
        %3608 = vmatprep.subr.mxu0 0.0
        %3609 = vmatpush1.msra.mxu0 0.0
        %3610 = vmatprep.subr.mxu0 0.0
        %3611 = vmatpush1.msra.mxu0 0.0
        %3612 = vmatprep.subr.mxu0 0.0
        %3613 = vmatpush1.msra.mxu0 0.0
        %3614 = vmatprep.subr.mxu0 0.0
        %3615 = vmatpush1.msra.mxu0 0.0
        %3616 = vmatprep.subr.mxu0 0.0
        %3617 = vmatpush1.msra.mxu0 0.0
        %3618 = vmatprep.subr.mxu0 0.0
        %3619 = vmatpush1.msra.mxu0 0.0
        %3620 = vmatprep.subr.mxu0 0.0
        %3621 = vmatpush1.msra.mxu0 0.0
        %3622 = vmatprep.subr.mxu0 0.0
        %3623 = vmatpush1.msra.mxu0 0.0
        %3624 = vmatprep.subr.mxu0 0.0
        %3625 = vmatpush1.msra.mxu0 0.0
        %3626 = vmatprep.subr.mxu0 0.0
        %3627 = vmatpush1.msra.mxu0 0.0
        %3628 = vmatprep.subr.mxu0 0.0
        %3629 = vmatpush1.msra.mxu0 0.0
        %3630 = vmatprep.subr.mxu0 0.0
        %3631 = vmatpush1.msra.mxu0 0.0
        %3632 = vmatprep.subr.mxu0 0.0
        %3633 = vmatpush1.msra.mxu0 0.0
        %3634 = vmatprep.subr.mxu0 0.0
        %3635 = vmatpush1.msra.mxu0 0.0
        %3636 = vmatprep.subr.mxu0 0.0
        %3637 = vmatpush1.msra.mxu0 0.0
        %3638 = vmatprep.subr.mxu0 0.0
        %3639 = vmatpush1.msra.mxu0 0.0
        %3640 = vmatprep.subr.mxu0 0.0
        %3641 = vmatpush1.msra.mxu0 0.0
        %3642 = vmatprep.subr.mxu0 0.0
        %3643 = vmatpush1.msra.mxu0 0.0
        %3644 = vmatprep.subr.mxu0 0.0
        %3645 = vmatpush1.msra.mxu0 0.0
        %3646 = vmatprep.subr.mxu0 0.0
        %3647 = vmatpush1.msra.mxu0 0.0
        %3648 = vmatprep.subr.mxu0 0.0
        %3649 = vmatpush1.msra.mxu0 0.0
        %3650 = vmatprep.subr.mxu0 0.0
        %3651 = vmatpush1.msra.mxu0 0.0
        %3652 = vmatprep.subr.mxu0 0.0
        %3653 = vmatpush1.msra.mxu0 0.0
        %3654 = vmatprep.subr.mxu0 0.0
        %3655 = vmatpush1.msra.mxu0 0.0
        %3656 = vmatprep.subr.mxu0 0.0
        %3657 = vmatpush1.msra.mxu0 0.0
        %3658 = vmatprep.subr.mxu0 0.0
        %3659 = vmatpush1.msra.mxu0 0.0
        %3660 = vmatprep.subr.mxu0 0.0
        %3661 = vmatpush1.msra.mxu0 0.0
        %3662 = vmatprep.subr.mxu0 0.0
        %3663 = vmatpush1.msra.mxu0 0.0
        %3664 = vmatprep.subr.mxu0 0.0
        %3665 = vmatpush1.msra.mxu0 0.0
        %3666 = vmatprep.mubr.f32.mxu0 0.0
        %3667 = vmatmul.mubr.f32.gmra.mrb[0].mxu0 %v3456
        %v3668 = vpop.f32.mrb[0].mxu0
        %v3669 = vadd.f32 0.0, %v3668
        %v3670 = vpop.f32.mrb[0].mxu0
        %3671 = vmatprep.mubr.f32.mxu0 0.0
        %3672 = vmatmul.mubr.f32.gmra.mrb[0].mxu0 %v3459
        %v3673 = vpop.f32.mrb[0].mxu0
        %v3674 = vadd.f32 0.0, %v3673
        %v3675 = vpop.f32.mrb[0].mxu0
        %3676 = vmatprep.mubr.f32.mxu0 0.0
        %3677 = vmatmul.mubr.f32.gmra.mrb[0].mxu0 %v3462
        %v3678 = vpop.f32.mrb[0].mxu0
        %v3679 = vadd.f32 0.0, %v3678
        %v3680 = vpop.f32.mrb[0].mxu0
        %3681 = vmatprep.mubr.f32.mxu0 0.0
        %3682 = vmatmul.mubr.f32.gmra.mrb[0].mxu0 %v3465
        %v3683 = vpop.f32.mrb[0].mxu0
        %v3684 = vadd.f32 0.0, %v3683
        %v3685 = vpop.f32.mrb[0].mxu0
        %3686 = vmatprep.mubr.f32.mxu0 0.0
        %3687 = vmatmul.mubr.f32.gmra.mrb[0].mxu0 %v3468
        %v3688 = vpop.f32.mrb[0].mxu0
        %v3689 = vadd.f32 0.0, %v3688
        %v3690 = vpop.f32.mrb[0].mxu0
        %3691 = vmatprep.mubr.f32.mxu0 0.0
        %3692 = vmatmul.mubr.f32.gmra.mrb[0].mxu0 %v3471
        %v3693 = vpop.f32.mrb[0].mxu0
        %v3694 = vadd.f32 0.0, %v3693
        %v3695 = vpop.f32.mrb[0].mxu0
        %3696 = vmatprep.mubr.f32.mxu0 0.0
        %3697 = vmatmul.mubr.f32.gmra.mrb[0].mxu0 %v3474
        %v3698 = vpop.f32.mrb[0].mxu0
        %v3699 = vadd.f32 0.0, %v3698
        %v3700 = vpop.f32.mrb[0].mxu0
        %3701 = vmatprep.mubr.f32.mxu0 0.0
        %3702 = vmatmul.mubr.f32.gmra.mrb[0].mxu0 %v3477
        %v3703 = vpop.f32.mrb[0].mxu0
        %v3704 = vadd.f32 0.0, %v3703
        %v3705 = vpop.f32.mrb[0].mxu0
        %3706 = vmatprep.mubr.f32.mxu0 0.0
        %3707 = vmatmul.mubr.f32.gmra.mrb[0].mxu0 %v3480
        %v3708 = vpop.f32.mrb[0].mxu0
        %v3709 = vadd.f32 0.0, %v3708
        %v3710 = vpop.f32.mrb[0].mxu0
        %3711 = vmatprep.mubr.f32.mxu0 0.0
        %3712 = vmatmul.mubr.f32.gmra.mrb[0].mxu0 %v3483
        %v3713 = vpop.f32.mrb[0].mxu0
        %v3714 = vadd.f32 0.0, %v3713
        %v3715 = vpop.f32.mrb[0].mxu0
        %3716 = vmatprep.mubr.f32.mxu0 0.0
        %3717 = vmatmul.mubr.f32.gmra.mrb[0].mxu0 %v3486
        %v3718 = vpop.f32.mrb[0].mxu0
        %v3719 = vadd.f32 0.0, %v3718
        %v3720 = vpop.f32.mrb[0].mxu0
        %3721 = vmatprep.mubr.f32.mxu0 0.0
        %3722 = vmatmul.mubr.f32.gmra.mrb[0].mxu0 %v3489
        %v3723 = vpop.f32.mrb[0].mxu0
        %v3724 = vadd.f32 0.0, %v3723
        %v3725 = vpop.f32.mrb[0].mxu0
        %3726 = vmatprep.mubr.f32.mxu0 0.0
        %3727 = vmatmul.mubr.f32.gmra.mrb[0].mxu0 %v3492
        %v3728 = vpop.f32.mrb[0].mxu0
        %v3729 = vadd.f32 0.0, %v3728
        %v3730 = vpop.f32.mrb[0].mxu0
        %3731 = vmatprep.mubr.f32.mxu0 0.0
        %3732 = vmatmul.mubr.f32.gmra.mrb[0].mxu0 %v3495
        %v3733 = vpop.f32.mrb[0].mxu0
        %v3734 = vadd.f32 0.0, %v3733
        %v3735 = vpop.f32.mrb[0].mxu0
        %3736 = vmatprep.mubr.f32.mxu0 0.0
        %3737 = vmatmul.mubr.f32.gmra.mrb[0].mxu0 %v3498
        %v3738 = vpop.f32.mrb[0].mxu0
        %v3739 = vadd.f32 0.0, %v3738
        %v3740 = vpop.f32.mrb[0].mxu0
        %3741 = vmatprep.mubr.f32.mxu0 0.0
        %3742 = vmatmul.mubr.f32.gmra.mrb[0].mxu0 %v3501
        %v3743 = vpop.f32.mrb[0].mxu0
        %v3744 = vadd.f32 0.0, %v3743
        %v3745 = vpop.f32.mrb[0].mxu0
        %3746 = vmatprep.mubr.f32.mxu0 0.0
        %3747 = vmatmul.mubr.f32.gmra.mrb[0].mxu0 %v3504
        %v3748 = vpop.f32.mrb[0].mxu0
        %v3749 = vadd.f32 0.0, %v3748
        %v3750 = vpop.f32.mrb[0].mxu0
        %3751 = vmatprep.mubr.f32.mxu0 0.0
        %3752 = vmatmul.mubr.f32.gmra.mrb[0].mxu0 %v3507
        %v3753 = vpop.f32.mrb[0].mxu0
        %v3754 = vadd.f32 0.0, %v3753
        %v3755 = vpop.f32.mrb[0].mxu0
        %3756 = vmatprep.mubr.f32.mxu0 0.0
        %3757 = vmatmul.mubr.f32.gmra.mrb[0].mxu0 %v3510
        %v3758 = vpop.f32.mrb[0].mxu0
        %v3759 = vadd.f32 0.0, %v3758
        %v3760 = vpop.f32.mrb[0].mxu0
        %3761 = vmatprep.mubr.f32.mxu0 0.0
        %3762 = vmatmul.mubr.f32.gmra.mrb[0].mxu0 %v3513
        %v3763 = vpop.f32.mrb[0].mxu0
        %v3764 = vadd.f32 0.0, %v3763
        %v3765 = vpop.f32.mrb[0].mxu0
        %3766 = vmatprep.mubr.f32.mxu0 0.0
        %3767 = vmatmul.mubr.f32.gmra.mrb[0].mxu0 %v3516
        %v3768 = vpop.f32.mrb[0].mxu0
        %v3769 = vadd.f32 0.0, %v3768
        %v3770 = vpop.f32.mrb[0].mxu0
        %3771 = vmatprep.mubr.f32.mxu0 0.0
        %3772 = vmatmul.mubr.f32.gmra.mrb[0].mxu0 %v3519
        %v3773 = vpop.f32.mrb[0].mxu0
        %v3774 = vadd.f32 0.0, %v3773
        %v3775 = vpop.f32.mrb[0].mxu0
        %3776 = vmatprep.mubr.f32.mxu0 0.0
        %3777 = vmatmul.mubr.f32.gmra.mrb[0].mxu0 %v3522
        %v3778 = vpop.f32.mrb[0].mxu0
        %v3779 = vadd.f32 0.0, %v3778
        %v3780 = vpop.f32.mrb[0].mxu0
        %3781 = vmatprep.mubr.f32.mxu0 0.0
        %3782 = vmatmul.mubr.f32.gmra.mrb[0].mxu0 %v3525
        %v3783 = vpop.f32.mrb[0].mxu0
        %v3784 = vadd.f32 0.0, %v3783
        %v3785 = vpop.f32.mrb[0].mxu0
        %3786 = vmatprep.mubr.f32.mxu0 0.0
        %3787 = vmatmul.mubr.f32.gmra.mrb[0].mxu0 %v3528
        %v3788 = vpop.f32.mrb[0].mxu0
        %v3789 = vadd.f32 0.0, %v3788
        %v3790 = vpop.f32.mrb[0].mxu0
        %3791 = vmatprep.mubr.f32.mxu0 0.0
        %3792 = vmatmul.mubr.f32.gmra.mrb[0].mxu0 %v3531
        %v3793 = vpop.f32.mrb[0].mxu0
        %v3794 = vadd.f32 0.0, %v3793
        %v3795 = vpop.f32.mrb[0].mxu0
        %3796 = vmatprep.mubr.f32.mxu0 0.0
        %3797 = vmatmul.mubr.f32.gmra.mrb[0].mxu0 %v3534
        %v3798 = vpop.f32.mrb[0].mxu0
        %v3799 = vadd.f32 0.0, %v3798
        %v3800 = vpop.f32.mrb[0].mxu0
        %3801 = vmatprep.mubr.f32.mxu0 0.0
        %3802 = vmatmul.mubr.f32.gmra.mrb[0].mxu0 %v3537
        %v3803 = vpop.f32.mrb[0].mxu0
        %v3804 = vadd.f32 0.0, %v3803
        %v3805 = vpop.f32.mrb[0].mxu0
        %3806 = vmatprep.mubr.f32.mxu0 0.0
        %3807 = vmatmul.mubr.f32.gmra.mrb[0].mxu0 %v3540
        %v3808 = vpop.f32.mrb[0].mxu0
        %v3809 = vadd.f32 0.0, %v3808
        %v3810 = vpop.f32.mrb[0].mxu0
        %3811 = vmatprep.mubr.f32.mxu0 0.0
        %3812 = vmatmul.mubr.f32.gmra.mrb[0].mxu0 %v3543
        %v3813 = vpop.f32.mrb[0].mxu0
        %v3814 = vadd.f32 0.0, %v3813
        %v3815 = vpop.f32.mrb[0].mxu0
        %3816 = vmatprep.mubr.f32.mxu0 0.0
        %3817 = vmatmul.mubr.f32.gmra.mrb[0].mxu0 %v3546
        %v3818 = vpop.f32.mrb[0].mxu0
        %v3819 = vadd.f32 0.0, %v3818
        %v3820 = vpop.f32.mrb[0].mxu0
        %3821 = vmatprep.mubr.f32.mxu0 0.0
        %3822 = vmatmul.mubr.f32.gmra.mrb[0].mxu0 %v3549
        %v3823 = vpop.f32.mrb[0].mxu0
        %v3824 = vadd.f32 0.0, %v3823
        %v3825 = vpop.f32.mrb[0].mxu0
        %3826 = vmatprep.mubr.f32.mxu0 0.0
        %3827 = vmatmul.mubr.f32.gmra.mrb[0].mxu0 %v3552
        %v3828 = vpop.f32.mrb[0].mxu0
        %v3829 = vadd.f32 0.0, %v3828
        %v3830 = vpop.f32.mrb[0].mxu0
        %3831 = vmatprep.mubr.f32.mxu0 0.0
        %3832 = vmatmul.mubr.f32.gmra.mrb[0].mxu0 %v3555
        %v3833 = vpop.f32.mrb[0].mxu0
        %v3834 = vadd.f32 0.0, %v3833
        %v3835 = vpop.f32.mrb[0].mxu0
        %3836 = vmatprep.mubr.f32.mxu0 0.0
        %3837 = vmatmul.mubr.f32.gmra.mrb[0].mxu0 %v3558
        %v3838 = vpop.f32.mrb[0].mxu0
        %v3839 = vadd.f32 0.0, %v3838
        %v3840 = vpop.f32.mrb[0].mxu0
        %3841 = vmatprep.mubr.f32.mxu0 0.0
        %3842 = vmatmul.mubr.f32.gmra.mrb[0].mxu0 %v3561
        %v3843 = vpop.f32.mrb[0].mxu0
        %v3844 = vadd.f32 0.0, %v3843
        %v3845 = vpop.f32.mrb[0].mxu0
        %3846 = vmatprep.mubr.f32.mxu0 0.0
        %3847 = vmatmul.mubr.f32.gmra.mrb[0].mxu0 %v3564
        %v3848 = vpop.f32.mrb[0].mxu0
        %v3849 = vadd.f32 0.0, %v3848
        %v3850 = vpop.f32.mrb[0].mxu0
        %3851 = vmatprep.mubr.f32.mxu0 0.0
        %3852 = vmatmul.mubr.f32.gmra.mrb[0].mxu0 %v3567
        %v3853 = vpop.f32.mrb[0].mxu0
        %v3854 = vadd.f32 0.0, %v3853
        %v3855 = vpop.f32.mrb[0].mxu0
        %3856 = vmatprep.mubr.f32.mxu0 0.0
        %3857 = vmatmul.mubr.f32.gmra.mrb[0].mxu0 %v3570
        %v3858 = vpop.f32.mrb[0].mxu0
        %v3859 = vadd.f32 0.0, %v3858
        %v3860 = vpop.f32.mrb[0].mxu0
        %3861 = vmatprep.mubr.f32.mxu0 0.0
        %3862 = vmatmul.mubr.f32.gmra.mrb[0].mxu0 %v3573
        %v3863 = vpop.f32.mrb[0].mxu0
        %v3864 = vadd.f32 0.0, %v3863
        %v3865 = vpop.f32.mrb[0].mxu0
        %3866 = vmatprep.mubr.f32.mxu0 0.0
        %3867 = vmatmul.mubr.f32.gmra.mrb[0].mxu0 %v3576
        %v3868 = vpop.f32.mrb[0].mxu0
        %v3869 = vadd.f32 0.0, %v3868
        %v3870 = vpop.f32.mrb[0].mxu0
        %3871 = vmatprep.mubr.f32.mxu0 0.0
        %3872 = vmatmul.mubr.f32.gmra.mrb[0].mxu0 %v3579
        %v3873 = vpop.f32.mrb[0].mxu0
        %v3874 = vadd.f32 0.0, %v3873
        %v3875 = vpop.f32.mrb[0].mxu0
        %3876 = vmatprep.mubr.f32.mxu0 0.0
        %3877 = vmatmul.mubr.f32.gmra.mrb[0].mxu0 %v3582
        %v3878 = vpop.f32.mrb[0].mxu0
        %v3879 = vadd.f32 0.0, %v3878
        %v3880 = vpop.f32.mrb[0].mxu0
        %3881 = vmatprep.mubr.f32.mxu0 0.0
        %3882 = vmatmul.mubr.f32.gmra.mrb[0].mxu0 %v3585
        %v3883 = vpop.f32.mrb[0].mxu0
        %v3884 = vadd.f32 0.0, %v3883
        %v3885 = vpop.f32.mrb[0].mxu0
        %3886 = vmatprep.mubr.f32.mxu0 0.0
        %3887 = vmatmul.mubr.f32.gmra.mrb[0].mxu0 %v3588
        %v3888 = vpop.f32.mrb[0].mxu0
        %v3889 = vadd.f32 0.0, %v3888
        %v3890 = vpop.f32.mrb[0].mxu0
        %3891 = vmatprep.mubr.f32.mxu0 0.0
        %3892 = vmatmul.mubr.f32.gmra.mrb[0].mxu0 %v3591
        %v3893 = vpop.f32.mrb[0].mxu0
        %v3894 = vadd.f32 0.0, %v3893
        %v3895 = vpop.f32.mrb[0].mxu0
        %3896 = vmatprep.mubr.f32.mxu0 0.0
        %3897 = vmatmul.mubr.f32.gmra.mrb[0].mxu0 %v3594
        %v3898 = vpop.f32.mrb[0].mxu0
        %v3899 = vadd.f32 0.0, %v3898
        %v3900 = vpop.f32.mrb[0].mxu0
        %3901 = vmatprep.mubr.f32.mxu0 0.0
        %3902 = vmatmul.mubr.f32.gmra.mrb[0].mxu0 %v3597
        %v3903 = vpop.f32.mrb[0].mxu0
        %v3904 = vadd.f32 0.0, %v3903
        %v3905 = vpop.f32.mrb[0].mxu0
        %3906 = vdwg.mxu0
        %v3907 = vadd.f32 %v3357, %v3669
        %v3908 = vadd.f32 %v3358, %v3674
        %v3909 = vadd.f32 %v3359, %v3679
        %v3910 = vadd.f32 %v3360, %v3684
        %v3911 = vadd.f32 %v3361, %v3689
        %v3912 = vadd.f32 %v3362, %v3694
        %v3913 = vadd.f32 %v3363, %v3699
        %v3914 = vadd.f32 %v3364, %v3704
        %v3915 = vadd.f32 %v3365, %v3709
        %v3916 = vadd.f32 %v3366, %v3714
        %v3917 = vadd.f32 %v3367, %v3719
        %v3918 = vadd.f32 %v3368, %v3724
        %v3919 = vadd.f32 %v3369, %v3729
        %v3920 = vadd.f32 %v3370, %v3734
        %v3921 = vadd.f32 %v3371, %v3739
        %v3922 = vadd.f32 %v3372, %v3744
        %v3923 = vadd.f32 %v3373, %v3749
        %v3924 = vadd.f32 %v3374, %v3754
        %v3925 = vadd.f32 %v3375, %v3759
        %v3926 = vadd.f32 %v3376, %v3764
        %v3927 = vadd.f32 %v3377, %v3769
        %v3928 = vadd.f32 %v3378, %v3774
        %v3929 = vadd.f32 %v3379, %v3779
        %v3930 = vadd.f32 %v3380, %v3784
        %v3931 = vadd.f32 %v3381, %v3789
        %v3932 = vadd.f32 %v3382, %v3794
        %v3933 = vadd.f32 %v3383, %v3799
        %v3934 = vadd.f32 %v3384, %v3804
        %v3935 = vadd.f32 %v3385, %v3809
        %v3936 = vadd.f32 %v3386, %v3814
        %v3937 = vadd.f32 %v3387, %v3819
        %v3938 = vadd.f32 %v3388, %v3824
        %v3939 = vadd.f32 %v3389, %v3829
        %v3940 = vadd.f32 %v3390, %v3834
        %v3941 = vadd.f32 %v3391, %v3839
        %v3942 = vadd.f32 %v3392, %v3844
        %v3943 = vadd.f32 %v3393, %v3849
        %v3944 = vadd.f32 %v3394, %v3854
        %v3945 = vadd.f32 %v3395, %v3859
        %v3946 = vadd.f32 %v3396, %v3864
        %v3947 = vadd.f32 %v3397, %v3869
        %v3948 = vadd.f32 %v3398, %v3874
        %v3949 = vadd.f32 %v3399, %v3879
        %v3950 = vadd.f32 %v3400, %v3884
        %v3951 = vadd.f32 %v3401, %v3889
        %v3952 = vadd.f32 %v3402, %v3894
        %v3953 = vadd.f32 %v3403, %v3899
        %v3954 = vadd.f32 %v3404, %v3904
        %v3955 = vld [vmem:[%s195 + $0x31] sm:$0xff]
        %v3956 = vld [vmem:[%s195 + $0x39] sm:$0xff]
        %v3957 = vld [vmem:[%s195 + $0x41] sm:$0xff]
        %v3958 = vld [vmem:[%s195 + $0x49] sm:$0xff]
        %v3959 = vld [vmem:[%s195 + $0x51] sm:$0xff]
        %v3960 = vld [vmem:[%s195 + $0x59] sm:$0xff]
        %v3961 = vld [vmem:[%s195 + $0x61] sm:$0xff]
        %v3962 = vld [vmem:[%s195 + $0x69] sm:$0xff]
        %v3963 = vld [vmem:[%s195 + $0x71] sm:$0xff]
        %v3964 = vld [vmem:[%s195 + $0x79] sm:$0xff]
        %v3965 = vld [vmem:[%s195 + $0x81] sm:$0xff]
        %v3966 = vld [vmem:[%s195 + $0x89] sm:$0xff]
        %v3967 = vld [vmem:[%s195 + $0x91] sm:$0xff]
        %v3968 = vld [vmem:[%s195 + $0x99] sm:$0xff]
        %v3969 = vld [vmem:[%s195 + $0xa1] sm:$0xff]
        %v3970 = vld [vmem:[%s195 + $0xa9] sm:$0xff]
        %v3971 = vld [vmem:[%s195 + $0xb1] sm:$0xff]
        %v3972 = vld [vmem:[%s195 + $0xb9] sm:$0xff]
        %v3973 = vld [vmem:[%s195 + $0xc1] sm:$0xff]
        %v3974 = vld [vmem:[%s195 + $0xc9] sm:$0xff]
        %v3975 = vld [vmem:[%s195 + $0xd1] sm:$0xff]
        %v3976 = vld [vmem:[%s195 + $0xd9] sm:$0xff]
        %v3977 = vld [vmem:[%s195 + $0xe1] sm:$0xff]
        %v3978 = vld [vmem:[%s195 + $0xe9] sm:$0xff]
        %v3979 = vld [vmem:[%s195 + $0xf1] sm:$0xff]
        %v3980 = vld [vmem:[%s195 + $0xf9] sm:$0xff]
        %v3981 = vld [vmem:[%s195 + $0x101] sm:$0xff]
        %v3982 = vld [vmem:[%s195 + $0x109] sm:$0xff]
        %v3983 = vld [vmem:[%s195 + $0x111] sm:$0xff]
        %v3984 = vld [vmem:[%s195 + $0x119] sm:$0xff]
        %v3985 = vld [vmem:[%s195 + $0x121] sm:$0xff]
        %v3986 = vld [vmem:[%s195 + $0x129] sm:$0xff]
        %v3987 = vld [vmem:[%s195 + $0x131] sm:$0xff]
        %v3988 = vld [vmem:[%s195 + $0x139] sm:$0xff]
        %v3989 = vld [vmem:[%s195 + $0x141] sm:$0xff]
        %v3990 = vld [vmem:[%s195 + $0x149] sm:$0xff]
        %v3991 = vld [vmem:[%s195 + $0x151] sm:$0xff]
        %v3992 = vld [vmem:[%s195 + $0x159] sm:$0xff]
        %v3993 = vld [vmem:[%s195 + $0x161] sm:$0xff]
        %v3994 = vld [vmem:[%s195 + $0x169] sm:$0xff]
        %v3995 = vld [vmem:[%s195 + $0x171] sm:$0xff]
        %v3996 = vld [vmem:[%s195 + $0x179] sm:$0xff]
        %v3997 = vld [vmem:[%s195 + $0x181] sm:$0xff]
        %v3998 = vld [vmem:[%s195 + $0x189] sm:$0xff]
        %v3999 = vld [vmem:[%s195 + $0x191] sm:$0xff]
        %v4000 = vld [vmem:[%s195 + $0x199] sm:$0xff]
        %v4001 = vld [vmem:[%s195 + $0x1a1] sm:$0xff]
        %v4002 = vld [vmem:[%s195 + $0x1a9] sm:$0xff]
        %s4003 = scalar_lea.vmem %s199, 28
        %v4004 = vld [vmem:[%s4003] sm:$0xf]
        %v4006 = vsel %vm299, %v3955, 0
        %v4009 = vsel %vm299, %v3956, 0
        %v4012 = vsel %vm299, %v3957, 0
        %v4015 = vsel %vm299, %v3958, 0
        %v4018 = vsel %vm299, %v3959, 0
        %v4021 = vsel %vm299, %v3960, 0
        %v4024 = vsel %vm299, %v3961, 0
        %v4027 = vsel %vm299, %v3962, 0
        %v4030 = vsel %vm299, %v3963, 0
        %v4033 = vsel %vm299, %v3964, 0
        %v4036 = vsel %vm299, %v3965, 0
        %v4039 = vsel %vm299, %v3966, 0
        %v4042 = vsel %vm299, %v3967, 0
        %v4045 = vsel %vm299, %v3968, 0
        %v4048 = vsel %vm299, %v3969, 0
        %v4051 = vsel %vm299, %v3970, 0
        %v4054 = vsel %vm299, %v3971, 0
        %v4057 = vsel %vm299, %v3972, 0
        %v4060 = vsel %vm299, %v3973, 0
        %v4063 = vsel %vm299, %v3974, 0
        %v4066 = vsel %vm299, %v3975, 0
        %v4069 = vsel %vm299, %v3976, 0
        %v4072 = vsel %vm299, %v3977, 0
        %v4075 = vsel %vm299, %v3978, 0
        %v4078 = vsel %vm299, %v3979, 0
        %v4081 = vsel %vm299, %v3980, 0
        %v4084 = vsel %vm299, %v3981, 0
        %v4087 = vsel %vm299, %v3982, 0
        %v4090 = vsel %vm299, %v3983, 0
        %v4093 = vsel %vm299, %v3984, 0
        %v4096 = vsel %vm299, %v3985, 0
        %v4099 = vsel %vm299, %v3986, 0
        %v4102 = vsel %vm299, %v3987, 0
        %v4105 = vsel %vm299, %v3988, 0
        %v4108 = vsel %vm299, %v3989, 0
        %v4111 = vsel %vm299, %v3990, 0
        %v4114 = vsel %vm299, %v3991, 0
        %v4117 = vsel %vm299, %v3992, 0
        %v4120 = vsel %vm299, %v3993, 0
        %v4123 = vsel %vm299, %v3994, 0
        %v4126 = vsel %vm299, %v3995, 0
        %v4129 = vsel %vm299, %v3996, 0
        %v4132 = vsel %vm299, %v3997, 0
        %v4135 = vsel %vm299, %v3998, 0
        %v4138 = vsel %vm299, %v3999, 0
        %v4141 = vsel %vm299, %v4000, 0
        %v4144 = vsel %vm299, %v4001, 0
        %v4147 = vsel %vm299, %v4002, 0
        %v4150 = vsel %vm444, %v4004, 0
        %4152 = vmatprep.subr.mxu0 0.0
        %4153 = vmatpush1.msra.mxu0 %v4150
        %4154 = vmatprep.subr.mxu0 0.0
        %4155 = vmatpush1.msra.mxu0 0.0
        %4156 = vmatprep.subr.mxu0 0.0
        %4157 = vmatpush1.msra.mxu0 0.0
        %4158 = vmatprep.subr.mxu0 0.0
        %4159 = vmatpush1.msra.mxu0 0.0
        %4160 = vmatprep.subr.mxu0 0.0
        %4161 = vmatpush1.msra.mxu0 0.0
        %4162 = vmatprep.subr.mxu0 0.0
        %4163 = vmatpush1.msra.mxu0 0.0
        %4164 = vmatprep.subr.mxu0 0.0
        %4165 = vmatpush1.msra.mxu0 0.0
        %4166 = vmatprep.subr.mxu0 0.0
        %4167 = vmatpush1.msra.mxu0 0.0
        %4168 = vmatprep.subr.mxu0 0.0
        %4169 = vmatpush1.msra.mxu0 0.0
        %4170 = vmatprep.subr.mxu0 0.0
        %4171 = vmatpush1.msra.mxu0 0.0
        %4172 = vmatprep.subr.mxu0 0.0
        %4173 = vmatpush1.msra.mxu0 0.0
        %4174 = vmatprep.subr.mxu0 0.0
        %4175 = vmatpush1.msra.mxu0 0.0
        %4176 = vmatprep.subr.mxu0 0.0
        %4177 = vmatpush1.msra.mxu0 0.0
        %4178 = vmatprep.subr.mxu0 0.0
        %4179 = vmatpush1.msra.mxu0 0.0
        %4180 = vmatprep.subr.mxu0 0.0
        %4181 = vmatpush1.msra.mxu0 0.0
        %4182 = vmatprep.subr.mxu0 0.0
        %4183 = vmatpush1.msra.mxu0 0.0
        %4184 = vmatprep.subr.mxu0 0.0
        %4185 = vmatpush1.msra.mxu0 0.0
        %4186 = vmatprep.subr.mxu0 0.0
        %4187 = vmatpush1.msra.mxu0 0.0
        %4188 = vmatprep.subr.mxu0 0.0
        %4189 = vmatpush1.msra.mxu0 0.0
        %4190 = vmatprep.subr.mxu0 0.0
        %4191 = vmatpush1.msra.mxu0 0.0
        %4192 = vmatprep.subr.mxu0 0.0
        %4193 = vmatpush1.msra.mxu0 0.0
        %4194 = vmatprep.subr.mxu0 0.0
        %4195 = vmatpush1.msra.mxu0 0.0
        %4196 = vmatprep.subr.mxu0 0.0
        %4197 = vmatpush1.msra.mxu0 0.0
        %4198 = vmatprep.subr.mxu0 0.0
        %4199 = vmatpush1.msra.mxu0 0.0
        %4200 = vmatprep.subr.mxu0 0.0
        %4201 = vmatpush1.msra.mxu0 0.0
        %4202 = vmatprep.subr.mxu0 0.0
        %4203 = vmatpush1.msra.mxu0 0.0
        %4204 = vmatprep.subr.mxu0 0.0
        %4205 = vmatpush1.msra.mxu0 0.0
        %4206 = vmatprep.subr.mxu0 0.0
        %4207 = vmatpush1.msra.mxu0 0.0
        %4208 = vmatprep.subr.mxu0 0.0
        %4209 = vmatpush1.msra.mxu0 0.0
        %4210 = vmatprep.subr.mxu0 0.0
        %4211 = vmatpush1.msra.mxu0 0.0
        %4212 = vmatprep.subr.mxu0 0.0
        %4213 = vmatpush1.msra.mxu0 0.0
        %4214 = vmatprep.subr.mxu0 0.0
        %4215 = vmatpush1.msra.mxu0 0.0
        %4216 = vmatprep.mubr.f32.mxu0 0.0
        %4217 = vmatmul.mubr.f32.gmra.mrb[0].mxu0 %v4006
        %v4218 = vpop.f32.mrb[0].mxu0
        %v4219 = vadd.f32 0.0, %v4218
        %v4220 = vpop.f32.mrb[0].mxu0
        %4221 = vmatprep.mubr.f32.mxu0 0.0
        %4222 = vmatmul.mubr.f32.gmra.mrb[0].mxu0 %v4009
        %v4223 = vpop.f32.mrb[0].mxu0
        %v4224 = vadd.f32 0.0, %v4223
        %v4225 = vpop.f32.mrb[0].mxu0
        %4226 = vmatprep.mubr.f32.mxu0 0.0
        %4227 = vmatmul.mubr.f32.gmra.mrb[0].mxu0 %v4012
        %v4228 = vpop.f32.mrb[0].mxu0
        %v4229 = vadd.f32 0.0, %v4228
        %v4230 = vpop.f32.mrb[0].mxu0
        %4231 = vmatprep.mubr.f32.mxu0 0.0
        %4232 = vmatmul.mubr.f32.gmra.mrb[0].mxu0 %v4015
        %v4233 = vpop.f32.mrb[0].mxu0
        %v4234 = vadd.f32 0.0, %v4233
        %v4235 = vpop.f32.mrb[0].mxu0
        %4236 = vmatprep.mubr.f32.mxu0 0.0
        %4237 = vmatmul.mubr.f32.gmra.mrb[0].mxu0 %v4018
        %v4238 = vpop.f32.mrb[0].mxu0
        %v4239 = vadd.f32 0.0, %v4238
        %v4240 = vpop.f32.mrb[0].mxu0
        %4241 = vmatprep.mubr.f32.mxu0 0.0
        %4242 = vmatmul.mubr.f32.gmra.mrb[0].mxu0 %v4021
        %v4243 = vpop.f32.mrb[0].mxu0
        %v4244 = vadd.f32 0.0, %v4243
        %v4245 = vpop.f32.mrb[0].mxu0
        %4246 = vmatprep.mubr.f32.mxu0 0.0
        %4247 = vmatmul.mubr.f32.gmra.mrb[0].mxu0 %v4024
        %v4248 = vpop.f32.mrb[0].mxu0
        %v4249 = vadd.f32 0.0, %v4248
        %v4250 = vpop.f32.mrb[0].mxu0
        %4251 = vmatprep.mubr.f32.mxu0 0.0
        %4252 = vmatmul.mubr.f32.gmra.mrb[0].mxu0 %v4027
        %v4253 = vpop.f32.mrb[0].mxu0
        %v4254 = vadd.f32 0.0, %v4253
        %v4255 = vpop.f32.mrb[0].mxu0
        %4256 = vmatprep.mubr.f32.mxu0 0.0
        %4257 = vmatmul.mubr.f32.gmra.mrb[0].mxu0 %v4030
        %v4258 = vpop.f32.mrb[0].mxu0
        %v4259 = vadd.f32 0.0, %v4258
        %v4260 = vpop.f32.mrb[0].mxu0
        %4261 = vmatprep.mubr.f32.mxu0 0.0
        %4262 = vmatmul.mubr.f32.gmra.mrb[0].mxu0 %v4033
        %v4263 = vpop.f32.mrb[0].mxu0
        %v4264 = vadd.f32 0.0, %v4263
        %v4265 = vpop.f32.mrb[0].mxu0
        %4266 = vmatprep.mubr.f32.mxu0 0.0
        %4267 = vmatmul.mubr.f32.gmra.mrb[0].mxu0 %v4036
        %v4268 = vpop.f32.mrb[0].mxu0
        %v4269 = vadd.f32 0.0, %v4268
        %v4270 = vpop.f32.mrb[0].mxu0
        %4271 = vmatprep.mubr.f32.mxu0 0.0
        %4272 = vmatmul.mubr.f32.gmra.mrb[0].mxu0 %v4039
        %v4273 = vpop.f32.mrb[0].mxu0
        %v4274 = vadd.f32 0.0, %v4273
        %v4275 = vpop.f32.mrb[0].mxu0
        %4276 = vmatprep.mubr.f32.mxu0 0.0
        %4277 = vmatmul.mubr.f32.gmra.mrb[0].mxu0 %v4042
        %v4278 = vpop.f32.mrb[0].mxu0
        %v4279 = vadd.f32 0.0, %v4278
        %v4280 = vpop.f32.mrb[0].mxu0
        %4281 = vmatprep.mubr.f32.mxu0 0.0
        %4282 = vmatmul.mubr.f32.gmra.mrb[0].mxu0 %v4045
        %v4283 = vpop.f32.mrb[0].mxu0
        %v4284 = vadd.f32 0.0, %v4283
        %v4285 = vpop.f32.mrb[0].mxu0
        %4286 = vmatprep.mubr.f32.mxu0 0.0
        %4287 = vmatmul.mubr.f32.gmra.mrb[0].mxu0 %v4048
        %v4288 = vpop.f32.mrb[0].mxu0
        %v4289 = vadd.f32 0.0, %v4288
        %v4290 = vpop.f32.mrb[0].mxu0
        %4291 = vmatprep.mubr.f32.mxu0 0.0
        %4292 = vmatmul.mubr.f32.gmra.mrb[0].mxu0 %v4051
        %v4293 = vpop.f32.mrb[0].mxu0
        %v4294 = vadd.f32 0.0, %v4293
        %v4295 = vpop.f32.mrb[0].mxu0
        %4296 = vmatprep.mubr.f32.mxu0 0.0
        %4297 = vmatmul.mubr.f32.gmra.mrb[0].mxu0 %v4054
        %v4298 = vpop.f32.mrb[0].mxu0
        %v4299 = vadd.f32 0.0, %v4298
        %v4300 = vpop.f32.mrb[0].mxu0
        %4301 = vmatprep.mubr.f32.mxu0 0.0
        %4302 = vmatmul.mubr.f32.gmra.mrb[0].mxu0 %v4057
        %v4303 = vpop.f32.mrb[0].mxu0
        %v4304 = vadd.f32 0.0, %v4303
        %v4305 = vpop.f32.mrb[0].mxu0
        %4306 = vmatprep.mubr.f32.mxu0 0.0
        %4307 = vmatmul.mubr.f32.gmra.mrb[0].mxu0 %v4060
        %v4308 = vpop.f32.mrb[0].mxu0
        %v4309 = vadd.f32 0.0, %v4308
        %v4310 = vpop.f32.mrb[0].mxu0
        %4311 = vmatprep.mubr.f32.mxu0 0.0
        %4312 = vmatmul.mubr.f32.gmra.mrb[0].mxu0 %v4063
        %v4313 = vpop.f32.mrb[0].mxu0
        %v4314 = vadd.f32 0.0, %v4313
        %v4315 = vpop.f32.mrb[0].mxu0
        %4316 = vmatprep.mubr.f32.mxu0 0.0
        %4317 = vmatmul.mubr.f32.gmra.mrb[0].mxu0 %v4066
        %v4318 = vpop.f32.mrb[0].mxu0
        %v4319 = vadd.f32 0.0, %v4318
        %v4320 = vpop.f32.mrb[0].mxu0
        %4321 = vmatprep.mubr.f32.mxu0 0.0
        %4322 = vmatmul.mubr.f32.gmra.mrb[0].mxu0 %v4069
        %v4323 = vpop.f32.mrb[0].mxu0
        %v4324 = vadd.f32 0.0, %v4323
        %v4325 = vpop.f32.mrb[0].mxu0
        %4326 = vmatprep.mubr.f32.mxu0 0.0
        %4327 = vmatmul.mubr.f32.gmra.mrb[0].mxu0 %v4072
        %v4328 = vpop.f32.mrb[0].mxu0
        %v4329 = vadd.f32 0.0, %v4328
        %v4330 = vpop.f32.mrb[0].mxu0
        %4331 = vmatprep.mubr.f32.mxu0 0.0
        %4332 = vmatmul.mubr.f32.gmra.mrb[0].mxu0 %v4075
        %v4333 = vpop.f32.mrb[0].mxu0
        %v4334 = vadd.f32 0.0, %v4333
        %v4335 = vpop.f32.mrb[0].mxu0
        %4336 = vmatprep.mubr.f32.mxu0 0.0
        %4337 = vmatmul.mubr.f32.gmra.mrb[0].mxu0 %v4078
        %v4338 = vpop.f32.mrb[0].mxu0
        %v4339 = vadd.f32 0.0, %v4338
        %v4340 = vpop.f32.mrb[0].mxu0
        %4341 = vmatprep.mubr.f32.mxu0 0.0
        %4342 = vmatmul.mubr.f32.gmra.mrb[0].mxu0 %v4081
        %v4343 = vpop.f32.mrb[0].mxu0
        %v4344 = vadd.f32 0.0, %v4343
        %v4345 = vpop.f32.mrb[0].mxu0
        %4346 = vmatprep.mubr.f32.mxu0 0.0
        %4347 = vmatmul.mubr.f32.gmra.mrb[0].mxu0 %v4084
        %v4348 = vpop.f32.mrb[0].mxu0
        %v4349 = vadd.f32 0.0, %v4348
        %v4350 = vpop.f32.mrb[0].mxu0
        %4351 = vmatprep.mubr.f32.mxu0 0.0
        %4352 = vmatmul.mubr.f32.gmra.mrb[0].mxu0 %v4087
        %v4353 = vpop.f32.mrb[0].mxu0
        %v4354 = vadd.f32 0.0, %v4353
        %v4355 = vpop.f32.mrb[0].mxu0
        %4356 = vmatprep.mubr.f32.mxu0 0.0
        %4357 = vmatmul.mubr.f32.gmra.mrb[0].mxu0 %v4090
        %v4358 = vpop.f32.mrb[0].mxu0
        %v4359 = vadd.f32 0.0, %v4358
        %v4360 = vpop.f32.mrb[0].mxu0
        %4361 = vmatprep.mubr.f32.mxu0 0.0
        %4362 = vmatmul.mubr.f32.gmra.mrb[0].mxu0 %v4093
        %v4363 = vpop.f32.mrb[0].mxu0
        %v4364 = vadd.f32 0.0, %v4363
        %v4365 = vpop.f32.mrb[0].mxu0
        %4366 = vmatprep.mubr.f32.mxu0 0.0
        %4367 = vmatmul.mubr.f32.gmra.mrb[0].mxu0 %v4096
        %v4368 = vpop.f32.mrb[0].mxu0
        %v4369 = vadd.f32 0.0, %v4368
        %v4370 = vpop.f32.mrb[0].mxu0
        %4371 = vmatprep.mubr.f32.mxu0 0.0
        %4372 = vmatmul.mubr.f32.gmra.mrb[0].mxu0 %v4099
        %v4373 = vpop.f32.mrb[0].mxu0
        %v4374 = vadd.f32 0.0, %v4373
        %v4375 = vpop.f32.mrb[0].mxu0
        %4376 = vmatprep.mubr.f32.mxu0 0.0
        %4377 = vmatmul.mubr.f32.gmra.mrb[0].mxu0 %v4102
        %v4378 = vpop.f32.mrb[0].mxu0
        %v4379 = vadd.f32 0.0, %v4378
        %v4380 = vpop.f32.mrb[0].mxu0
        %4381 = vmatprep.mubr.f32.mxu0 0.0
        %4382 = vmatmul.mubr.f32.gmra.mrb[0].mxu0 %v4105
        %v4383 = vpop.f32.mrb[0].mxu0
        %v4384 = vadd.f32 0.0, %v4383
        %v4385 = vpop.f32.mrb[0].mxu0
        %4386 = vmatprep.mubr.f32.mxu0 0.0
        %4387 = vmatmul.mubr.f32.gmra.mrb[0].mxu0 %v4108
        %v4388 = vpop.f32.mrb[0].mxu0
        %v4389 = vadd.f32 0.0, %v4388
        %v4390 = vpop.f32.mrb[0].mxu0
        %4391 = vmatprep.mubr.f32.mxu0 0.0
        %4392 = vmatmul.mubr.f32.gmra.mrb[0].mxu0 %v4111
        %v4393 = vpop.f32.mrb[0].mxu0
        %v4394 = vadd.f32 0.0, %v4393
        %v4395 = vpop.f32.mrb[0].mxu0
        %4396 = vmatprep.mubr.f32.mxu0 0.0
        %4397 = vmatmul.mubr.f32.gmra.mrb[0].mxu0 %v4114
        %v4398 = vpop.f32.mrb[0].mxu0
        %v4399 = vadd.f32 0.0, %v4398
        %v4400 = vpop.f32.mrb[0].mxu0
        %4401 = vmatprep.mubr.f32.mxu0 0.0
        %4402 = vmatmul.mubr.f32.gmra.mrb[0].mxu0 %v4117
        %v4403 = vpop.f32.mrb[0].mxu0
        %v4404 = vadd.f32 0.0, %v4403
        %v4405 = vpop.f32.mrb[0].mxu0
        %4406 = vmatprep.mubr.f32.mxu0 0.0
        %4407 = vmatmul.mubr.f32.gmra.mrb[0].mxu0 %v4120
        %v4408 = vpop.f32.mrb[0].mxu0
        %v4409 = vadd.f32 0.0, %v4408
        %v4410 = vpop.f32.mrb[0].mxu0
        %4411 = vmatprep.mubr.f32.mxu0 0.0
        %4412 = vmatmul.mubr.f32.gmra.mrb[0].mxu0 %v4123
        %v4413 = vpop.f32.mrb[0].mxu0
        %v4414 = vadd.f32 0.0, %v4413
        %v4415 = vpop.f32.mrb[0].mxu0
        %4416 = vmatprep.mubr.f32.mxu0 0.0
        %4417 = vmatmul.mubr.f32.gmra.mrb[0].mxu0 %v4126
        %v4418 = vpop.f32.mrb[0].mxu0
        %v4419 = vadd.f32 0.0, %v4418
        %v4420 = vpop.f32.mrb[0].mxu0
        %4421 = vmatprep.mubr.f32.mxu0 0.0
        %4422 = vmatmul.mubr.f32.gmra.mrb[0].mxu0 %v4129
        %v4423 = vpop.f32.mrb[0].mxu0
        %v4424 = vadd.f32 0.0, %v4423
        %v4425 = vpop.f32.mrb[0].mxu0
        %4426 = vmatprep.mubr.f32.mxu0 0.0
        %4427 = vmatmul.mubr.f32.gmra.mrb[0].mxu0 %v4132
        %v4428 = vpop.f32.mrb[0].mxu0
        %v4429 = vadd.f32 0.0, %v4428
        %v4430 = vpop.f32.mrb[0].mxu0
        %4431 = vmatprep.mubr.f32.mxu0 0.0
        %4432 = vmatmul.mubr.f32.gmra.mrb[0].mxu0 %v4135
        %v4433 = vpop.f32.mrb[0].mxu0
        %v4434 = vadd.f32 0.0, %v4433
        %v4435 = vpop.f32.mrb[0].mxu0
        %4436 = vmatprep.mubr.f32.mxu0 0.0
        %4437 = vmatmul.mubr.f32.gmra.mrb[0].mxu0 %v4138
        %v4438 = vpop.f32.mrb[0].mxu0
        %v4439 = vadd.f32 0.0, %v4438
        %v4440 = vpop.f32.mrb[0].mxu0
        %4441 = vmatprep.mubr.f32.mxu0 0.0
        %4442 = vmatmul.mubr.f32.gmra.mrb[0].mxu0 %v4141
        %v4443 = vpop.f32.mrb[0].mxu0
        %v4444 = vadd.f32 0.0, %v4443
        %v4445 = vpop.f32.mrb[0].mxu0
        %4446 = vmatprep.mubr.f32.mxu0 0.0
        %4447 = vmatmul.mubr.f32.gmra.mrb[0].mxu0 %v4144
        %v4448 = vpop.f32.mrb[0].mxu0
        %v4449 = vadd.f32 0.0, %v4448
        %v4450 = vpop.f32.mrb[0].mxu0
        %4451 = vmatprep.mubr.f32.mxu0 0.0
        %4452 = vmatmul.mubr.f32.gmra.mrb[0].mxu0 %v4147
        %v4453 = vpop.f32.mrb[0].mxu0
        %v4454 = vadd.f32 0.0, %v4453
        %v4455 = vpop.f32.mrb[0].mxu0
        %4456 = vdwg.mxu0
        %v4457 = vadd.f32 %v3907, %v4219
        %v4458 = vadd.f32 %v3908, %v4224
        %v4459 = vadd.f32 %v3909, %v4229
        %v4460 = vadd.f32 %v3910, %v4234
        %v4461 = vadd.f32 %v3911, %v4239
        %v4462 = vadd.f32 %v3912, %v4244
        %v4463 = vadd.f32 %v3913, %v4249
        %v4464 = vadd.f32 %v3914, %v4254
        %v4465 = vadd.f32 %v3915, %v4259
        %v4466 = vadd.f32 %v3916, %v4264
        %v4467 = vadd.f32 %v3917, %v4269
        %v4468 = vadd.f32 %v3918, %v4274
        %v4469 = vadd.f32 %v3919, %v4279
        %v4470 = vadd.f32 %v3920, %v4284
        %v4471 = vadd.f32 %v3921, %v4289
        %v4472 = vadd.f32 %v3922, %v4294
        %v4473 = vadd.f32 %v3923, %v4299
        %v4474 = vadd.f32 %v3924, %v4304
        %v4475 = vadd.f32 %v3925, %v4309
        %v4476 = vadd.f32 %v3926, %v4314
        %v4477 = vadd.f32 %v3927, %v4319
        %v4478 = vadd.f32 %v3928, %v4324
        %v4479 = vadd.f32 %v3929, %v4329
        %v4480 = vadd.f32 %v3930, %v4334
        %v4481 = vadd.f32 %v3931, %v4339
        %v4482 = vadd.f32 %v3932, %v4344
        %v4483 = vadd.f32 %v3933, %v4349
        %v4484 = vadd.f32 %v3934, %v4354
        %v4485 = vadd.f32 %v3935, %v4359
        %v4486 = vadd.f32 %v3936, %v4364
        %v4487 = vadd.f32 %v3937, %v4369
        %v4488 = vadd.f32 %v3938, %v4374
        %v4489 = vadd.f32 %v3939, %v4379
        %v4490 = vadd.f32 %v3940, %v4384
        %v4491 = vadd.f32 %v3941, %v4389
        %v4492 = vadd.f32 %v3942, %v4394
        %v4493 = vadd.f32 %v3943, %v4399
        %v4494 = vadd.f32 %v3944, %v4404
        %v4495 = vadd.f32 %v3945, %v4409
        %v4496 = vadd.f32 %v3946, %v4414
        %v4497 = vadd.f32 %v3947, %v4419
        %v4498 = vadd.f32 %v3948, %v4424
        %v4499 = vadd.f32 %v3949, %v4429
        %v4500 = vadd.f32 %v3950, %v4434
        %v4501 = vadd.f32 %v3951, %v4439
        %v4502 = vadd.f32 %v3952, %v4444
        %v4503 = vadd.f32 %v3953, %v4449
        %v4504 = vadd.f32 %v3954, %v4454
        %v4505 = vld [vmem:[%s195 + $0x32] sm:$0xff]
        %v4506 = vld [vmem:[%s195 + $0x3a] sm:$0xff]
        %v4507 = vld [vmem:[%s195 + $0x42] sm:$0xff]
        %v4508 = vld [vmem:[%s195 + $0x4a] sm:$0xff]
        %v4509 = vld [vmem:[%s195 + $0x52] sm:$0xff]
        %v4510 = vld [vmem:[%s195 + $0x5a] sm:$0xff]
        %v4511 = vld [vmem:[%s195 + $0x62] sm:$0xff]
        %v4512 = vld [vmem:[%s195 + $0x6a] sm:$0xff]
        %v4513 = vld [vmem:[%s195 + $0x72] sm:$0xff]
        %v4514 = vld [vmem:[%s195 + $0x7a] sm:$0xff]
        %v4515 = vld [vmem:[%s195 + $0x82] sm:$0xff]
        %v4516 = vld [vmem:[%s195 + $0x8a] sm:$0xff]
        %v4517 = vld [vmem:[%s195 + $0x92] sm:$0xff]
        %v4518 = vld [vmem:[%s195 + $0x9a] sm:$0xff]
        %v4519 = vld [vmem:[%s195 + $0xa2] sm:$0xff]
        %v4520 = vld [vmem:[%s195 + $0xaa] sm:$0xff]
        %v4521 = vld [vmem:[%s195 + $0xb2] sm:$0xff]
        %v4522 = vld [vmem:[%s195 + $0xba] sm:$0xff]
        %v4523 = vld [vmem:[%s195 + $0xc2] sm:$0xff]
        %v4524 = vld [vmem:[%s195 + $0xca] sm:$0xff]
        %v4525 = vld [vmem:[%s195 + $0xd2] sm:$0xff]
        %v4526 = vld [vmem:[%s195 + $0xda] sm:$0xff]
        %v4527 = vld [vmem:[%s195 + $0xe2] sm:$0xff]
        %v4528 = vld [vmem:[%s195 + $0xea] sm:$0xff]
        %v4529 = vld [vmem:[%s195 + $0xf2] sm:$0xff]
        %v4530 = vld [vmem:[%s195 + $0xfa] sm:$0xff]
        %v4531 = vld [vmem:[%s195 + $0x102] sm:$0xff]
        %v4532 = vld [vmem:[%s195 + $0x10a] sm:$0xff]
        %v4533 = vld [vmem:[%s195 + $0x112] sm:$0xff]
        %v4534 = vld [vmem:[%s195 + $0x11a] sm:$0xff]
        %v4535 = vld [vmem:[%s195 + $0x122] sm:$0xff]
        %v4536 = vld [vmem:[%s195 + $0x12a] sm:$0xff]
        %v4537 = vld [vmem:[%s195 + $0x132] sm:$0xff]
        %v4538 = vld [vmem:[%s195 + $0x13a] sm:$0xff]
        %v4539 = vld [vmem:[%s195 + $0x142] sm:$0xff]
        %v4540 = vld [vmem:[%s195 + $0x14a] sm:$0xff]
        %v4541 = vld [vmem:[%s195 + $0x152] sm:$0xff]
        %v4542 = vld [vmem:[%s195 + $0x15a] sm:$0xff]
        %v4543 = vld [vmem:[%s195 + $0x162] sm:$0xff]
        %v4544 = vld [vmem:[%s195 + $0x16a] sm:$0xff]
        %v4545 = vld [vmem:[%s195 + $0x172] sm:$0xff]
        %v4546 = vld [vmem:[%s195 + $0x17a] sm:$0xff]
        %v4547 = vld [vmem:[%s195 + $0x182] sm:$0xff]
        %v4548 = vld [vmem:[%s195 + $0x18a] sm:$0xff]
        %v4549 = vld [vmem:[%s195 + $0x192] sm:$0xff]
        %v4550 = vld [vmem:[%s195 + $0x19a] sm:$0xff]
        %v4551 = vld [vmem:[%s195 + $0x1a2] sm:$0xff]
        %v4552 = vld [vmem:[%s195 + $0x1aa] sm:$0xff]
        %s4553 = scalar_lea.vmem %s199, 32
        %v4554 = vld [vmem:[%s4553] sm:$0xf]
        %v4556 = vsel %vm299, %v4505, 0
        %v4559 = vsel %vm299, %v4506, 0
        %v4562 = vsel %vm299, %v4507, 0
        %v4565 = vsel %vm299, %v4508, 0
        %v4568 = vsel %vm299, %v4509, 0
        %v4571 = vsel %vm299, %v4510, 0
        %v4574 = vsel %vm299, %v4511, 0
        %v4577 = vsel %vm299, %v4512, 0
        %v4580 = vsel %vm299, %v4513, 0
        %v4583 = vsel %vm299, %v4514, 0
        %v4586 = vsel %vm299, %v4515, 0
        %v4589 = vsel %vm299, %v4516, 0
        %v4592 = vsel %vm299, %v4517, 0
        %v4595 = vsel %vm299, %v4518, 0
        %v4598 = vsel %vm299, %v4519, 0
        %v4601 = vsel %vm299, %v4520, 0
        %v4604 = vsel %vm299, %v4521, 0
        %v4607 = vsel %vm299, %v4522, 0
        %v4610 = vsel %vm299, %v4523, 0
        %v4613 = vsel %vm299, %v4524, 0
        %v4616 = vsel %vm299, %v4525, 0
        %v4619 = vsel %vm299, %v4526, 0
        %v4622 = vsel %vm299, %v4527, 0
        %v4625 = vsel %vm299, %v4528, 0
        %v4628 = vsel %vm299, %v4529, 0
        %v4631 = vsel %vm299, %v4530, 0
        %v4634 = vsel %vm299, %v4531, 0
        %v4637 = vsel %vm299, %v4532, 0
        %v4640 = vsel %vm299, %v4533, 0
        %v4643 = vsel %vm299, %v4534, 0
        %v4646 = vsel %vm299, %v4535, 0
        %v4649 = vsel %vm299, %v4536, 0
        %v4652 = vsel %vm299, %v4537, 0
        %v4655 = vsel %vm299, %v4538, 0
        %v4658 = vsel %vm299, %v4539, 0
        %v4661 = vsel %vm299, %v4540, 0
        %v4664 = vsel %vm299, %v4541, 0
        %v4667 = vsel %vm299, %v4542, 0
        %v4670 = vsel %vm299, %v4543, 0
        %v4673 = vsel %vm299, %v4544, 0
        %v4676 = vsel %vm299, %v4545, 0
        %v4679 = vsel %vm299, %v4546, 0
        %v4682 = vsel %vm299, %v4547, 0
        %v4685 = vsel %vm299, %v4548, 0
        %v4688 = vsel %vm299, %v4549, 0
        %v4691 = vsel %vm299, %v4550, 0
        %v4694 = vsel %vm299, %v4551, 0
        %v4697 = vsel %vm299, %v4552, 0
        %v4700 = vsel %vm444, %v4554, 0
        %4702 = vmatprep.subr.mxu0 0.0
        %4703 = vmatpush1.msra.mxu0 %v4700
        %4704 = vmatprep.subr.mxu0 0.0
        %4705 = vmatpush1.msra.mxu0 0.0
        %4706 = vmatprep.subr.mxu0 0.0
        %4707 = vmatpush1.msra.mxu0 0.0
        %4708 = vmatprep.subr.mxu0 0.0
        %4709 = vmatpush1.msra.mxu0 0.0
        %4710 = vmatprep.subr.mxu0 0.0
        %4711 = vmatpush1.msra.mxu0 0.0
        %4712 = vmatprep.subr.mxu0 0.0
        %4713 = vmatpush1.msra.mxu0 0.0
        %4714 = vmatprep.subr.mxu0 0.0
        %4715 = vmatpush1.msra.mxu0 0.0
        %4716 = vmatprep.subr.mxu0 0.0
        %4717 = vmatpush1.msra.mxu0 0.0
        %4718 = vmatprep.subr.mxu0 0.0
        %4719 = vmatpush1.msra.mxu0 0.0
        %4720 = vmatprep.subr.mxu0 0.0
        %4721 = vmatpush1.msra.mxu0 0.0
        %4722 = vmatprep.subr.mxu0 0.0
        %4723 = vmatpush1.msra.mxu0 0.0
        %4724 = vmatprep.subr.mxu0 0.0
        %4725 = vmatpush1.msra.mxu0 0.0
        %4726 = vmatprep.subr.mxu0 0.0
        %4727 = vmatpush1.msra.mxu0 0.0
        %4728 = vmatprep.subr.mxu0 0.0
        %4729 = vmatpush1.msra.mxu0 0.0
        %4730 = vmatprep.subr.mxu0 0.0
        %4731 = vmatpush1.msra.mxu0 0.0
        %4732 = vmatprep.subr.mxu0 0.0
        %4733 = vmatpush1.msra.mxu0 0.0
        %4734 = vmatprep.subr.mxu0 0.0
        %4735 = vmatpush1.msra.mxu0 0.0
        %4736 = vmatprep.subr.mxu0 0.0
        %4737 = vmatpush1.msra.mxu0 0.0
        %4738 = vmatprep.subr.mxu0 0.0
        %4739 = vmatpush1.msra.mxu0 0.0
        %4740 = vmatprep.subr.mxu0 0.0
        %4741 = vmatpush1.msra.mxu0 0.0
        %4742 = vmatprep.subr.mxu0 0.0
        %4743 = vmatpush1.msra.mxu0 0.0
        %4744 = vmatprep.subr.mxu0 0.0
        %4745 = vmatpush1.msra.mxu0 0.0
        %4746 = vmatprep.subr.mxu0 0.0
        %4747 = vmatpush1.msra.mxu0 0.0
        %4748 = vmatprep.subr.mxu0 0.0
        %4749 = vmatpush1.msra.mxu0 0.0
        %4750 = vmatprep.subr.mxu0 0.0
        %4751 = vmatpush1.msra.mxu0 0.0
        %4752 = vmatprep.subr.mxu0 0.0
        %4753 = vmatpush1.msra.mxu0 0.0
        %4754 = vmatprep.subr.mxu0 0.0
        %4755 = vmatpush1.msra.mxu0 0.0
        %4756 = vmatprep.subr.mxu0 0.0
        %4757 = vmatpush1.msra.mxu0 0.0
        %4758 = vmatprep.subr.mxu0 0.0
        %4759 = vmatpush1.msra.mxu0 0.0
        %4760 = vmatprep.subr.mxu0 0.0
        %4761 = vmatpush1.msra.mxu0 0.0
        %4762 = vmatprep.subr.mxu0 0.0
        %4763 = vmatpush1.msra.mxu0 0.0
        %4764 = vmatprep.subr.mxu0 0.0
        %4765 = vmatpush1.msra.mxu0 0.0
        %4766 = vmatprep.mubr.f32.mxu0 0.0
        %4767 = vmatmul.mubr.f32.gmra.mrb[0].mxu0 %v4556
        %v4768 = vpop.f32.mrb[0].mxu0
        %v4769 = vadd.f32 0.0, %v4768
        %v4770 = vpop.f32.mrb[0].mxu0
        %4771 = vmatprep.mubr.f32.mxu0 0.0
        %4772 = vmatmul.mubr.f32.gmra.mrb[0].mxu0 %v4559
        %v4773 = vpop.f32.mrb[0].mxu0
        %v4774 = vadd.f32 0.0, %v4773
        %v4775 = vpop.f32.mrb[0].mxu0
        %4776 = vmatprep.mubr.f32.mxu0 0.0
        %4777 = vmatmul.mubr.f32.gmra.mrb[0].mxu0 %v4562
        %v4778 = vpop.f32.mrb[0].mxu0
        %v4779 = vadd.f32 0.0, %v4778
        %v4780 = vpop.f32.mrb[0].mxu0
        %4781 = vmatprep.mubr.f32.mxu0 0.0
        %4782 = vmatmul.mubr.f32.gmra.mrb[0].mxu0 %v4565
        %v4783 = vpop.f32.mrb[0].mxu0
        %v4784 = vadd.f32 0.0, %v4783
        %v4785 = vpop.f32.mrb[0].mxu0
        %4786 = vmatprep.mubr.f32.mxu0 0.0
        %4787 = vmatmul.mubr.f32.gmra.mrb[0].mxu0 %v4568
        %v4788 = vpop.f32.mrb[0].mxu0
        %v4789 = vadd.f32 0.0, %v4788
        %v4790 = vpop.f32.mrb[0].mxu0
        %4791 = vmatprep.mubr.f32.mxu0 0.0
        %4792 = vmatmul.mubr.f32.gmra.mrb[0].mxu0 %v4571
        %v4793 = vpop.f32.mrb[0].mxu0
        %v4794 = vadd.f32 0.0, %v4793
        %v4795 = vpop.f32.mrb[0].mxu0
        %4796 = vmatprep.mubr.f32.mxu0 0.0
        %4797 = vmatmul.mubr.f32.gmra.mrb[0].mxu0 %v4574
        %v4798 = vpop.f32.mrb[0].mxu0
        %v4799 = vadd.f32 0.0, %v4798
        %v4800 = vpop.f32.mrb[0].mxu0
        %4801 = vmatprep.mubr.f32.mxu0 0.0
        %4802 = vmatmul.mubr.f32.gmra.mrb[0].mxu0 %v4577
        %v4803 = vpop.f32.mrb[0].mxu0
        %v4804 = vadd.f32 0.0, %v4803
        %v4805 = vpop.f32.mrb[0].mxu0
        %4806 = vmatprep.mubr.f32.mxu0 0.0
        %4807 = vmatmul.mubr.f32.gmra.mrb[0].mxu0 %v4580
        %v4808 = vpop.f32.mrb[0].mxu0
        %v4809 = vadd.f32 0.0, %v4808
        %v4810 = vpop.f32.mrb[0].mxu0
        %4811 = vmatprep.mubr.f32.mxu0 0.0
        %4812 = vmatmul.mubr.f32.gmra.mrb[0].mxu0 %v4583
        %v4813 = vpop.f32.mrb[0].mxu0
        %v4814 = vadd.f32 0.0, %v4813
        %v4815 = vpop.f32.mrb[0].mxu0
        %4816 = vmatprep.mubr.f32.mxu0 0.0
        %4817 = vmatmul.mubr.f32.gmra.mrb[0].mxu0 %v4586
        %v4818 = vpop.f32.mrb[0].mxu0
        %v4819 = vadd.f32 0.0, %v4818
        %v4820 = vpop.f32.mrb[0].mxu0
        %4821 = vmatprep.mubr.f32.mxu0 0.0
        %4822 = vmatmul.mubr.f32.gmra.mrb[0].mxu0 %v4589
        %v4823 = vpop.f32.mrb[0].mxu0
        %v4824 = vadd.f32 0.0, %v4823
        %v4825 = vpop.f32.mrb[0].mxu0
        %4826 = vmatprep.mubr.f32.mxu0 0.0
        %4827 = vmatmul.mubr.f32.gmra.mrb[0].mxu0 %v4592
        %v4828 = vpop.f32.mrb[0].mxu0
        %v4829 = vadd.f32 0.0, %v4828
        %v4830 = vpop.f32.mrb[0].mxu0
        %4831 = vmatprep.mubr.f32.mxu0 0.0
        %4832 = vmatmul.mubr.f32.gmra.mrb[0].mxu0 %v4595
        %v4833 = vpop.f32.mrb[0].mxu0
        %v4834 = vadd.f32 0.0, %v4833
        %v4835 = vpop.f32.mrb[0].mxu0
        %4836 = vmatprep.mubr.f32.mxu0 0.0
        %4837 = vmatmul.mubr.f32.gmra.mrb[0].mxu0 %v4598
        %v4838 = vpop.f32.mrb[0].mxu0
        %v4839 = vadd.f32 0.0, %v4838
        %v4840 = vpop.f32.mrb[0].mxu0
        %4841 = vmatprep.mubr.f32.mxu0 0.0
        %4842 = vmatmul.mubr.f32.gmra.mrb[0].mxu0 %v4601
        %v4843 = vpop.f32.mrb[0].mxu0
        %v4844 = vadd.f32 0.0, %v4843
        %v4845 = vpop.f32.mrb[0].mxu0
        %4846 = vmatprep.mubr.f32.mxu0 0.0
        %4847 = vmatmul.mubr.f32.gmra.mrb[0].mxu0 %v4604
        %v4848 = vpop.f32.mrb[0].mxu0
        %v4849 = vadd.f32 0.0, %v4848
        %v4850 = vpop.f32.mrb[0].mxu0
        %4851 = vmatprep.mubr.f32.mxu0 0.0
        %4852 = vmatmul.mubr.f32.gmra.mrb[0].mxu0 %v4607
        %v4853 = vpop.f32.mrb[0].mxu0
        %v4854 = vadd.f32 0.0, %v4853
        %v4855 = vpop.f32.mrb[0].mxu0
        %4856 = vmatprep.mubr.f32.mxu0 0.0
        %4857 = vmatmul.mubr.f32.gmra.mrb[0].mxu0 %v4610
        %v4858 = vpop.f32.mrb[0].mxu0
        %v4859 = vadd.f32 0.0, %v4858
        %v4860 = vpop.f32.mrb[0].mxu0
        %4861 = vmatprep.mubr.f32.mxu0 0.0
        %4862 = vmatmul.mubr.f32.gmra.mrb[0].mxu0 %v4613
        %v4863 = vpop.f32.mrb[0].mxu0
        %v4864 = vadd.f32 0.0, %v4863
        %v4865 = vpop.f32.mrb[0].mxu0
        %4866 = vmatprep.mubr.f32.mxu0 0.0
        %4867 = vmatmul.mubr.f32.gmra.mrb[0].mxu0 %v4616
        %v4868 = vpop.f32.mrb[0].mxu0
        %v4869 = vadd.f32 0.0, %v4868
        %v4870 = vpop.f32.mrb[0].mxu0
        %4871 = vmatprep.mubr.f32.mxu0 0.0
        %4872 = vmatmul.mubr.f32.gmra.mrb[0].mxu0 %v4619
        %v4873 = vpop.f32.mrb[0].mxu0
        %v4874 = vadd.f32 0.0, %v4873
        %v4875 = vpop.f32.mrb[0].mxu0
        %4876 = vmatprep.mubr.f32.mxu0 0.0
        %4877 = vmatmul.mubr.f32.gmra.mrb[0].mxu0 %v4622
        %v4878 = vpop.f32.mrb[0].mxu0
        %v4879 = vadd.f32 0.0, %v4878
        %v4880 = vpop.f32.mrb[0].mxu0
        %4881 = vmatprep.mubr.f32.mxu0 0.0
        %4882 = vmatmul.mubr.f32.gmra.mrb[0].mxu0 %v4625
        %v4883 = vpop.f32.mrb[0].mxu0
        %v4884 = vadd.f32 0.0, %v4883
        %v4885 = vpop.f32.mrb[0].mxu0
        %4886 = vmatprep.mubr.f32.mxu0 0.0
        %4887 = vmatmul.mubr.f32.gmra.mrb[0].mxu0 %v4628
        %v4888 = vpop.f32.mrb[0].mxu0
        %v4889 = vadd.f32 0.0, %v4888
        %v4890 = vpop.f32.mrb[0].mxu0
        %4891 = vmatprep.mubr.f32.mxu0 0.0
        %4892 = vmatmul.mubr.f32.gmra.mrb[0].mxu0 %v4631
        %v4893 = vpop.f32.mrb[0].mxu0
        %v4894 = vadd.f32 0.0, %v4893
        %v4895 = vpop.f32.mrb[0].mxu0
        %4896 = vmatprep.mubr.f32.mxu0 0.0
        %4897 = vmatmul.mubr.f32.gmra.mrb[0].mxu0 %v4634
        %v4898 = vpop.f32.mrb[0].mxu0
        %v4899 = vadd.f32 0.0, %v4898
        %v4900 = vpop.f32.mrb[0].mxu0
        %4901 = vmatprep.mubr.f32.mxu0 0.0
        %4902 = vmatmul.mubr.f32.gmra.mrb[0].mxu0 %v4637
        %v4903 = vpop.f32.mrb[0].mxu0
        %v4904 = vadd.f32 0.0, %v4903
        %v4905 = vpop.f32.mrb[0].mxu0
        %4906 = vmatprep.mubr.f32.mxu0 0.0
        %4907 = vmatmul.mubr.f32.gmra.mrb[0].mxu0 %v4640
        %v4908 = vpop.f32.mrb[0].mxu0
        %v4909 = vadd.f32 0.0, %v4908
        %v4910 = vpop.f32.mrb[0].mxu0
        %4911 = vmatprep.mubr.f32.mxu0 0.0
        %4912 = vmatmul.mubr.f32.gmra.mrb[0].mxu0 %v4643
        %v4913 = vpop.f32.mrb[0].mxu0
        %v4914 = vadd.f32 0.0, %v4913
        %v4915 = vpop.f32.mrb[0].mxu0
        %4916 = vmatprep.mubr.f32.mxu0 0.0
        %4917 = vmatmul.mubr.f32.gmra.mrb[0].mxu0 %v4646
        %v4918 = vpop.f32.mrb[0].mxu0
        %v4919 = vadd.f32 0.0, %v4918
        %v4920 = vpop.f32.mrb[0].mxu0
        %4921 = vmatprep.mubr.f32.mxu0 0.0
        %4922 = vmatmul.mubr.f32.gmra.mrb[0].mxu0 %v4649
        %v4923 = vpop.f32.mrb[0].mxu0
        %v4924 = vadd.f32 0.0, %v4923
        %v4925 = vpop.f32.mrb[0].mxu0
        %4926 = vmatprep.mubr.f32.mxu0 0.0
        %4927 = vmatmul.mubr.f32.gmra.mrb[0].mxu0 %v4652
        %v4928 = vpop.f32.mrb[0].mxu0
        %v4929 = vadd.f32 0.0, %v4928
        %v4930 = vpop.f32.mrb[0].mxu0
        %4931 = vmatprep.mubr.f32.mxu0 0.0
        %4932 = vmatmul.mubr.f32.gmra.mrb[0].mxu0 %v4655
        %v4933 = vpop.f32.mrb[0].mxu0
        %v4934 = vadd.f32 0.0, %v4933
        %v4935 = vpop.f32.mrb[0].mxu0
        %4936 = vmatprep.mubr.f32.mxu0 0.0
        %4937 = vmatmul.mubr.f32.gmra.mrb[0].mxu0 %v4658
        %v4938 = vpop.f32.mrb[0].mxu0
        %v4939 = vadd.f32 0.0, %v4938
        %v4940 = vpop.f32.mrb[0].mxu0
        %4941 = vmatprep.mubr.f32.mxu0 0.0
        %4942 = vmatmul.mubr.f32.gmra.mrb[0].mxu0 %v4661
        %v4943 = vpop.f32.mrb[0].mxu0
        %v4944 = vadd.f32 0.0, %v4943
        %v4945 = vpop.f32.mrb[0].mxu0
        %4946 = vmatprep.mubr.f32.mxu0 0.0
        %4947 = vmatmul.mubr.f32.gmra.mrb[0].mxu0 %v4664
        %v4948 = vpop.f32.mrb[0].mxu0
        %v4949 = vadd.f32 0.0, %v4948
        %v4950 = vpop.f32.mrb[0].mxu0
        %4951 = vmatprep.mubr.f32.mxu0 0.0
        %4952 = vmatmul.mubr.f32.gmra.mrb[0].mxu0 %v4667
        %v4953 = vpop.f32.mrb[0].mxu0
        %v4954 = vadd.f32 0.0, %v4953
        %v4955 = vpop.f32.mrb[0].mxu0
        %4956 = vmatprep.mubr.f32.mxu0 0.0
        %4957 = vmatmul.mubr.f32.gmra.mrb[0].mxu0 %v4670
        %v4958 = vpop.f32.mrb[0].mxu0
        %v4959 = vadd.f32 0.0, %v4958
        %v4960 = vpop.f32.mrb[0].mxu0
        %4961 = vmatprep.mubr.f32.mxu0 0.0
        %4962 = vmatmul.mubr.f32.gmra.mrb[0].mxu0 %v4673
        %v4963 = vpop.f32.mrb[0].mxu0
        %v4964 = vadd.f32 0.0, %v4963
        %v4965 = vpop.f32.mrb[0].mxu0
        %4966 = vmatprep.mubr.f32.mxu0 0.0
        %4967 = vmatmul.mubr.f32.gmra.mrb[0].mxu0 %v4676
        %v4968 = vpop.f32.mrb[0].mxu0
        %v4969 = vadd.f32 0.0, %v4968
        %v4970 = vpop.f32.mrb[0].mxu0
        %4971 = vmatprep.mubr.f32.mxu0 0.0
        %4972 = vmatmul.mubr.f32.gmra.mrb[0].mxu0 %v4679
        %v4973 = vpop.f32.mrb[0].mxu0
        %v4974 = vadd.f32 0.0, %v4973
        %v4975 = vpop.f32.mrb[0].mxu0
        %4976 = vmatprep.mubr.f32.mxu0 0.0
        %4977 = vmatmul.mubr.f32.gmra.mrb[0].mxu0 %v4682
        %v4978 = vpop.f32.mrb[0].mxu0
        %v4979 = vadd.f32 0.0, %v4978
        %v4980 = vpop.f32.mrb[0].mxu0
        %4981 = vmatprep.mubr.f32.mxu0 0.0
        %4982 = vmatmul.mubr.f32.gmra.mrb[0].mxu0 %v4685
        %v4983 = vpop.f32.mrb[0].mxu0
        %v4984 = vadd.f32 0.0, %v4983
        %v4985 = vpop.f32.mrb[0].mxu0
        %4986 = vmatprep.mubr.f32.mxu0 0.0
        %4987 = vmatmul.mubr.f32.gmra.mrb[0].mxu0 %v4688
        %v4988 = vpop.f32.mrb[0].mxu0
        %v4989 = vadd.f32 0.0, %v4988
        %v4990 = vpop.f32.mrb[0].mxu0
        %4991 = vmatprep.mubr.f32.mxu0 0.0
        %4992 = vmatmul.mubr.f32.gmra.mrb[0].mxu0 %v4691
        %v4993 = vpop.f32.mrb[0].mxu0
        %v4994 = vadd.f32 0.0, %v4993
        %v4995 = vpop.f32.mrb[0].mxu0
        %4996 = vmatprep.mubr.f32.mxu0 0.0
        %4997 = vmatmul.mubr.f32.gmra.mrb[0].mxu0 %v4694
        %v4998 = vpop.f32.mrb[0].mxu0
        %v4999 = vadd.f32 0.0, %v4998
        %v5000 = vpop.f32.mrb[0].mxu0
        %5001 = vmatprep.mubr.f32.mxu0 0.0
        %5002 = vmatmul.mubr.f32.gmra.mrb[0].mxu0 %v4697
        %v5003 = vpop.f32.mrb[0].mxu0
        %v5004 = vadd.f32 0.0, %v5003
        %v5005 = vpop.f32.mrb[0].mxu0
        %5006 = vdwg.mxu0
        %v5007 = vadd.f32 %v4457, %v4769
        %v5008 = vadd.f32 %v4458, %v4774
        %v5009 = vadd.f32 %v4459, %v4779
        %v5010 = vadd.f32 %v4460, %v4784
        %v5011 = vadd.f32 %v4461, %v4789
        %v5012 = vadd.f32 %v4462, %v4794
        %v5013 = vadd.f32 %v4463, %v4799
        %v5014 = vadd.f32 %v4464, %v4804
        %v5015 = vadd.f32 %v4465, %v4809
        %v5016 = vadd.f32 %v4466, %v4814
        %v5017 = vadd.f32 %v4467, %v4819
        %v5018 = vadd.f32 %v4468, %v4824
        %v5019 = vadd.f32 %v4469, %v4829
        %v5020 = vadd.f32 %v4470, %v4834
        %v5021 = vadd.f32 %v4471, %v4839
        %v5022 = vadd.f32 %v4472, %v4844
        %v5023 = vadd.f32 %v4473, %v4849
        %v5024 = vadd.f32 %v4474, %v4854
        %v5025 = vadd.f32 %v4475, %v4859
        %v5026 = vadd.f32 %v4476, %v4864
        %v5027 = vadd.f32 %v4477, %v4869
        %v5028 = vadd.f32 %v4478, %v4874
        %v5029 = vadd.f32 %v4479, %v4879
        %v5030 = vadd.f32 %v4480, %v4884
        %v5031 = vadd.f32 %v4481, %v4889
        %v5032 = vadd.f32 %v4482, %v4894
        %v5033 = vadd.f32 %v4483, %v4899
        %v5034 = vadd.f32 %v4484, %v4904
        %v5035 = vadd.f32 %v4485, %v4909
        %v5036 = vadd.f32 %v4486, %v4914
        %v5037 = vadd.f32 %v4487, %v4919
        %v5038 = vadd.f32 %v4488, %v4924
        %v5039 = vadd.f32 %v4489, %v4929
        %v5040 = vadd.f32 %v4490, %v4934
        %v5041 = vadd.f32 %v4491, %v4939
        %v5042 = vadd.f32 %v4492, %v4944
        %v5043 = vadd.f32 %v4493, %v4949
        %v5044 = vadd.f32 %v4494, %v4954
        %v5045 = vadd.f32 %v4495, %v4959
        %v5046 = vadd.f32 %v4496, %v4964
        %v5047 = vadd.f32 %v4497, %v4969
        %v5048 = vadd.f32 %v4498, %v4974
        %v5049 = vadd.f32 %v4499, %v4979
        %v5050 = vadd.f32 %v4500, %v4984
        %v5051 = vadd.f32 %v4501, %v4989
        %v5052 = vadd.f32 %v4502, %v4994
        %v5053 = vadd.f32 %v4503, %v4999
        %v5054 = vadd.f32 %v4504, %v5004
        %v5055 = vld [vmem:[%s2] sm:$0xff]
        %v5056 = vld [vmem:[%s2 + $0x8] sm:$0xff]
        %v5057 = vld [vmem:[%s2 + $0x10] sm:$0xff]
        %v5058 = vld [vmem:[%s2 + $0x18] sm:$0xff]
        %v5059 = vld [vmem:[%s2 + $0x20] sm:$0xff]
        %v5060 = vld [vmem:[%s2 + $0x28] sm:$0xff]
        %v5061 = vld [vmem:[%s2 + $0x30] sm:$0xff]
        %v5062 = vld [vmem:[%s2 + $0x38] sm:$0xff]
        %v5063 = vld [vmem:[%s2 + $0x40] sm:$0xff]
        %v5064 = vld [vmem:[%s2 + $0x48] sm:$0xff]
        %v5065 = vld [vmem:[%s2 + $0x50] sm:$0xff]
        %v5066 = vld [vmem:[%s2 + $0x58] sm:$0xff]
        %v5067 = vld [vmem:[%s2 + $0x60] sm:$0xff]
        %v5068 = vld [vmem:[%s2 + $0x68] sm:$0xff]
        %v5069 = vld [vmem:[%s2 + $0x70] sm:$0xff]
        %v5070 = vld [vmem:[%s2 + $0x78] sm:$0xff]
        %v5071 = vld [vmem:[%s2 + $0x80] sm:$0xff]
        %v5072 = vld [vmem:[%s2 + $0x88] sm:$0xff]
        %v5073 = vld [vmem:[%s2 + $0x90] sm:$0xff]
        %v5074 = vld [vmem:[%s2 + $0x98] sm:$0xff]
        %v5075 = vld [vmem:[%s2 + $0xa0] sm:$0xff]
        %v5076 = vld [vmem:[%s2 + $0xa8] sm:$0xff]
        %v5077 = vld [vmem:[%s2 + $0xb0] sm:$0xff]
        %v5078 = vld [vmem:[%s2 + $0xb8] sm:$0xff]
        %v5079 = vld [vmem:[%s2 + $0xc0] sm:$0xff]
        %v5080 = vld [vmem:[%s2 + $0xc8] sm:$0xff]
        %v5081 = vld [vmem:[%s2 + $0xd0] sm:$0xff]
        %v5082 = vld [vmem:[%s2 + $0xd8] sm:$0xff]
        %v5083 = vld [vmem:[%s2 + $0xe0] sm:$0xff]
        %v5084 = vld [vmem:[%s2 + $0xe8] sm:$0xff]
        %v5085 = vld [vmem:[%s2 + $0xf0] sm:$0xff]
        %v5086 = vld [vmem:[%s2 + $0xf8] sm:$0xff]
        %v5087 = vld [vmem:[%s2 + $0x100] sm:$0xff]
        %v5088 = vld [vmem:[%s2 + $0x108] sm:$0xff]
        %v5089 = vld [vmem:[%s2 + $0x110] sm:$0xff]
        %v5090 = vld [vmem:[%s2 + $0x118] sm:$0xff]
        %v5091 = vld [vmem:[%s2 + $0x120] sm:$0xff]
        %v5092 = vld [vmem:[%s2 + $0x128] sm:$0xff]
        %v5093 = vld [vmem:[%s2 + $0x130] sm:$0xff]
        %v5094 = vld [vmem:[%s2 + $0x138] sm:$0xff]
        %v5095 = vld [vmem:[%s2 + $0x140] sm:$0xff]
        %v5096 = vld [vmem:[%s2 + $0x148] sm:$0xff]
        %v5097 = vld [vmem:[%s2 + $0x150] sm:$0xff]
        %v5098 = vld [vmem:[%s2 + $0x158] sm:$0xff]
        %v5099 = vld [vmem:[%s2 + $0x160] sm:$0xff]
        %v5100 = vld [vmem:[%s2 + $0x168] sm:$0xff]
        %v5101 = vld [vmem:[%s2 + $0x170] sm:$0xff]
        %v5102 = vld [vmem:[%s2 + $0x178] sm:$0xff]
        %5104 = vset.pattern.permute.xlu0 0
        %5105 = vperm.xlu0 %5104, %v5055
        %v5106 = vpop.permute.xlu0 %5105
        %5109 = vset.pattern.permute.xlu0 0
        %5110 = vperm.xlu0 %5109, %v5056
        %v5111 = vpop.permute.xlu0 %5110
        %5114 = vset.pattern.permute.xlu0 0
        %5115 = vperm.xlu0 %5114, %v5057
        %v5116 = vpop.permute.xlu0 %5115
        %5119 = vset.pattern.permute.xlu0 0
        %5120 = vperm.xlu0 %5119, %v5058
        %v5121 = vpop.permute.xlu0 %5120
        %5124 = vset.pattern.permute.xlu0 0
        %5125 = vperm.xlu0 %5124, %v5059
        %v5126 = vpop.permute.xlu0 %5125
        %5129 = vset.pattern.permute.xlu0 0
        %5130 = vperm.xlu0 %5129, %v5060
        %v5131 = vpop.permute.xlu0 %5130
        %5134 = vset.pattern.permute.xlu0 0
        %5135 = vperm.xlu0 %5134, %v5061
        %v5136 = vpop.permute.xlu0 %5135
        %5139 = vset.pattern.permute.xlu0 0
        %5140 = vperm.xlu0 %5139, %v5062
        %v5141 = vpop.permute.xlu0 %5140
        %5144 = vset.pattern.permute.xlu0 0
        %5145 = vperm.xlu0 %5144, %v5063
        %v5146 = vpop.permute.xlu0 %5145
        %5149 = vset.pattern.permute.xlu0 0
        %5150 = vperm.xlu0 %5149, %v5064
        %v5151 = vpop.permute.xlu0 %5150
        %5154 = vset.pattern.permute.xlu0 0
        %5155 = vperm.xlu0 %5154, %v5065
        %v5156 = vpop.permute.xlu0 %5155
        %5159 = vset.pattern.permute.xlu0 0
        %5160 = vperm.xlu0 %5159, %v5066
        %v5161 = vpop.permute.xlu0 %5160
        %5164 = vset.pattern.permute.xlu0 0
        %5165 = vperm.xlu0 %5164, %v5067
        %v5166 = vpop.permute.xlu0 %5165
        %5169 = vset.pattern.permute.xlu0 0
        %5170 = vperm.xlu0 %5169, %v5068
        %v5171 = vpop.permute.xlu0 %5170
        %5174 = vset.pattern.permute.xlu0 0
        %5175 = vperm.xlu0 %5174, %v5069
        %v5176 = vpop.permute.xlu0 %5175
        %5179 = vset.pattern.permute.xlu0 0
        %5180 = vperm.xlu0 %5179, %v5070
        %v5181 = vpop.permute.xlu0 %5180
        %5184 = vset.pattern.permute.xlu0 0
        %5185 = vperm.xlu0 %5184, %v5071
        %v5186 = vpop.permute.xlu0 %5185
        %5189 = vset.pattern.permute.xlu0 0
        %5190 = vperm.xlu0 %5189, %v5072
        %v5191 = vpop.permute.xlu0 %5190
        %5194 = vset.pattern.permute.xlu0 0
        %5195 = vperm.xlu0 %5194, %v5073
        %v5196 = vpop.permute.xlu0 %5195
        %5199 = vset.pattern.permute.xlu0 0
        %5200 = vperm.xlu0 %5199, %v5074
        %v5201 = vpop.permute.xlu0 %5200
        %5204 = vset.pattern.permute.xlu0 0
        %5205 = vperm.xlu0 %5204, %v5075
        %v5206 = vpop.permute.xlu0 %5205
        %5209 = vset.pattern.permute.xlu0 0
        %5210 = vperm.xlu0 %5209, %v5076
        %v5211 = vpop.permute.xlu0 %5210
        %5214 = vset.pattern.permute.xlu0 0
        %5215 = vperm.xlu0 %5214, %v5077
        %v5216 = vpop.permute.xlu0 %5215
        %5219 = vset.pattern.permute.xlu0 0
        %5220 = vperm.xlu0 %5219, %v5078
        %v5221 = vpop.permute.xlu0 %5220
        %5224 = vset.pattern.permute.xlu0 0
        %5225 = vperm.xlu0 %5224, %v5079
        %v5226 = vpop.permute.xlu0 %5225
        %5229 = vset.pattern.permute.xlu0 0
        %5230 = vperm.xlu0 %5229, %v5080
        %v5231 = vpop.permute.xlu0 %5230
        %5234 = vset.pattern.permute.xlu0 0
        %5235 = vperm.xlu0 %5234, %v5081
        %v5236 = vpop.permute.xlu0 %5235
        %5239 = vset.pattern.permute.xlu0 0
        %5240 = vperm.xlu0 %5239, %v5082
        %v5241 = vpop.permute.xlu0 %5240
        %5244 = vset.pattern.permute.xlu0 0
        %5245 = vperm.xlu0 %5244, %v5083
        %v5246 = vpop.permute.xlu0 %5245
        %5249 = vset.pattern.permute.xlu0 0
        %5250 = vperm.xlu0 %5249, %v5084
        %v5251 = vpop.permute.xlu0 %5250
        %5254 = vset.pattern.permute.xlu0 0
        %5255 = vperm.xlu0 %5254, %v5085
        %v5256 = vpop.permute.xlu0 %5255
        %5259 = vset.pattern.permute.xlu0 0
        %5260 = vperm.xlu0 %5259, %v5086
        %v5261 = vpop.permute.xlu0 %5260
        %5264 = vset.pattern.permute.xlu0 0
        %5265 = vperm.xlu0 %5264, %v5087
        %v5266 = vpop.permute.xlu0 %5265
        %5269 = vset.pattern.permute.xlu0 0
        %5270 = vperm.xlu0 %5269, %v5088
        %v5271 = vpop.permute.xlu0 %5270
        %5274 = vset.pattern.permute.xlu0 0
        %5275 = vperm.xlu0 %5274, %v5089
        %v5276 = vpop.permute.xlu0 %5275
        %5279 = vset.pattern.permute.xlu0 0
        %5280 = vperm.xlu0 %5279, %v5090
        %v5281 = vpop.permute.xlu0 %5280
        %5284 = vset.pattern.permute.xlu0 0
        %5285 = vperm.xlu0 %5284, %v5091
        %v5286 = vpop.permute.xlu0 %5285
        %5289 = vset.pattern.permute.xlu0 0
        %5290 = vperm.xlu0 %5289, %v5092
        %v5291 = vpop.permute.xlu0 %5290
        %5294 = vset.pattern.permute.xlu0 0
        %5295 = vperm.xlu0 %5294, %v5093
        %v5296 = vpop.permute.xlu0 %5295
        %5299 = vset.pattern.permute.xlu0 0
        %5300 = vperm.xlu0 %5299, %v5094
        %v5301 = vpop.permute.xlu0 %5300
        %5304 = vset.pattern.permute.xlu0 0
        %5305 = vperm.xlu0 %5304, %v5095
        %v5306 = vpop.permute.xlu0 %5305
        %5309 = vset.pattern.permute.xlu0 0
        %5310 = vperm.xlu0 %5309, %v5096
        %v5311 = vpop.permute.xlu0 %5310
        %5314 = vset.pattern.permute.xlu0 0
        %5315 = vperm.xlu0 %5314, %v5097
        %v5316 = vpop.permute.xlu0 %5315
        %5319 = vset.pattern.permute.xlu0 0
        %5320 = vperm.xlu0 %5319, %v5098
        %v5321 = vpop.permute.xlu0 %5320
        %5324 = vset.pattern.permute.xlu0 0
        %5325 = vperm.xlu0 %5324, %v5099
        %v5326 = vpop.permute.xlu0 %5325
        %5329 = vset.pattern.permute.xlu0 0
        %5330 = vperm.xlu0 %5329, %v5100
        %v5331 = vpop.permute.xlu0 %5330
        %5334 = vset.pattern.permute.xlu0 0
        %5335 = vperm.xlu0 %5334, %v5101
        %v5336 = vpop.permute.xlu0 %5335
        %5339 = vset.pattern.permute.xlu0 0
        %5340 = vperm.xlu0 %5339, %v5102
        %v5341 = vpop.permute.xlu0 %5340
        %v5343 = vmul.f32 %v5007, %v5106
        %v5344 = vmul.f32 %v5008, %v5111
        %v5345 = vmul.f32 %v5009, %v5116
        %v5346 = vmul.f32 %v5010, %v5121
        %v5347 = vmul.f32 %v5011, %v5126
        %v5348 = vmul.f32 %v5012, %v5131
        %v5349 = vmul.f32 %v5013, %v5136
        %v5350 = vmul.f32 %v5014, %v5141
        %v5351 = vmul.f32 %v5015, %v5146
        %v5352 = vmul.f32 %v5016, %v5151
        %v5353 = vmul.f32 %v5017, %v5156
        %v5354 = vmul.f32 %v5018, %v5161
        %v5355 = vmul.f32 %v5019, %v5166
        %v5356 = vmul.f32 %v5020, %v5171
        %v5357 = vmul.f32 %v5021, %v5176
        %v5358 = vmul.f32 %v5022, %v5181
        %v5359 = vmul.f32 %v5023, %v5186
        %v5360 = vmul.f32 %v5024, %v5191
        %v5361 = vmul.f32 %v5025, %v5196
        %v5362 = vmul.f32 %v5026, %v5201
        %v5363 = vmul.f32 %v5027, %v5206
        %v5364 = vmul.f32 %v5028, %v5211
        %v5365 = vmul.f32 %v5029, %v5216
        %v5366 = vmul.f32 %v5030, %v5221
        %v5367 = vmul.f32 %v5031, %v5226
        %v5368 = vmul.f32 %v5032, %v5231
        %v5369 = vmul.f32 %v5033, %v5236
        %v5370 = vmul.f32 %v5034, %v5241
        %v5371 = vmul.f32 %v5035, %v5246
        %v5372 = vmul.f32 %v5036, %v5251
        %v5373 = vmul.f32 %v5037, %v5256
        %v5374 = vmul.f32 %v5038, %v5261
        %v5375 = vmul.f32 %v5039, %v5266
        %v5376 = vmul.f32 %v5040, %v5271
        %v5377 = vmul.f32 %v5041, %v5276
        %v5378 = vmul.f32 %v5042, %v5281
        %v5379 = vmul.f32 %v5043, %v5286
        %v5380 = vmul.f32 %v5044, %v5291
        %v5381 = vmul.f32 %v5045, %v5296
        %v5382 = vmul.f32 %v5046, %v5301
        %v5383 = vmul.f32 %v5047, %v5306
        %v5384 = vmul.f32 %v5048, %v5311
        %v5385 = vmul.f32 %v5049, %v5316
        %v5386 = vmul.f32 %v5050, %v5321
        %v5387 = vmul.f32 %v5051, %v5326
        %v5388 = vmul.f32 %v5052, %v5331
        %v5389 = vmul.f32 %v5053, %v5336
        %v5390 = vmul.f32 %v5054, %v5341
        %v5391 = vadd.f32 %v5343, %v5344
        %v5392 = vadd.f32 %v5391, %v5345
        %v5393 = vadd.f32 %v5392, %v5346
        %v5394 = vadd.f32 %v5393, %v5347
        %v5395 = vadd.f32 %v5394, %v5348
        %v5396 = vadd.f32 %v5395, %v5349
        %v5397 = vadd.f32 %v5396, %v5350
        %v5398 = vadd.f32 %v5397, %v5351
        %v5399 = vadd.f32 %v5398, %v5352
        %v5400 = vadd.f32 %v5399, %v5353
        %v5401 = vadd.f32 %v5400, %v5354
        %v5402 = vadd.f32 %v5401, %v5355
        %v5403 = vadd.f32 %v5402, %v5356
        %v5404 = vadd.f32 %v5403, %v5357
        %v5405 = vadd.f32 %v5404, %v5358
        %v5406 = vadd.f32 %v5405, %v5359
        %v5407 = vadd.f32 %v5406, %v5360
        %v5408 = vadd.f32 %v5407, %v5361
        %v5409 = vadd.f32 %v5408, %v5362
        %v5410 = vadd.f32 %v5409, %v5363
        %v5411 = vadd.f32 %v5410, %v5364
        %v5412 = vadd.f32 %v5411, %v5365
        %v5413 = vadd.f32 %v5412, %v5366
        %v5414 = vadd.f32 %v5413, %v5367
        %v5415 = vadd.f32 %v5414, %v5368
        %v5416 = vadd.f32 %v5415, %v5369
        %v5417 = vadd.f32 %v5416, %v5370
        %v5418 = vadd.f32 %v5417, %v5371
        %v5419 = vadd.f32 %v5418, %v5372
        %v5420 = vadd.f32 %v5419, %v5373
        %v5421 = vadd.f32 %v5420, %v5374
        %v5422 = vadd.f32 %v5421, %v5375
        %v5423 = vadd.f32 %v5422, %v5376
        %v5424 = vadd.f32 %v5423, %v5377
        %v5425 = vadd.f32 %v5424, %v5378
        %v5426 = vadd.f32 %v5425, %v5379
        %v5427 = vadd.f32 %v5426, %v5380
        %v5428 = vadd.f32 %v5427, %v5381
        %v5429 = vadd.f32 %v5428, %v5382
        %v5430 = vadd.f32 %v5429, %v5383
        %v5431 = vadd.f32 %v5430, %v5384
        %v5432 = vadd.f32 %v5431, %v5385
        %v5433 = vadd.f32 %v5432, %v5386
        %v5434 = vadd.f32 %v5433, %v5387
        %v5435 = vadd.f32 %v5434, %v5388
        %v5436 = vadd.f32 %v5435, %v5389
        %v5437 = vadd.f32 %v5436, %v5390
        %v5438 = vrot.slane %v5437, 4
        %v5439 = vadd.f32 %v5437, %v5438
        %v5440 = vrot.slane %v5439, 2
        %v5441 = vadd.f32 %v5439, %v5440
        %v5442 = vrot.slane %v5441, 1
        %v5443 = vadd.f32 %v5441, %v5442
        %v5444 = vmul.f32 %v5443, 0.00390625
        %v5445 = vmul.f32 %v5343, %v5343
        %v5446 = vmul.f32 %v5344, %v5344
        %v5447 = vmul.f32 %v5345, %v5345
        %v5448 = vmul.f32 %v5346, %v5346
        %v5449 = vmul.f32 %v5347, %v5347
        %v5450 = vmul.f32 %v5348, %v5348
        %v5451 = vmul.f32 %v5349, %v5349
        %v5452 = vmul.f32 %v5350, %v5350
        %v5453 = vmul.f32 %v5351, %v5351
        %v5454 = vmul.f32 %v5352, %v5352
        %v5455 = vmul.f32 %v5353, %v5353
        %v5456 = vmul.f32 %v5354, %v5354
        %v5457 = vmul.f32 %v5355, %v5355
        %v5458 = vmul.f32 %v5356, %v5356
        %v5459 = vmul.f32 %v5357, %v5357
        %v5460 = vmul.f32 %v5358, %v5358
        %v5461 = vmul.f32 %v5359, %v5359
        %v5462 = vmul.f32 %v5360, %v5360
        %v5463 = vmul.f32 %v5361, %v5361
        %v5464 = vmul.f32 %v5362, %v5362
        %v5465 = vmul.f32 %v5363, %v5363
        %v5466 = vmul.f32 %v5364, %v5364
        %v5467 = vmul.f32 %v5365, %v5365
        %v5468 = vmul.f32 %v5366, %v5366
        %v5469 = vmul.f32 %v5367, %v5367
        %v5470 = vmul.f32 %v5368, %v5368
        %v5471 = vmul.f32 %v5369, %v5369
        %v5472 = vmul.f32 %v5370, %v5370
        %v5473 = vmul.f32 %v5371, %v5371
        %v5474 = vmul.f32 %v5372, %v5372
        %v5475 = vmul.f32 %v5373, %v5373
        %v5476 = vmul.f32 %v5374, %v5374
        %v5477 = vmul.f32 %v5375, %v5375
        %v5478 = vmul.f32 %v5376, %v5376
        %v5479 = vmul.f32 %v5377, %v5377
        %v5480 = vmul.f32 %v5378, %v5378
        %v5481 = vmul.f32 %v5379, %v5379
        %v5482 = vmul.f32 %v5380, %v5380
        %v5483 = vmul.f32 %v5381, %v5381
        %v5484 = vmul.f32 %v5382, %v5382
        %v5485 = vmul.f32 %v5383, %v5383
        %v5486 = vmul.f32 %v5384, %v5384
        %v5487 = vmul.f32 %v5385, %v5385
        %v5488 = vmul.f32 %v5386, %v5386
        %v5489 = vmul.f32 %v5387, %v5387
        %v5490 = vmul.f32 %v5388, %v5388
        %v5491 = vmul.f32 %v5389, %v5389
        %v5492 = vmul.f32 %v5390, %v5390
        %v5493 = vadd.f32 %v5445, %v5446
        %v5494 = vadd.f32 %v5493, %v5447
        %v5495 = vadd.f32 %v5494, %v5448
        %v5496 = vadd.f32 %v5495, %v5449
        %v5497 = vadd.f32 %v5496, %v5450
        %v5498 = vadd.f32 %v5497, %v5451
        %v5499 = vadd.f32 %v5498, %v5452
        %v5500 = vadd.f32 %v5499, %v5453
        %v5501 = vadd.f32 %v5500, %v5454
        %v5502 = vadd.f32 %v5501, %v5455
        %v5503 = vadd.f32 %v5502, %v5456
        %v5504 = vadd.f32 %v5503, %v5457
        %v5505 = vadd.f32 %v5504, %v5458
        %v5506 = vadd.f32 %v5505, %v5459
        %v5507 = vadd.f32 %v5506, %v5460
        %v5508 = vadd.f32 %v5507, %v5461
        %v5509 = vadd.f32 %v5508, %v5462
        %v5510 = vadd.f32 %v5509, %v5463
        %v5511 = vadd.f32 %v5510, %v5464
        %v5512 = vadd.f32 %v5511, %v5465
        %v5513 = vadd.f32 %v5512, %v5466
        %v5514 = vadd.f32 %v5513, %v5467
        %v5515 = vadd.f32 %v5514, %v5468
        %v5516 = vadd.f32 %v5515, %v5469
        %v5517 = vadd.f32 %v5516, %v5470
        %v5518 = vadd.f32 %v5517, %v5471
        %v5519 = vadd.f32 %v5518, %v5472
        %v5520 = vadd.f32 %v5519, %v5473
        %v5521 = vadd.f32 %v5520, %v5474
        %v5522 = vadd.f32 %v5521, %v5475
        %v5523 = vadd.f32 %v5522, %v5476
        %v5524 = vadd.f32 %v5523, %v5477
        %v5525 = vadd.f32 %v5524, %v5478
        %v5526 = vadd.f32 %v5525, %v5479
        %v5527 = vadd.f32 %v5526, %v5480
        %v5528 = vadd.f32 %v5527, %v5481
        %v5529 = vadd.f32 %v5528, %v5482
        %v5530 = vadd.f32 %v5529, %v5483
        %v5531 = vadd.f32 %v5530, %v5484
        %v5532 = vadd.f32 %v5531, %v5485
        %v5533 = vadd.f32 %v5532, %v5486
        %v5534 = vadd.f32 %v5533, %v5487
        %v5535 = vadd.f32 %v5534, %v5488
        %v5536 = vadd.f32 %v5535, %v5489
        %v5537 = vadd.f32 %v5536, %v5490
        %v5538 = vadd.f32 %v5537, %v5491
        %v5539 = vadd.f32 %v5538, %v5492
        %v5540 = vrot.slane %v5539, 4
        %v5541 = vadd.f32 %v5539, %v5540
        %v5542 = vrot.slane %v5541, 2
        %v5543 = vadd.f32 %v5541, %v5542
        %v5544 = vrot.slane %v5543, 1
        %v5545 = vadd.f32 %v5543, %v5544
        %v5546 = vmul.f32 %v5545, 0.00390625
        %v5547 = vmul.f32 %v5444, %v5444
        %v5548 = vsub.f32 %v5546, %v5547
        %v5549 = vmax.f32 %v5548, 0.0
        %v5550 = vsub.f32 %v5007, %v5444
        %v5551 = vsub.f32 %v5008, %v5444
        %v5552 = vsub.f32 %v5009, %v5444
        %v5553 = vsub.f32 %v5010, %v5444
        %v5554 = vsub.f32 %v5011, %v5444
        %v5555 = vsub.f32 %v5012, %v5444
        %v5556 = vsub.f32 %v5013, %v5444
        %v5557 = vsub.f32 %v5014, %v5444
        %v5558 = vsub.f32 %v5015, %v5444
        %v5559 = vsub.f32 %v5016, %v5444
        %v5560 = vsub.f32 %v5017, %v5444
        %v5561 = vsub.f32 %v5018, %v5444
        %v5562 = vsub.f32 %v5019, %v5444
        %v5563 = vsub.f32 %v5020, %v5444
        %v5564 = vsub.f32 %v5021, %v5444
        %v5565 = vsub.f32 %v5022, %v5444
        %v5566 = vsub.f32 %v5023, %v5444
        %v5567 = vsub.f32 %v5024, %v5444
        %v5568 = vsub.f32 %v5025, %v5444
        %v5569 = vsub.f32 %v5026, %v5444
        %v5570 = vsub.f32 %v5027, %v5444
        %v5571 = vsub.f32 %v5028, %v5444
        %v5572 = vsub.f32 %v5029, %v5444
        %v5573 = vsub.f32 %v5030, %v5444
        %v5574 = vsub.f32 %v5031, %v5444
        %v5575 = vsub.f32 %v5032, %v5444
        %v5576 = vsub.f32 %v5033, %v5444
        %v5577 = vsub.f32 %v5034, %v5444
        %v5578 = vsub.f32 %v5035, %v5444
        %v5579 = vsub.f32 %v5036, %v5444
        %v5580 = vsub.f32 %v5037, %v5444
        %v5581 = vsub.f32 %v5038, %v5444
        %v5582 = vsub.f32 %v5039, %v5444
        %v5583 = vsub.f32 %v5040, %v5444
        %v5584 = vsub.f32 %v5041, %v5444
        %v5585 = vsub.f32 %v5042, %v5444
        %v5586 = vsub.f32 %v5043, %v5444
        %v5587 = vsub.f32 %v5044, %v5444
        %v5588 = vsub.f32 %v5045, %v5444
        %v5589 = vsub.f32 %v5046, %v5444
        %v5590 = vsub.f32 %v5047, %v5444
        %v5591 = vsub.f32 %v5048, %v5444
        %v5592 = vsub.f32 %v5049, %v5444
        %v5593 = vsub.f32 %v5050, %v5444
        %v5594 = vsub.f32 %v5051, %v5444
        %v5595 = vsub.f32 %v5052, %v5444
        %v5596 = vsub.f32 %v5053, %v5444
        %v5597 = vsub.f32 %v5054, %v5444
        %v5598 = vadd.f32 %v5549, 1e-05
        %v5599 = vrsqrt.pop %v5598
        %v5600 = vmul.f32 %v5550, %v5599
        %v5601 = vmul.f32 %v5551, %v5599
        %v5602 = vmul.f32 %v5552, %v5599
        %v5603 = vmul.f32 %v5553, %v5599
        %v5604 = vmul.f32 %v5554, %v5599
        %v5605 = vmul.f32 %v5555, %v5599
        %v5606 = vmul.f32 %v5556, %v5599
        %v5607 = vmul.f32 %v5557, %v5599
        %v5608 = vmul.f32 %v5558, %v5599
        %v5609 = vmul.f32 %v5559, %v5599
        %v5610 = vmul.f32 %v5560, %v5599
        %v5611 = vmul.f32 %v5561, %v5599
        %v5612 = vmul.f32 %v5562, %v5599
        %v5613 = vmul.f32 %v5563, %v5599
        %v5614 = vmul.f32 %v5564, %v5599
        %v5615 = vmul.f32 %v5565, %v5599
        %v5616 = vmul.f32 %v5566, %v5599
        %v5617 = vmul.f32 %v5567, %v5599
        %v5618 = vmul.f32 %v5568, %v5599
        %v5619 = vmul.f32 %v5569, %v5599
        %v5620 = vmul.f32 %v5570, %v5599
        %v5621 = vmul.f32 %v5571, %v5599
        %v5622 = vmul.f32 %v5572, %v5599
        %v5623 = vmul.f32 %v5573, %v5599
        %v5624 = vmul.f32 %v5574, %v5599
        %v5625 = vmul.f32 %v5575, %v5599
        %v5626 = vmul.f32 %v5576, %v5599
        %v5627 = vmul.f32 %v5577, %v5599
        %v5628 = vmul.f32 %v5578, %v5599
        %v5629 = vmul.f32 %v5579, %v5599
        %v5630 = vmul.f32 %v5580, %v5599
        %v5631 = vmul.f32 %v5581, %v5599
        %v5632 = vmul.f32 %v5582, %v5599
        %v5633 = vmul.f32 %v5583, %v5599
        %v5634 = vmul.f32 %v5584, %v5599
        %v5635 = vmul.f32 %v5585, %v5599
        %v5636 = vmul.f32 %v5586, %v5599
        %v5637 = vmul.f32 %v5587, %v5599
        %v5638 = vmul.f32 %v5588, %v5599
        %v5639 = vmul.f32 %v5589, %v5599
        %v5640 = vmul.f32 %v5590, %v5599
        %v5641 = vmul.f32 %v5591, %v5599
        %v5642 = vmul.f32 %v5592, %v5599
        %v5643 = vmul.f32 %v5593, %v5599
        %v5644 = vmul.f32 %v5594, %v5599
        %v5645 = vmul.f32 %v5595, %v5599
        %v5646 = vmul.f32 %v5596, %v5599
        %v5647 = vmul.f32 %v5597, %v5599
        %v5648 = vmax.f32 %v5600, 0.0
        %v5649 = vmax.f32 %v5601, 0.0
        %v5650 = vmax.f32 %v5602, 0.0
        %v5651 = vmax.f32 %v5603, 0.0
        %v5652 = vmax.f32 %v5604, 0.0
        %v5653 = vmax.f32 %v5605, 0.0
        %v5654 = vmax.f32 %v5606, 0.0
        %v5655 = vmax.f32 %v5607, 0.0
        %v5656 = vmax.f32 %v5608, 0.0
        %v5657 = vmax.f32 %v5609, 0.0
        %v5658 = vmax.f32 %v5610, 0.0
        %v5659 = vmax.f32 %v5611, 0.0
        %v5660 = vmax.f32 %v5612, 0.0
        %v5661 = vmax.f32 %v5613, 0.0
        %v5662 = vmax.f32 %v5614, 0.0
        %v5663 = vmax.f32 %v5615, 0.0
        %v5664 = vmax.f32 %v5616, 0.0
        %v5665 = vmax.f32 %v5617, 0.0
        %v5666 = vmax.f32 %v5618, 0.0
        %v5667 = vmax.f32 %v5619, 0.0
        %v5668 = vmax.f32 %v5620, 0.0
        %v5669 = vmax.f32 %v5621, 0.0
        %v5670 = vmax.f32 %v5622, 0.0
        %v5671 = vmax.f32 %v5623, 0.0
        %v5672 = vmax.f32 %v5624, 0.0
        %v5673 = vmax.f32 %v5625, 0.0
        %v5674 = vmax.f32 %v5626, 0.0
        %v5675 = vmax.f32 %v5627, 0.0
        %v5676 = vmax.f32 %v5628, 0.0
        %v5677 = vmax.f32 %v5629, 0.0
        %v5678 = vmax.f32 %v5630, 0.0
        %v5679 = vmax.f32 %v5631, 0.0
        %v5680 = vmax.f32 %v5632, 0.0
        %v5681 = vmax.f32 %v5633, 0.0
        %v5682 = vmax.f32 %v5634, 0.0
        %v5683 = vmax.f32 %v5635, 0.0
        %v5684 = vmax.f32 %v5636, 0.0
        %v5685 = vmax.f32 %v5637, 0.0
        %v5686 = vmax.f32 %v5638, 0.0
        %v5687 = vmax.f32 %v5639, 0.0
        %v5688 = vmax.f32 %v5640, 0.0
        %v5689 = vmax.f32 %v5641, 0.0
        %v5690 = vmax.f32 %v5642, 0.0
        %v5691 = vmax.f32 %v5643, 0.0
        %v5692 = vmax.f32 %v5644, 0.0
        %v5693 = vmax.f32 %v5645, 0.0
        %v5694 = vmax.f32 %v5646, 0.0
        %v5695 = vmax.f32 %v5647, 0.0
        %5696 = vst [vmem:[%s190] sm:$0xff] %v5648
        %5697 = vst [vmem:[%s190 + $0x8] sm:$0xff] %v5649
        %5698 = vst [vmem:[%s190 + $0x10] sm:$0xff] %v5650
        %5699 = vst [vmem:[%s190 + $0x18] sm:$0xff] %v5651
        %5700 = vst [vmem:[%s190 + $0x20] sm:$0xff] %v5652
        %5701 = vst [vmem:[%s190 + $0x28] sm:$0xff] %v5653
        %5702 = vst [vmem:[%s190 + $0x30] sm:$0xff] %v5654
        %5703 = vst [vmem:[%s190 + $0x38] sm:$0xff] %v5655
        %5704 = vst [vmem:[%s190 + $0x40] sm:$0xff] %v5656
        %5705 = vst [vmem:[%s190 + $0x48] sm:$0xff] %v5657
        %5706 = vst [vmem:[%s190 + $0x50] sm:$0xff] %v5658
        %5707 = vst [vmem:[%s190 + $0x58] sm:$0xff] %v5659
        %5708 = vst [vmem:[%s190 + $0x60] sm:$0xff] %v5660
        %5709 = vst [vmem:[%s190 + $0x68] sm:$0xff] %v5661
        %5710 = vst [vmem:[%s190 + $0x70] sm:$0xff] %v5662
        %5711 = vst [vmem:[%s190 + $0x78] sm:$0xff] %v5663
        %5712 = vst [vmem:[%s190 + $0x80] sm:$0xff] %v5664
        %5713 = vst [vmem:[%s190 + $0x88] sm:$0xff] %v5665
        %5714 = vst [vmem:[%s190 + $0x90] sm:$0xff] %v5666
        %5715 = vst [vmem:[%s190 + $0x98] sm:$0xff] %v5667
        %5716 = vst [vmem:[%s190 + $0xa0] sm:$0xff] %v5668
        %5717 = vst [vmem:[%s190 + $0xa8] sm:$0xff] %v5669
        %5718 = vst [vmem:[%s190 + $0xb0] sm:$0xff] %v5670
        %5719 = vst [vmem:[%s190 + $0xb8] sm:$0xff] %v5671
        %5720 = vst [vmem:[%s190 + $0xc0] sm:$0xff] %v5672
        %5721 = vst [vmem:[%s190 + $0xc8] sm:$0xff] %v5673
        %5722 = vst [vmem:[%s190 + $0xd0] sm:$0xff] %v5674
        %5723 = vst [vmem:[%s190 + $0xd8] sm:$0xff] %v5675
        %5724 = vst [vmem:[%s190 + $0xe0] sm:$0xff] %v5676
        %5725 = vst [vmem:[%s190 + $0xe8] sm:$0xff] %v5677
        %5726 = vst [vmem:[%s190 + $0xf0] sm:$0xff] %v5678
        %5727 = vst [vmem:[%s190 + $0xf8] sm:$0xff] %v5679
        %5728 = vst [vmem:[%s190 + $0x100] sm:$0xff] %v5680
        %5729 = vst [vmem:[%s190 + $0x108] sm:$0xff] %v5681
        %5730 = vst [vmem:[%s190 + $0x110] sm:$0xff] %v5682
        %5731 = vst [vmem:[%s190 + $0x118] sm:$0xff] %v5683
        %5732 = vst [vmem:[%s190 + $0x120] sm:$0xff] %v5684
        %5733 = vst [vmem:[%s190 + $0x128] sm:$0xff] %v5685
        %5734 = vst [vmem:[%s190 + $0x130] sm:$0xff] %v5686
        %5735 = vst [vmem:[%s190 + $0x138] sm:$0xff] %v5687
        %5736 = vst [vmem:[%s190 + $0x140] sm:$0xff] %v5688
        %5737 = vst [vmem:[%s190 + $0x148] sm:$0xff] %v5689
        %5738 = vst [vmem:[%s190 + $0x150] sm:$0xff] %v5690
        %5739 = vst [vmem:[%s190 + $0x158] sm:$0xff] %v5691
        %5740 = vst [vmem:[%s190 + $0x160] sm:$0xff] %v5692
        %5741 = vst [vmem:[%s190 + $0x168] sm:$0xff] %v5693
        %5742 = vst [vmem:[%s190 + $0x170] sm:$0xff] %v5694
        %5743 = vst [vmem:[%s190 + $0x178] sm:$0xff] %v5695
        %s5744 = sand.u32 %s112, 1
        %s5745 = scalar_lea.sflag [#allocation3], %s5744
        %s5746 = sand.u32 %s112, 1
        %s5747 = smul.addr %s5746, 384
        %s5748 = scalar_lea.vmem [#allocation2], %s5747
        // Predicated region
        $region33: #{tpu_custom_call.1} parent=31 // pred_check
          %p5749 = pneg %p122
        $region34: #{tpu_custom_call.1} parent=31 // pred_check_branch
          %5751 = sbr.rel (%p5749) target = $region36
        $region35: #{tpu_custom_call.1} parent=31 // pred_region
          %s5753 = ssub.s32 6144, 6144
          %5754 = vsyncadd %s5745, %s5753
          %s5755 = smul.addr %s21, 48
          %s5756 = sadd.s32 %s22, %s5755
          %s5757 = smul.addr %s5756, 128
          %s5758 = scalar_lea.hbm %s3, %s5757
          %s5759 = sshll.u32 %s5748, 4
          %s5760 = int_to_ptr.vmem [resolvable:$true] %s5759
          %5765 = dma.vmem_to_hbm [thread:$0]  %s5760, 6144, %s5758, %s5745, 128, 128, 8
        $region36: #{tpu_custom_call.1} parent=31 // pred_fallthru
          _
      $region32: #{tpu_custom_call.1} parent=5 // pred_fallthru
        _
      %p5766 = scmp.le.s32.totalorder 2, %s12
      // Predicated region
      $region37: #{tpu_custom_call.1} parent=5 // pred_check
        %p5767 = pneg %p5766
      $region38: #{tpu_custom_call.1} parent=5 // pred_check_branch
        %5769 = sbr.rel (%p5767) target = $region40
      $region39: #{tpu_custom_call.1} parent=5 // pred_region
        %s5770 = ssub.s32 %s12, 2
        // Predicated region
        $region41: #{tpu_custom_call.1} parent=39 // pred_check
          %p5771 = pneg %p128
        $region42: #{tpu_custom_call.1} parent=39 // pred_check_branch
          %5773 = sbr.rel (%p5771) target = $region44
        $region43: #{tpu_custom_call.1} parent=39 // pred_region
          %s5774 = sand.u32 %s113, 1
          %s5775 = scalar_lea.sflag [#allocation3], %s5774
          %s5776 = sand.u32 %s113, 1
          %s5777 = smul.addr %s5776, 384
          %s5778 = scalar_lea.vmem [#allocation2], %s5777
          %5779 = dma.done %s5775, 6144
        $region44: #{tpu_custom_call.1} parent=39 // pred_fallthru
          _
      $region40: #{tpu_custom_call.1} parent=5 // pred_fallthru
        _
    $region6: #{tpu_custom_call.1} parent=1 // loop_footer
      %s16 = sadd.s32 1, %s12
    $region7: #{tpu_custom_call.1} parent=1 // loop_footer_branch
      %11 = sbr.rel target = $region3
    $region8: #{tpu_custom_call.1} parent=1 // loop_exit
      _
    %5780 = vsyncpa [#allocation3], 1
    %s5781 = scalar_lea.sflag [#allocation3], 1
    %5782 = vsyncpa %s5781, 1

</llo_original>
